<compile_context>
chip_gen: v6e
topology: v6e:2x2x1
jax: 0.10.0
libtpu: 0.0.40
codegen_flags: <defaults>
</compile_context>

<pallas_src>
import functools

import jax
import jax.numpy as jnp
from jax import lax
from jax.experimental import pallas as pl
from jax.experimental.pallas import tpu as pltpu


_VMEM_LIMIT = 48 * 1024 * 1024  # explicit scoped-VMEM cap, safe on v5e/v6e/v7x


# ----------------------------------------------------------------------------
# Tile-size helpers
# ----------------------------------------------------------------------------
def _pick_row_tile(m, target):
    """Largest row tile <= target, multiple of 8, preferring a divisor of m."""
    target = max(8, target)
    if m <= target:
        return m                      # single block == full dim (always legal)
    t = (target // 8) * 8
    for cand in range(t, 7, -8):
        if m % cand == 0:
            return cand
    return t                          # ragged final tile (stats are masked)


def _pick_col_tile(n, target):
    """Largest column tile <= target, multiple of 128, preferring a divisor."""
    target = max(128, target)
    if n <= target:
        return n
    t = (target // 128) * 128
    for cand in range(t, 127, -128):
        if n % cand == 0:
            return cand
    return t


def _pick_t_tile(t, v, stride, pad, c, slab_bytes=512 * 1024):
    """Temporal tile (in frames) for the tcn kernel.

    Multi-tile constraints:
      * tt % (8*stride) == 0  -> tt*V and (tt//stride)*V row blocks stay
        8-sublane aligned even for odd V,
      * pad == 0 or tt % pad == 0 -> halo block indices are exact,
      * t % tt == 0 or t % tt >= pad -> the (possibly ragged) last tile keeps
        its predecessor's post-halo fully in range.
    Falls back to one whole-sample tile when nothing qualifies.
    """
    target_rows = max(v, slab_bytes // max(1, c * 2))
    tgt = max(1, min(t, target_rows // max(1, v)))
    for tt in range(tgt, 0, -1):
        if tt == t:
            return t
        if tt % (8 * stride) != 0:
            continue
        if pad > 0 and tt % pad != 0:
            continue
        rem = t % tt
        if rem != 0 and rem < pad:
            continue
        return tt
    return t


# ----------------------------------------------------------------------------
# Kernel 1: tiled matmul + bias, optional fused per-row-tile column stats (BN)
# ----------------------------------------------------------------------------
def _matmul_stats_kernel(x_ref, w_ref, b_ref, o_ref, *stat_refs,
                         m_total, row_axis, with_stats):
    acc = jnp.dot(x_ref[...], w_ref[...], preferred_element_type=jnp.float32)
    acc = acc + b_ref[...]
    o_ref[...] = acc.astype(o_ref.dtype)
    if with_stats:
        sum_ref, ssq_ref = stat_refs
        i = pl.program_id(row_axis)
        tm = x_ref.shape[0]
        rows = lax.broadcasted_iota(jnp.int32, (tm, 1), 0)
        accm = jnp.where(i * tm + rows < m_total, acc, 0.0)
        sum_ref[0] = jnp.sum(accm, axis=0, keepdims=True)
        ssq_ref[0] = jnp.sum(accm * accm, axis=0, keepdims=True)


def matmul_bias_stats(x, w, b, *, out_dtype=jnp.bfloat16, row_tile=512,
                      col_tile=512, with_stats=True, weight_stationary=None):
    """(M, K) @ (K, N) + (1, N), bf16 MXU inputs / fp32 accumulation.

    Optionally emits per-row-tile column sum / sum-of-squares (fused BN batch
    statistics).  The grid loop order is chosen so the larger operand is
    streamed from HBM only once (activation- vs weight-stationary).
    """
    m, kc = x.shape
    nc = w.shape[1]
    budget = max(8, (6 * 1024 * 1024) // max(1, kc * 2))
    tm = _pick_row_tile(m, min(row_tile, budget))
    tn = _pick_col_tile(nc, min(col_tile, max(128, budget)))
    gm, gn = pl.cdiv(m, tm), pl.cdiv(nc, tn)
    if weight_stationary is None:
        # HBM traffic: activation-stationary = X + gm*W, weight-stationary =
        # W + gn*X.  Pick the smaller.
        weight_stationary = (x.size + gm * w.size) > (w.size + gn * x.size)

    if weight_stationary:
        grid = (gn, gm)
        row_axis = 1
        xmap = lambda j, i: (i, 0)
        wmap = lambda j, i: (0, j)
        bmap = lambda j, i: (0, j)
        omap = lambda j, i: (i, j)
        smap = lambda j, i: (i, 0, j)
    else:
        grid = (gm, gn)
        row_axis = 0
        xmap = lambda i, j: (i, 0)
        wmap = lambda i, j: (0, j)
        bmap = lambda i, j: (0, j)
        omap = lambda i, j: (i, j)
        smap = lambda i, j: (i, 0, j)

    kernel = functools.partial(_matmul_stats_kernel, m_total=m,
                               row_axis=row_axis, with_stats=with_stats)
    out_shape = [jax.ShapeDtypeStruct((m, nc), out_dtype)]
    out_specs = [pl.BlockSpec((tm, tn), omap)]
    if with_stats:
        out_shape += [jax.ShapeDtypeStruct((gm, 1, nc), jnp.float32)] * 2
        out_specs += [pl.BlockSpec((1, 1, tn), smap)] * 2

    res = pl.pallas_call(
        kernel,
        out_shape=tuple(out_shape),
        grid=grid,
        in_specs=[pl.BlockSpec((tm, kc), xmap),
                  pl.BlockSpec((kc, tn), wmap),
                  pl.BlockSpec((1, tn), bmap)],
        out_specs=tuple(out_specs),
        compiler_params=pltpu.CompilerParams(
            dimension_semantics=("parallel", "parallel"),
            vmem_limit_bytes=_VMEM_LIMIT),
    )(x, w, b)
    return res if with_stats else res[0]


# ----------------------------------------------------------------------------
# Kernel 2: K-partition adjacency aggregation (two-stage gcn) + BN1 stats
# ----------------------------------------------------------------------------
def _aggregate_stats_kernel(y_ref, at_ref, o_ref, sum_ref, ssq_ref,
                            *, k_groups, c, m_total):
    i = pl.program_id(0)
    bm, v = y_ref.shape[0], y_ref.shape[1]
    acc = jnp.zeros((bm, v, c), jnp.float32)
    for k in range(k_groups):
        yk = y_ref[:, :, k * c:(k + 1) * c]                  # (bm, v, c) bf16
        a_b = jnp.broadcast_to(at_ref[k][None], (bm, v, v)).astype(yk.dtype)
        # z[b, w, c] += sum_v A[k, v, w] * y[b, v, k, c]   ('bwv,bvc->bwc')
        acc = acc + lax.dot_general(a_b, yk, (((2,), (1,)), ((0,), (0,))),
                                    preferred_element_type=jnp.float32)
    o_ref[...] = acc.astype(o_ref.dtype)
    rows = lax.broadcasted_iota(jnp.int32, (bm, 1, 1), 0)
    accm = jnp.where(i * bm + rows < m_total, acc, 0.0)
    sum_ref[...] = jnp.sum(accm, axis=(0, 1), keepdims=True)
    ssq_ref[...] = jnp.sum(accm * accm, axis=(0, 1), keepdims=True)


def aggregate_adjacency_stats(y, a_t, *, k_groups, c, out_dtype=jnp.bfloat16):
    """y: (M, V, K*C) partition-major 1x1-conv output; a_t[k] = A[k].T.
    Returns z (M, V, C) plus fused per-row-tile BN1 partial sums."""
    m, v, kc_cols = y.shape
    target = max(8, min(512, (3 * 1024 * 1024) // max(1, v * (kc_cols + c) * 2)))
    bm = _pick_row_tile(m, target)
    gb = pl.cdiv(m, bm)
    kernel = functools.partial(_aggregate_stats_kernel, k_groups=k_groups,
                               c=c, m_total=m)
    return pl.pallas_call(
        kernel,
        out_shape=(jax.ShapeDtypeStruct((m, v, c), out_dtype),
                   jax.ShapeDtypeStruct((gb, 1, c), jnp.float32),
                   jax.ShapeDtypeStruct((gb, 1, c), jnp.float32)),
        grid=(gb,),
        in_specs=[pl.BlockSpec((bm, v, kc_cols), lambda i: (i, 0, 0)),
                  pl.BlockSpec(a_t.shape, lambda i: (0, 0, 0))],
        out_specs=(pl.BlockSpec((bm, v, c), lambda i: (i, 0, 0)),
                   pl.BlockSpec((1, 1, c), lambda i: (i, 0, 0)),
                   pl.BlockSpec((1, 1, c), lambda i: (i, 0, 0))),
        compiler_params=pltpu.CompilerParams(
            dimension_semantics=("parallel",),
            vmem_limit_bytes=_VMEM_LIMIT),
    )(y, a_t)


# ----------------------------------------------------------------------------
# Kernel 3: T-tiled fused BN1+ReLU -> (Kt,1) temporal conv (stride s) -> BN2 stats
# ----------------------------------------------------------------------------
def _tcn_kernel(z_ref, zpre_ref, zpost_ref, s1_ref, b1_ref, w_ref, cb_ref,
                o_ref, sum_ref, ssq_ref, hpad_ref,
                *, tt, v, c, kt, stride, pad, n_tb, t_total, ragged,
                t_out_tile):
    tb = pl.program_id(1)
    f32 = jnp.float32
    s1 = s1_ref[...]
    b1 = b1_ref[...]

    valid_t = None
    if ragged:
        valid_t = jnp.minimum(tt, t_total - tb * tt)

    # ---- BN1 (batch stats) + ReLU prologue into the padded VMEM scratch.
    hc = jnp.maximum(z_ref[0].astype(f32) * s1 + b1, 0.0)
    if ragged:
        rows = lax.broadcasted_iota(jnp.int32, (tt * v, 1), 0)
        hc = jnp.where(rows < valid_t * v, hc, 0.0)
    hpad_ref[pl.ds(pad * v, tt * v), :] = hc.astype(hpad_ref.dtype)

    if pad > 0:
        zp = zpre_ref[0].reshape(pad * v, c).astype(f32)
        zn = zpost_ref[0].reshape(pad * v, c).astype(f32)
        h_pre = jnp.where(tb > 0, jnp.maximum(zp * s1 + b1, 0.0), 0.0)
        h_post = jnp.where(tb < n_tb - 1, jnp.maximum(zn * s1 + b1, 0.0), 0.0)
        hpad_ref[pl.ds(0, pad * v), :] = h_pre.astype(hpad_ref.dtype)
        hpad_ref[pl.ds((pad + tt) * v, pad * v), :] = h_post.astype(hpad_ref.dtype)

    # ---- Kt-tap temporal conv: fp32 *value* accumulation (no VMEM RMW).
    acc = jnp.broadcast_to(cb_ref[...].astype(f32), (tt * v, c))
    for dt in range(kt):
        acc = acc + jnp.dot(hpad_ref[pl.ds(dt * v, tt * v), :], w_ref[dt],
                            preferred_element_type=f32)

    # ---- temporal stride: one vectorised subsample of the fp32 value.
    if stride == 1:
        vals = acc
    elif tt % stride == 0:
        vals = acc.reshape(tt // stride, stride * v, c)[:, :v, :]
        vals = vals.reshape(t_out_tile * v, c)
    else:
        # Single-tile fallback for T not divisible by stride.
        vals = acc.reshape(tt, v, c)[::stride].reshape(t_out_tile * v, c)

    o_ref[0] = vals.astype(o_ref.dtype)

    # ---- BN2 partial sums from the fp32 values (masked on a ragged tile).
    if ragged:
        ov = ((valid_t + stride - 1) // stride) * v
        orows = lax.broadcasted_iota(jnp.int32, (t_out_tile * v, 1), 0)
        svals = jnp.where(orows < ov, vals, 0.0)
    else:
        svals = vals
    sum_ref[0, 0] = jnp.sum(svals, axis=0, keepdims=True)
    ssq_ref[0, 0] = jnp.sum(svals * svals, axis=0, keepdims=True)


def tcn_conv_bn_relu_stats(z, s1, b1, w_taps, conv_bias, *, n, t, v, c, kt,
                           stride, pad, out_dtype=jnp.bfloat16, t_tile=None):
    """z: (N, T, V, C) channels-last gcn output.

    Applies BN1(scale/shift)+ReLU, the (Kt,1) temporal conv with stride, and
    emits per-(sample, T-tile) fp32 BN2 partial sums.  Tiled along T with halo
    frames coming from two small extra BlockSpec views of z.
    """
    if t_tile is None:
        t_tile = _pick_t_tile(t, v, stride, pad, c)
    tt = min(t_tile, t)
    n_tb = -(-t // tt)
    ragged = (t % tt) != 0
    if n_tb > 1:
        assert tt % stride == 0 and (pad == 0 or tt % pad == 0)
        assert (tt * v) % 8 == 0 and ((tt // stride) * v) % 8 == 0
        assert (t % tt == 0) or (t % tt >= pad)
    t_out_tile = -(-tt // stride)
    t_out = (t - 1) // stride + 1

    z3 = z.reshape(n, t * v, c)
    z4 = z.reshape(n, t, v, c)
    hp = max(pad, 1)

    if pad > 0:
        q = tt // pad
        post_hi = max(0, (t - pad) // pad)
        pre_map = lambda i, tb: (i, jnp.maximum(tb * q - 1, 0), 0, 0)
        post_map = lambda i, tb: (i, jnp.minimum((tb + 1) * q, post_hi), 0, 0)
    else:
        pre_map = lambda i, tb: (i, 0, 0, 0)
        post_map = lambda i, tb: (i, 0, 0, 0)

    kernel = functools.partial(
        _tcn_kernel, tt=tt, v=v, c=c, kt=kt, stride=stride, pad=pad,
        n_tb=n_tb, t_total=t, ragged=ragged, t_out_tile=t_out_tile)

    return pl.pallas_call(
        kernel,
        out_shape=(jax.ShapeDtypeStruct((n, t_out * v, c), out_dtype),
                   jax.ShapeDtypeStruct((n, n_tb, 1, c), jnp.float32),
                   jax.ShapeDtypeStruct((n, n_tb, 1, c), jnp.float32)),
        grid=(n, n_tb),
        in_specs=[pl.BlockSpec((1, tt * v, c), lambda i, tb: (i, tb, 0)),
                  pl.BlockSpec((1, hp, v, c), pre_map),
                  pl.BlockSpec((1, hp, v, c), post_map),
                  pl.BlockSpec((1, c), lambda i, tb: (0, 0)),
                  pl.BlockSpec((1, c), lambda i, tb: (0, 0)),
                  pl.BlockSpec((kt, c, c), lambda i, tb: (0, 0, 0)),
                  pl.BlockSpec((1, c), lambda i, tb: (0, 0))],
        out_specs=(pl.BlockSpec((1, t_out_tile * v, c), lambda i, tb: (i, tb, 0)),
                   pl.BlockSpec((1, 1, 1, c), lambda i, tb: (i, tb, 0, 0)),
                   pl.BlockSpec((1, 1, 1, c), lambda i, tb: (i, tb, 0, 0))),
        scratch_shapes=[pltpu.VMEM(((tt + 2 * pad) * v, c), jnp.bfloat16)],
        compiler_params=pltpu.CompilerParams(
            dimension_semantics=("parallel", "arbitrary"),
            vmem_limit_bytes=_VMEM_LIMIT),
    )(z3, z4, z4, s1, b1, w_taps, conv_bias)


# ----------------------------------------------------------------------------
# Kernel 4: fused epilogue  ReLU(BN2(tcn) + BN_res(res)), bf16 I/O
# ----------------------------------------------------------------------------
def _bn_add_bn_relu_kernel(t_ref, r_ref, s2_ref, b2_ref, sr_ref, br_ref, o_ref):
    t = t_ref[...].astype(jnp.float32)
    r = r_ref[...].astype(jnp.float32)
    o_ref[...] = jnp.maximum(
        t * s2_ref[...] + b2_ref[...] + r * sr_ref[...] + br_ref[...],
        0.0).astype(o_ref.dtype)


def _bn_relu_kernel(t_ref, s2_ref, b2_ref, o_ref):
    t = t_ref[...].astype(jnp.float32)
    o_ref[...] = jnp.maximum(t * s2_ref[...] + b2_ref[...], 0.0).astype(o_ref.dtype)


def bn_add_bn_relu(t2, r2, s2, b2, sr, br, *, out_dtype=jnp.bfloat16,
                   row_tile=512, col_tile=1024):
    m, l = t2.shape
    tm = _pick_row_tile(m, row_tile)
    tl = _pick_col_tile(l, col_tile)
    grid = (pl.cdiv(m, tm), pl.cdiv(l, tl))
    vec = lambda: pl.BlockSpec((1, tl), lambda i, j: (0, j))
    return pl.pallas_call(
        _bn_add_bn_relu_kernel,
        out_shape=jax.ShapeDtypeStruct((m, l), out_dtype),
        grid=grid,
        in_specs=[pl.BlockSpec((tm, tl), lambda i, j: (i, j)),
                  pl.BlockSpec((tm, tl), lambda i, j: (i, j)),
                  vec(), vec(), vec(), vec()],
        out_specs=pl.BlockSpec((tm, tl), lambda i, j: (i, j)),
        compiler_params=pltpu.CompilerParams(
            dimension_semantics=("parallel", "parallel"),
            vmem_limit_bytes=_VMEM_LIMIT),
    )(t2, r2, s2, b2, sr, br)


def bn_relu(t2, s2, b2, *, out_dtype=jnp.bfloat16, row_tile=512, col_tile=1024):
    m, l = t2.shape
    tm = _pick_row_tile(m, row_tile)
    tl = _pick_col_tile(l, col_tile)
    grid = (pl.cdiv(m, tm), pl.cdiv(l, tl))
    vec = lambda: pl.BlockSpec((1, tl), lambda i, j: (0, j))
    return pl.pallas_call(
        _bn_relu_kernel,
        out_shape=jax.ShapeDtypeStruct((m, l), out_dtype),
        grid=grid,
        in_specs=[pl.BlockSpec((tm, tl), lambda i, j: (i, j)), vec(), vec()],
        out_specs=pl.BlockSpec((tm, tl), lambda i, j: (i, j)),
        compiler_params=pltpu.CompilerParams(
            dimension_semantics=("parallel", "parallel"),
            vmem_limit_bytes=_VMEM_LIMIT),
    )(t2, s2, b2)


# ----------------------------------------------------------------------------
# BN finalization from fused fp32 partial sums (tiny host-side JAX)
# ----------------------------------------------------------------------------
def _bn_scale_shift(sums, ssqs, count, gamma, beta, *, fold=None, eps=1e-5):
    """Batch-stat BatchNorm folded to per-channel scale/shift.

    Single-pass E[x^2]-mean^2 in fp32 over chunked partial sums; biased
    variance matches PyTorch BatchNorm2d with track_running_stats=False.
    """
    s = jnp.sum(sums.reshape(-1, sums.shape[-1]), axis=0)
    q = jnp.sum(ssqs.reshape(-1, ssqs.shape[-1]), axis=0)
    if fold is not None:              # columns are (v, c): reduce over v
        s = s.reshape(fold, -1).sum(axis=0)
        q = q.reshape(fold, -1).sum(axis=0)
    mean = s / count
    var = jnp.maximum(q / count - mean * mean, 0.0)
    scale = gamma / jnp.sqrt(var + eps)
    shift = beta - mean * scale
    return scale.astype(jnp.float32), shift.astype(jnp.float32)


# ----------------------------------------------------------------------------
# st_gcn forward
# ----------------------------------------------------------------------------
def st_gcn_forward(x, A, params, kernel_size, stride=1, residual=True,
                   eps=1e-5, gcn_mode=None, tcn_t_tile=None,
                   out_dtype=jnp.bfloat16):
    """x: (N, C_in, T, V), A: (K, V, V) -> (N, C_out, T_out, V)."""
    N, C_in, T, V = x.shape
    Kt, K = kernel_size
    assert Kt % 2 == 1
    pad = (Kt - 1) // 2
    C_out = params["bn1_gamma"].shape[0]
    T_out = (T - 1) // stride + 1
    f32, bf16 = jnp.float32, jnp.bfloat16

    # Module-boundary layout change only: NCHW -> channels-last, bf16 once.
    x_cl = jnp.transpose(x, (0, 2, 3, 1)).astype(bf16)      # (N, T, V, C_in)

    if gcn_mode is None:
        # FLOP inflation of the folded single matmul vs the two-stage path.
        inflation = (V * C_in) / max(1, K * (C_in + V))
        gcn_mode = "fold" if inflation <= 2.0 else "two_stage"

    if gcn_mode == "fold":
        # 1x1 conv + 'nkctv,kvw->nctw' folded into ONE (V*Cin, V*Cout) matmul
        # over N*T rows, BN1 batch stats fused into the epilogue.
        wg = params["gcn_w"].reshape(K, C_out, C_in).astype(f32)
        w_fold = jnp.einsum("kcj,kvw->vjwc", wg, A.astype(f32)
                            ).reshape(V * C_in, V * C_out)
        b_fold = jnp.einsum("kc,kvw->wc",
                            params["gcn_b"].reshape(K, C_out).astype(f32),
                            A.astype(f32)).reshape(1, V * C_out)
        z, z_sum, z_ssq = matmul_bias_stats(
            x_cl.reshape(N * T, V * C_in), w_fold.astype(bf16), b_fold)
        s1, b1 = _bn_scale_shift(z_sum, z_ssq, N * T * V,
                                 params["bn1_gamma"].astype(f32),
                                 params["bn1_beta"].astype(f32), fold=V, eps=eps)
        z4 = z.reshape(N, T, V, C_out)
    else:
        # Two-stage gcn: tiny fully-resident 1x1 matmul, then the K-partition
        # adjacency aggregation with fused BN1 stats (no V^2 weight blow-up).
        y = matmul_bias_stats(
            x_cl.reshape(N * T * V, C_in),
            params["gcn_w"].T.astype(bf16),
            params["gcn_b"][None, :].astype(f32),
            with_stats=False)
        a_t = jnp.transpose(A, (0, 2, 1)).astype(f32)         # a_t[k] = A[k].T
        z, z_sum, z_ssq = aggregate_adjacency_stats(
            y.reshape(N * T, V, K * C_out), a_t, k_groups=K, c=C_out)
        s1, b1 = _bn_scale_shift(z_sum, z_ssq, N * T * V,
                                 params["bn1_gamma"].astype(f32),
                                 params["bn1_beta"].astype(f32), eps=eps)
        z4 = z.reshape(N, T, V, C_out)

    # ---- tcn: BN1+ReLU -> (Kt,1) conv (stride s) -> BN2 stats, T-tiled.
    w_taps = jnp.transpose(params["tcn_w"][:, :, :, 0], (2, 1, 0)).astype(bf16)
    t_raw, t_sum, t_ssq = tcn_conv_bn_relu_stats(
        z4, s1[None, :], b1[None, :], w_taps,
        params["tcn_b"][None, :].astype(f32),
        n=N, t=T, v=V, c=C_out, kt=Kt, stride=stride, pad=pad,
        t_tile=tcn_t_tile)
    s2, b2 = _bn_scale_shift(t_sum, t_ssq, N * T_out * V,
                             params["bn2_gamma"].astype(f32),
                             params["bn2_beta"].astype(f32), eps=eps)
    s2v, b2v = jnp.tile(s2, V)[None, :], jnp.tile(b2, V)[None, :]
    t2 = t_raw.reshape(N * T_out, V * C_out)

    # ---- residual + fused epilogue: ReLU(BN2(tcn) + BN_res(res)), bf16 I/O.
    if not residual:
        out2 = bn_relu(t2, s2v, b2v, out_dtype=out_dtype)
    else:
        if C_in == C_out and stride == 1:
            res2 = x_cl.reshape(N * T, V * C_in)        # identity residual, bf16
            sr = jnp.ones((C_out,), f32)
            br = jnp.zeros((C_out,), f32)
        else:
            x_s = x_cl[:, ::stride] if stride > 1 else x_cl
            r, r_sum, r_ssq = matmul_bias_stats(
                x_s.reshape(N * T_out * V, C_in),
                params["res_w"].T.astype(bf16),
                params["res_b"][None, :].astype(f32))
            sr, br = _bn_scale_shift(r_sum, r_ssq, N * T_out * V,
                                     params["res_gamma"].astype(f32),
                                     params["res_beta"].astype(f32), eps=eps)
            res2 = r.reshape(N * T_out, V * C_out)
        out2 = bn_add_bn_relu(t2, res2, s2v, b2v,
                              jnp.tile(sr, V)[None, :], jnp.tile(br, V)[None, :],
                              out_dtype=out_dtype)

    # Module boundary: back to NCHW.
    return out2.reshape(N, T_out, V, C_out).transpose(0, 3, 1, 2)


# ----------------------------------------------------------------------------
# Pure-JAX reference (correctness self-check) and parameter init
# ----------------------------------------------------------------------------
def _bn_ref(x, gamma, beta, eps=1e-5):
    mean = x.mean(axis=(0, 2, 3), keepdims=True)
    var = x.var(axis=(0, 2, 3), keepdims=True)          # biased, batch stats
    return ((x - mean) / jnp.sqrt(var + eps) * gamma[None, :, None, None]
            + beta[None, :, None, None])


def st_gcn_reference(x, A, params, kernel_size, stride=1, residual=True,
                     eps=1e-5):
    N, C_in, T, V = x.shape
    Kt, K = kernel_size
    pad = (Kt - 1) // 2
    C_out = params["bn1_gamma"].shape[0]
    T_out = (T - 1) // stride + 1

    if not residual:
        res = 0.0
    elif C_in == C_out and stride == 1:
        res = x
    else:
        xs = x[:, :, ::stride, :]
        rc = (jnp.einsum("oc,nctv->notv", params["res_w"], xs)
              + params["res_b"][None, :, None, None])
        res = _bn_ref(rc, params["res_gamma"], params["res_beta"], eps)

    y = (jnp.einsum("oc,nctv->notv", params["gcn_w"], x)
         + params["gcn_b"][None, :, None, None])
    y = y.reshape(N, K, C_out, T, V)
    z = jnp.einsum("nkctv,kvw->nctw", y, A)

    h = jax.nn.relu(_bn_ref(z, params["bn1_gamma"], params["bn1_beta"], eps))
    hp = jnp.pad(h, ((0, 0), (0, 0), (pad, pad), (0, 0)))
    t = params["tcn_b"][None, :, None, None] + sum(
        jnp.einsum("oc,nctv->notv", params["tcn_w"][:, :, dt, 0],
                   hp[:, :, dt: dt + (T_out - 1) * stride + 1: stride, :])
        for dt in range(Kt))
    t = _bn_ref(t, params["bn2_gamma"], params["bn2_beta"], eps)
    return jax.nn.relu(t + res)


def init_params(key, c_in, c_out, Kt, K):
    ks = jax.random.split(key, 12)
    n = lambda k, s: 0.1 * jax.random.normal(k, s, dtype=jnp.float32)
    return {
        "gcn_w": n(ks[0], (K * c_out, c_in)),
        "gcn_b": n(ks[1], (K * c_out,)),
        "tcn_w": n(ks[2], (c_out, c_out, Kt, 1)),
        "tcn_b": n(ks[3], (c_out,)),
        "bn1_gamma": 1.0 + n(ks[4], (c_out,)),
        "bn1_beta": n(ks[5], (c_out,)),
        "bn2_gamma": 1.0 + n(ks[6], (c_out,)),
        "bn2_beta": n(ks[7], (c_out,)),
        "res_w": n(ks[8], (c_out, c_in)),
        "res_b": n(ks[9], (c_out,)),
        "res_gamma": 1.0 + n(ks[10], (c_out,)),
        "res_beta": n(ks[11], (c_out,)),
    }


if __name__ == "__main__":
    def run_case(name, N, C_in, T, V, C_out, Kt, K, stride, residual,
                 gcn_mode=None, tcn_t_tile=None, tol=0.25):
        key = jax.random.PRNGKey(0)
        kx, ka, kp = jax.random.split(key, 3)
        x = jax.random.normal(kx, (N, C_in, T, V), dtype=jnp.float32)
        A = jax.random.uniform(ka, (K, V, V), dtype=jnp.float32) / V
        params = init_params(kp, C_in, C_out, Kt, K)

        fwd = jax.jit(functools.partial(
            st_gcn_forward, kernel_size=(Kt, K), stride=stride,
            residual=residual, gcn_mode=gcn_mode, tcn_t_tile=tcn_t_tile))
        out = jax.block_until_ready(fwd(x, A, params))

        T_out = (T - 1) // stride + 1
        assert out.shape == (N, C_out, T_out, V), (name, out.shape)
        out32 = out.astype(jnp.float32)
        assert bool(jnp.all(jnp.isfinite(out32))), name

        ref = st_gcn_reference(x, A, params, kernel_size=(Kt, K),
                               stride=stride, residual=residual)
        err = float(jnp.max(jnp.abs(out32 - ref)))
        assert err < tol, f"{name}: max abs diff vs reference = {err}"

    # 1) identity residual, folded-gcn path, stride 1, two T-tiles (halo path).
    run_case("fold_identity", N=2, C_in=4, T=16, V=16, C_out=8,
             Kt=3, K=3, stride=1, residual=True, tcn_t_tile=8)
    # 2) conv residual, two-stage gcn, temporal stride 2, Kt=5, two T-tiles.
    run_case("two_stage_stride2", N=2, C_in=8, T=16, V=16, C_out=16,
             Kt=5, K=3, stride=2, residual=True,
             gcn_mode="two_stage", tcn_t_tile=8)
    # 3) residual disabled (plain BN2+ReLU epilogue).
    run_case("no_residual", N=1, C_in=4, T=8, V=8, C_out=8,
             Kt=3, K=3, stride=1, residual=False)

    print("KERNEL_OK")
</pallas_src>

<mosaic_0001>
module attributes {stable_mosaic.version = 11 : i64} {
  func.func @_matmul_stats_kernel(%arg0: i32, %arg1: i32, %arg2: memref<32x64xbf16, #tpu.memory_space<vmem>>, %arg3: memref<64x128xbf16, #tpu.memory_space<vmem>>, %arg4: memref<1x128xf32, #tpu.memory_space<vmem>>, %arg5: memref<32x128xbf16, #tpu.memory_space<vmem>>, %arg6: memref<1x1x128xf32, #tpu.memory_space<vmem>>, %arg7: memref<1x1x128xf32, #tpu.memory_space<vmem>>) attributes {dimension_semantics = [#tpu.dimension_semantics<parallel>, #tpu.dimension_semantics<parallel>], iteration_bounds = array<i64: 1, 1>, scalar_prefetch = 0 : i64, scratch_operands = 0 : i64, tpu.core_type = #tpu.core_type<tc>, window_params = [{transform_indices = @transform_0, window_bounds = array<i64: 32, 64>}, {transform_indices = @transform_1, window_bounds = array<i64: 64, 128>}, {transform_indices = @transform_2, window_bounds = array<i64: 1, 128>}, {transform_indices = @transform_3, window_bounds = array<i64: 32, 128>}, {transform_indices = @transform_4, window_bounds = array<i64: 1, 1, 128>}, {transform_indices = @transform_5, window_bounds = array<i64: 1, 1, 128>}]} {
    %c0 = arith.constant 0 : index
    %c0_0 = arith.constant 0 : index
    %0 = vector.load %arg2[%c0, %c0_0] : memref<32x64xbf16, #tpu.memory_space<vmem>>, vector<32x64xbf16>
    %c0_1 = arith.constant 0 : index
    %c0_2 = arith.constant 0 : index
    %1 = vector.load %arg3[%c0_1, %c0_2] : memref<64x128xbf16, #tpu.memory_space<vmem>>, vector<64x128xbf16>
    %cst = arith.constant dense<0.000000e+00> : vector<32x128xf32>
    %2 = tpu.matmul %0, %1, %cst {dimension_numbers = #tpu.dot_dimension_numbers<[1], [0], [0], [1], [0, 0, 1, 1], [], []>} : vector<32x64xbf16>, vector<64x128xbf16>, vector<32x128xf32> -> vector<32x128xf32>
    %c0_3 = arith.constant 0 : index
    %c0_4 = arith.constant 0 : index
    %3 = vector.load %arg4[%c0_3, %c0_4] : memref<1x128xf32, #tpu.memory_space<vmem>>, vector<1x128xf32>
    %4 = vector.broadcast %3 : vector<1x128xf32> to vector<32x128xf32>
    %5 = arith.addf %2, %4 : vector<32x128xf32>
    %6 = arith.truncf %5 : vector<32x128xf32> to vector<32x128xbf16>
    %c0_5 = arith.constant 0 : index
    %c0_6 = arith.constant 0 : index
    %7 = vector.load %arg5[%c0_5, %c0_6] : memref<32x128xbf16, #tpu.memory_space<vmem>>, vector<32x128xbf16>
    tpu.vector_store %arg5[%c0_5, %c0_6], %6 {strides = array<i32>} : memref<32x128xbf16, #tpu.memory_space<vmem>>, vector<32x128xbf16>,
    %8 = tpu.iota {dimensions = array<i32: 0>} : vector<32x1xi32>
    %c32_i32 = arith.constant 32 : i32
    %9 = arith.muli %arg0, %c32_i32 : i32
    %10 = vector.broadcast %9 : i32 to vector<32x1xi32>
    %11 = arith.addi %10, %8 : vector<32x1xi32>
    %c32_i32_7 = arith.constant 32 : i32
    %12 = vector.broadcast %c32_i32_7 : i32 to vector<32x1xi32>
    %13 = arith.cmpi slt, %11, %12 : vector<32x1xi32>
    %cst_8 = arith.constant 0.000000e+00 : f32
    %14 = vector.shape_cast %13 : vector<32x1xi1> to vector<32x1xi1>
    %15 = vector.broadcast %14 : vector<32x1xi1> to vector<32x128xi1>
    %16 = vector.broadcast %cst_8 : f32 to vector<32x128xf32>
    %17 = arith.select %15, %5, %16 : vector<32x128xi1>, vector<32x128xf32>
    %cst_9 = arith.constant dense<0.000000e+00> : vector<128xf32>
    %18 = vector.multi_reduction <add>, %17, %cst_9 [0] : vector<32x128xf32> to vector<128xf32>
    %19 = vector.shape_cast %18 : vector<128xf32> to vector<1x128xf32>
    %c0_10 = arith.constant 0 : index
    %c0_11 = arith.constant 0 : index
    %c0_12 = arith.constant 0 : index
    %20 = vector.load %arg6[%c0_10, %c0_11, %c0_12] : memref<1x1x128xf32, #tpu.memory_space<vmem>>, vector<1x1x128xf32>
    %21 = vector.shape_cast %20 : vector<1x1x128xf32> to vector<1x128xf32>
    %22 = vector.shape_cast %19 : vector<1x128xf32> to vector<1x1x128xf32>
    tpu.vector_store %arg6[%c0_10, %c0_11, %c0_12], %22 {strides = array<i32>} : memref<1x1x128xf32, #tpu.memory_space<vmem>>, vector<1x1x128xf32>,
    %23 = arith.mulf %17, %17 : vector<32x128xf32>
    %cst_13 = arith.constant dense<0.000000e+00> : vector<128xf32>
    %24 = vector.multi_reduction <add>, %23, %cst_13 [0] : vector<32x128xf32> to vector<128xf32>
    %25 = vector.shape_cast %24 : vector<128xf32> to vector<1x128xf32>
    %c0_14 = arith.constant 0 : index
    %c0_15 = arith.constant 0 : index
    %c0_16 = arith.constant 0 : index
    %26 = vector.load %arg7[%c0_14, %c0_15, %c0_16] : memref<1x1x128xf32, #tpu.memory_space<vmem>>, vector<1x1x128xf32>
    %27 = vector.shape_cast %26 : vector<1x1x128xf32> to vector<1x128xf32>
    %28 = vector.shape_cast %25 : vector<1x128xf32> to vector<1x1x128xf32>
    tpu.vector_store %arg7[%c0_14, %c0_15, %c0_16], %28 {strides = array<i32>} : memref<1x1x128xf32, #tpu.memory_space<vmem>>, vector<1x1x128xf32>,
    return
  }
  func.func @transform_0(%arg0: i32, %arg1: i32) -> (i32, i32) {
    %c0_i32 = arith.constant 0 : i32
    %c0_i32_0 = arith.constant 0 : i32
    return %arg0, %c0_i32 : i32, i32
  }
  func.func @transform_1(%arg0: i32, %arg1: i32) -> (i32, i32) {
    %c0_i32 = arith.constant 0 : i32
    %c0_i32_0 = arith.constant 0 : i32
    return %c0_i32, %arg1 : i32, i32
  }
  func.func @transform_2(%arg0: i32, %arg1: i32) -> (i32, i32) {
    %c0_i32 = arith.constant 0 : i32
    %c0_i32_0 = arith.constant 0 : i32
    return %c0_i32, %arg1 : i32, i32
  }
  func.func @transform_3(%arg0: i32, %arg1: i32) -> (i32, i32) {
    %c0_i32 = arith.constant 0 : i32
    return %arg0, %arg1 : i32, i32
  }
  func.func @transform_4(%arg0: i32, %arg1: i32) -> (i32, i32, i32) {
    %c0_i32 = arith.constant 0 : i32
    %c0_i32_0 = arith.constant 0 : i32
    return %arg0, %c0_i32, %arg1 : i32, i32, i32
  }
  func.func @transform_5(%arg0: i32, %arg1: i32) -> (i32, i32, i32) {
    %c0_i32 = arith.constant 0 : i32
    %c0_i32_0 = arith.constant 0 : i32
    return %arg0, %c0_i32, %arg1 : i32, i32, i32
  }
}

module attributes {stable_mosaic.version = 11 : i64} {
  func.func @_matmul_stats_kernel(%arg0: i32, %arg1: i32, %arg2: memref<512x4xbf16, #tpu.memory_space<vmem>>, %arg3: memref<4x8xbf16, #tpu.memory_space<vmem>>, %arg4: memref<1x8xf32, #tpu.memory_space<vmem>>, %arg5: memref<512x8xbf16, #tpu.memory_space<vmem>>, %arg6: memref<1x1x8xf32, #tpu.memory_space<vmem>>, %arg7: memref<1x1x8xf32, #tpu.memory_space<vmem>>) attributes {dimension_semantics = [#tpu.dimension_semantics<parallel>, #tpu.dimension_semantics<parallel>], iteration_bounds = array<i64: 1, 1>, scalar_prefetch = 0 : i64, scratch_operands = 0 : i64, tpu.core_type = #tpu.core_type<tc>, window_params = [{transform_indices = @transform_0, window_bounds = array<i64: 512, 4>}, {transform_indices = @transform_1, window_bounds = array<i64: 4, 8>}, {transform_indices = @transform_2, window_bounds = array<i64: 1, 8>}, {transform_indices = @transform_3, window_bounds = array<i64: 512, 8>}, {transform_indices = @transform_4, window_bounds = array<i64: 1, 1, 8>}, {transform_indices = @transform_5, window_bounds = array<i64: 1, 1, 8>}]} {
    %c0 = arith.constant 0 : index
    %c0_0 = arith.constant 0 : index
    %0 = vector.load %arg2[%c0, %c0_0] : memref<512x4xbf16, #tpu.memory_space<vmem>>, vector<512x4xbf16>
    %c0_1 = arith.constant 0 : index
    %c0_2 = arith.constant 0 : index
    %1 = vector.load %arg3[%c0_1, %c0_2] : memref<4x8xbf16, #tpu.memory_space<vmem>>, vector<4x8xbf16>
    %cst = arith.constant dense<0.000000e+00> : vector<512x8xf32>
    %2 = tpu.matmul %0, %1, %cst {dimension_numbers = #tpu.dot_dimension_numbers<[1], [0], [0], [1], [0, 0, 1, 1], [], []>} : vector<512x4xbf16>, vector<4x8xbf16>, vector<512x8xf32> -> vector<512x8xf32>
    %c0_3 = arith.constant 0 : index
    %c0_4 = arith.constant 0 : index
    %3 = vector.load %arg4[%c0_3, %c0_4] : memref<1x8xf32, #tpu.memory_space<vmem>>, vector<1x8xf32>
    %4 = vector.broadcast %3 : vector<1x8xf32> to vector<512x8xf32>
    %5 = arith.addf %2, %4 : vector<512x8xf32>
    %6 = arith.truncf %5 : vector<512x8xf32> to vector<512x8xbf16>
    %c0_5 = arith.constant 0 : index
    %c0_6 = arith.constant 0 : index
    %7 = vector.load %arg5[%c0_5, %c0_6] : memref<512x8xbf16, #tpu.memory_space<vmem>>, vector<512x8xbf16>
    tpu.vector_store %arg5[%c0_5, %c0_6], %6 {strides = array<i32>} : memref<512x8xbf16, #tpu.memory_space<vmem>>, vector<512x8xbf16>,
    %8 = tpu.iota {dimensions = array<i32: 0>} : vector<512x1xi32>
    %c512_i32 = arith.constant 512 : i32
    %9 = arith.muli %arg0, %c512_i32 : i32
    %10 = vector.broadcast %9 : i32 to vector<512x1xi32>
    %11 = arith.addi %10, %8 : vector<512x1xi32>
    %c512_i32_7 = arith.constant 512 : i32
    %12 = vector.broadcast %c512_i32_7 : i32 to vector<512x1xi32>
    %13 = arith.cmpi slt, %11, %12 : vector<512x1xi32>
    %cst_8 = arith.constant 0.000000e+00 : f32
    %14 = vector.shape_cast %13 : vector<512x1xi1> to vector<512x1xi1>
    %15 = vector.broadcast %14 : vector<512x1xi1> to vector<512x8xi1>
    %16 = vector.broadcast %cst_8 : f32 to vector<512x8xf32>
    %17 = arith.select %15, %5, %16 : vector<512x8xi1>, vector<512x8xf32>
    %cst_9 = arith.constant dense<0.000000e+00> : vector<8xf32>
    %18 = vector.multi_reduction <add>, %17, %cst_9 [0] : vector<512x8xf32> to vector<8xf32>
    %19 = vector.shape_cast %18 : vector<8xf32> to vector<1x8xf32>
    %c0_10 = arith.constant 0 : index
    %c0_11 = arith.constant 0 : index
    %c0_12 = arith.constant 0 : index
    %20 = vector.load %arg6[%c0_10, %c0_11, %c0_12] : memref<1x1x8xf32, #tpu.memory_space<vmem>>, vector<1x1x8xf32>
    %21 = vector.shape_cast %20 : vector<1x1x8xf32> to vector<1x8xf32>
    %22 = vector.shape_cast %19 : vector<1x8xf32> to vector<1x1x8xf32>
    tpu.vector_store %arg6[%c0_10, %c0_11, %c0_12], %22 {strides = array<i32>} : memref<1x1x8xf32, #tpu.memory_space<vmem>>, vector<1x1x8xf32>,
    %23 = arith.mulf %17, %17 : vector<512x8xf32>
    %cst_13 = arith.constant dense<0.000000e+00> : vector<8xf32>
    %24 = vector.multi_reduction <add>, %23, %cst_13 [0] : vector<512x8xf32> to vector<8xf32>
    %25 = vector.shape_cast %24 : vector<8xf32> to vector<1x8xf32>
    %c0_14 = arith.constant 0 : index
    %c0_15 = arith.constant 0 : index
    %c0_16 = arith.constant 0 : index
    %26 = vector.load %arg7[%c0_14, %c0_15, %c0_16] : memref<1x1x8xf32, #tpu.memory_space<vmem>>, vector<1x1x8xf32>
    %27 = vector.shape_cast %26 : vector<1x1x8xf32> to vector<1x8xf32>
    %28 = vector.shape_cast %25 : vector<1x8xf32> to vector<1x1x8xf32>
    tpu.vector_store %arg7[%c0_14, %c0_15, %c0_16], %28 {strides = array<i32>} : memref<1x1x8xf32, #tpu.memory_space<vmem>>, vector<1x1x8xf32>,
    return
  }
  func.func @transform_0(%arg0: i32, %arg1: i32) -> (i32, i32) {
    %c0_i32 = arith.constant 0 : i32
    %c0_i32_0 = arith.constant 0 : i32
    return %arg0, %c0_i32 : i32, i32
  }
  func.func @transform_1(%arg0: i32, %arg1: i32) -> (i32, i32) {
    %c0_i32 = arith.constant 0 : i32
    %c0_i32_0 = arith.constant 0 : i32
    return %c0_i32, %arg1 : i32, i32
  }
  func.func @transform_2(%arg0: i32, %arg1: i32) -> (i32, i32) {
    %c0_i32 = arith.constant 0 : i32
    %c0_i32_0 = arith.constant 0 : i32
    return %c0_i32, %arg1 : i32, i32
  }
  func.func @transform_3(%arg0: i32, %arg1: i32) -> (i32, i32) {
    %c0_i32 = arith.constant 0 : i32
    return %arg0, %arg1 : i32, i32
  }
  func.func @transform_4(%arg0: i32, %arg1: i32) -> (i32, i32, i32) {
    %c0_i32 = arith.constant 0 : i32
    %c0_i32_0 = arith.constant 0 : i32
    return %arg0, %c0_i32, %arg1 : i32, i32, i32
  }
  func.func @transform_5(%arg0: i32, %arg1: i32) -> (i32, i32, i32) {
    %c0_i32 = arith.constant 0 : i32
    %c0_i32_0 = arith.constant 0 : i32
    return %arg0, %c0_i32, %arg1 : i32, i32, i32
  }
}

module attributes {stable_mosaic.version = 11 : i64} {
  func.func @_tcn_kernel(%arg0: i32, %arg1: i32, %arg2: memref<1x128x8xbf16, #tpu.memory_space<vmem>>, %arg3: memref<1x1x16x8xbf16, #tpu.memory_space<vmem>>, %arg4: memref<1x1x16x8xbf16, #tpu.memory_space<vmem>>, %arg5: memref<1x8xf32, #tpu.memory_space<vmem>>, %arg6: memref<1x8xf32, #tpu.memory_space<vmem>>, %arg7: memref<3x8x8xbf16, #tpu.memory_space<vmem>>, %arg8: memref<1x8xf32, #tpu.memory_space<vmem>>, %arg9: memref<1x128x8xbf16, #tpu.memory_space<vmem>>, %arg10: memref<1x1x1x8xf32, #tpu.memory_space<vmem>>, %arg11: memref<1x1x1x8xf32, #tpu.memory_space<vmem>>, %arg12: memref<160x8xbf16, #tpu.memory_space<vmem>>) attributes {dimension_semantics = [#tpu.dimension_semantics<parallel>, #tpu.dimension_semantics<arbitrary>], iteration_bounds = array<i64: 2, 2>, scalar_prefetch = 0 : i64, scratch_operands = 1 : i64, tpu.core_type = #tpu.core_type<tc>, window_params = [{transform_indices = @transform_0, window_bounds = array<i64: 1, 128, 8>}, {transform_indices = @transform_1, window_bounds = array<i64: 1, 1, 16, 8>}, {transform_indices = @transform_2, window_bounds = array<i64: 1, 1, 16, 8>}, {pipeline_mode = #tpu.pipeline_mode<synchronous>, transform_indices = @transform_3, window_bounds = array<i64: 1, 8>}, {pipeline_mode = #tpu.pipeline_mode<synchronous>, transform_indices = @transform_4, window_bounds = array<i64: 1, 8>}, {pipeline_mode = #tpu.pipeline_mode<synchronous>, transform_indices = @transform_5, window_bounds = array<i64: 3, 8, 8>}, {pipeline_mode = #tpu.pipeline_mode<synchronous>, transform_indices = @transform_6, window_bounds = array<i64: 1, 8>}, {transform_indices = @transform_7, window_bounds = array<i64: 1, 128, 8>}, {transform_indices = @transform_8, window_bounds = array<i64: 1, 1, 1, 8>}, {transform_indices = @transform_9, window_bounds = array<i64: 1, 1, 1, 8>}]} {
    %c0 = arith.constant 0 : index
    %c0_0 = arith.constant 0 : index
    %0 = vector.load %arg5[%c0, %c0_0] : memref<1x8xf32, #tpu.memory_space<vmem>>, vector<1x8xf32>
    %c0_1 = arith.constant 0 : index
    %c0_2 = arith.constant 0 : index
    %1 = vector.load %arg6[%c0_1, %c0_2] : memref<1x8xf32, #tpu.memory_space<vmem>>, vector<1x8xf32>
    %c0_3 = arith.constant 0 : index
    %c0_4 = arith.constant 0 : index
    %c0_5 = arith.constant 0 : index
    %2 = vector.load %arg2[%c0_3, %c0_4, %c0_5] : memref<1x128x8xbf16, #tpu.memory_space<vmem>>, vector<1x128x8xbf16>
    %3 = vector.shape_cast %2 : vector<1x128x8xbf16> to vector<128x8xbf16>
    %4 = arith.extf %3 : vector<128x8xbf16> to vector<128x8xf32>
    %5 = vector.broadcast %0 : vector<1x8xf32> to vector<128x8xf32>
    %6 = arith.mulf %4, %5 : vector<128x8xf32>
    %7 = vector.broadcast %1 : vector<1x8xf32> to vector<128x8xf32>
    %8 = arith.addf %6, %7 : vector<128x8xf32>
    %cst = arith.constant 0.000000e+00 : f32
    %9 = vector.broadcast %cst : f32 to vector<128x8xf32>
    %10 = arith.maximumf %8, %9 : vector<128x8xf32>
    %11 = arith.truncf %10 : vector<128x8xf32> to vector<128x8xbf16>
    %c16 = arith.constant 16 : index
    %c0_6 = arith.constant 0 : index
    %12 = vector.load %arg12[%c16, %c0_6] : memref<160x8xbf16, #tpu.memory_space<vmem>>, vector<128x8xbf16>
    tpu.vector_store %arg12[%c16, %c0_6], %11 {strides = array<i32>} : memref<160x8xbf16, #tpu.memory_space<vmem>>, vector<128x8xbf16>,
    %c0_7 = arith.constant 0 : index
    %c0_8 = arith.constant 0 : index
    %c0_9 = arith.constant 0 : index
    %c0_10 = arith.constant 0 : index
    %13 = vector.load %arg3[%c0_7, %c0_8, %c0_9, %c0_10] : memref<1x1x16x8xbf16, #tpu.memory_space<vmem>>, vector<1x1x16x8xbf16>
    %14 = vector.shape_cast %13 : vector<1x1x16x8xbf16> to vector<1x16x8xbf16>
    %15 = vector.shape_cast %14 : vector<1x16x8xbf16> to vector<16x8xbf16>
    %16 = arith.extf %15 : vector<16x8xbf16> to vector<16x8xf32>
    %c0_11 = arith.constant 0 : index
    %c0_12 = arith.constant 0 : index
    %c0_13 = arith.constant 0 : index
    %c0_14 = arith.constant 0 : index
    %17 = vector.load %arg4[%c0_11, %c0_12, %c0_13, %c0_14] : memref<1x1x16x8xbf16, #tpu.memory_space<vmem>>, vector<1x1x16x8xbf16>
    %18 = vector.shape_cast %17 : vector<1x1x16x8xbf16> to vector<1x16x8xbf16>
    %19 = vector.shape_cast %18 : vector<1x16x8xbf16> to vector<16x8xbf16>
    %20 = arith.extf %19 : vector<16x8xbf16> to vector<16x8xf32>
    %c0_i32 = arith.constant 0 : i32
    %21 = arith.cmpi sgt, %arg1, %c0_i32 : i32
    %22 = vector.broadcast %0 : vector<1x8xf32> to vector<16x8xf32>
    %23 = arith.mulf %16, %22 : vector<16x8xf32>
    %24 = vector.broadcast %1 : vector<1x8xf32> to vector<16x8xf32>
    %25 = arith.addf %23, %24 : vector<16x8xf32>
    %cst_15 = arith.constant 0.000000e+00 : f32
    %26 = vector.broadcast %cst_15 : f32 to vector<16x8xf32>
    %27 = arith.maximumf %25, %26 : vector<16x8xf32>
    %cst_16 = arith.constant 0.000000e+00 : f32
    %28 = vector.broadcast %cst_16 : f32 to vector<16x8xf32>
    %29 = arith.select %21, %27, %28 : vector<16x8xf32>
    %c1_i32 = arith.constant 1 : i32
    %30 = arith.cmpi slt, %arg1, %c1_i32 : i32
    %31 = vector.broadcast %0 : vector<1x8xf32> to vector<16x8xf32>
    %32 = arith.mulf %20, %31 : vector<16x8xf32>
    %33 = vector.broadcast %1 : vector<1x8xf32> to vector<16x8xf32>
    %34 = arith.addf %32, %33 : vector<16x8xf32>
    %cst_17 = arith.constant 0.000000e+00 : f32
    %35 = vector.broadcast %cst_17 : f32 to vector<16x8xf32>
    %36 = arith.maximumf %34, %35 : vector<16x8xf32>
    %cst_18 = arith.constant 0.000000e+00 : f32
    %37 = vector.broadcast %cst_18 : f32 to vector<16x8xf32>
    %38 = arith.select %30, %36, %37 : vector<16x8xf32>
    %39 = arith.truncf %29 : vector<16x8xf32> to vector<16x8xbf16>
    %c0_19 = arith.constant 0 : index
    %c0_20 = arith.constant 0 : index
    %40 = vector.load %arg12[%c0_19, %c0_20] : memref<160x8xbf16, #tpu.memory_space<vmem>>, vector<16x8xbf16>
    tpu.vector_store %arg12[%c0_19, %c0_20], %39 {strides = array<i32>} : memref<160x8xbf16, #tpu.memory_space<vmem>>, vector<16x8xbf16>,
    %41 = arith.truncf %38 : vector<16x8xf32> to vector<16x8xbf16>
    %c144 = arith.constant 144 : index
    %c0_21 = arith.constant 0 : index
    %42 = vector.load %arg12[%c144, %c0_21] : memref<160x8xbf16, #tpu.memory_space<vmem>>, vector<16x8xbf16>
    tpu.vector_store %arg12[%c144, %c0_21], %41 {strides = array<i32>} : memref<160x8xbf16, #tpu.memory_space<vmem>>, vector<16x8xbf16>,
    %c0_22 = arith.constant 0 : index
    %c0_23 = arith.constant 0 : index
    %43 = vector.load %arg8[%c0_22, %c0_23] : memref<1x8xf32, #tpu.memory_space<vmem>>, vector<1x8xf32>
    %44 = vector.shape_cast %43 : vector<1x8xf32> to vector<1x8xf32>
    %45 = vector.broadcast %44 : vector<1x8xf32> to vector<128x8xf32>
    %c0_24 = arith.constant 0 : index
    %c0_25 = arith.constant 0 : index
    %46 = vector.load %arg12[%c0_24, %c0_25] : memref<160x8xbf16, #tpu.memory_space<vmem>>, vector<128x8xbf16>
    %c0_26 = arith.constant 0 : index
    %c0_27 = arith.constant 0 : index
    %c0_28 = arith.constant 0 : index
    %47 = vector.load %arg7[%c0_26, %c0_27, %c0_28] : memref<3x8x8xbf16, #tpu.memory_space<vmem>>, vector<1x8x8xbf16>
    %48 = vector.shape_cast %47 : vector<1x8x8xbf16> to vector<8x8xbf16>
    %cst_29 = arith.constant dense<0.000000e+00> : vector<128x8xf32>
    %49 = tpu.matmul %46, %48, %cst_29 {dimension_numbers = #tpu.dot_dimension_numbers<[1], [0], [0], [1], [0, 0, 1, 1], [], []>} : vector<128x8xbf16>, vector<8x8xbf16>, vector<128x8xf32> -> vector<128x8xf32>
    %50 = arith.addf %45, %49 : vector<128x8xf32>
    %c16_30 = arith.constant 16 : index
    %c0_31 = arith.constant 0 : index
    %51 = vector.load %arg12[%c16_30, %c0_31] : memref<160x8xbf16, #tpu.memory_space<vmem>>, vector<128x8xbf16>
    %c1 = arith.constant 1 : index
    %c0_32 = arith.constant 0 : index
    %c0_33 = arith.constant 0 : index
    %52 = vector.load %arg7[%c1, %c0_32, %c0_33] : memref<3x8x8xbf16, #tpu.memory_space<vmem>>, vector<1x8x8xbf16>
    %53 = vector.shape_cast %52 : vector<1x8x8xbf16> to vector<8x8xbf16>
    %cst_34 = arith.constant dense<0.000000e+00> : vector<128x8xf32>
    %54 = tpu.matmul %51, %53, %cst_34 {dimension_numbers = #tpu.dot_dimension_numbers<[1], [0], [0], [1], [0, 0, 1, 1], [], []>} : vector<128x8xbf16>, vector<8x8xbf16>, vector<128x8xf32> -> vector<128x8xf32>
    %55 = arith.addf %50, %54 : vector<128x8xf32>
    %c32 = arith.constant 32 : index
    %c0_35 = arith.constant 0 : index
    %56 = vector.load %arg12[%c32, %c0_35] : memref<160x8xbf16, #tpu.memory_space<vmem>>, vector<128x8xbf16>
    %c2 = arith.constant 2 : index
    %c0_36 = arith.constant 0 : index
    %c0_37 = arith.constant 0 : index
    %57 = vector.load %arg7[%c2, %c0_36, %c0_37] : memref<3x8x8xbf16, #tpu.memory_space<vmem>>, vector<1x8x8xbf16>
    %58 = vector.shape_cast %57 : vector<1x8x8xbf16> to vector<8x8xbf16>
    %cst_38 = arith.constant dense<0.000000e+00> : vector<128x8xf32>
    %59 = tpu.matmul %56, %58, %cst_38 {dimension_numbers = #tpu.dot_dimension_numbers<[1], [0], [0], [1], [0, 0, 1, 1], [], []>} : vector<128x8xbf16>, vector<8x8xbf16>, vector<128x8xf32> -> vector<128x8xf32>
    %60 = arith.addf %55, %59 : vector<128x8xf32>
    %61 = arith.truncf %60 : vector<128x8xf32> to vector<128x8xbf16>
    %c0_39 = arith.constant 0 : index
    %c0_40 = arith.constant 0 : index
    %c0_41 = arith.constant 0 : index
    %62 = vector.load %arg9[%c0_39, %c0_40, %c0_41] : memref<1x128x8xbf16, #tpu.memory_space<vmem>>, vector<1x128x8xbf16>
    %63 = vector.shape_cast %62 : vector<1x128x8xbf16> to vector<128x8xbf16>
    %64 = vector.shape_cast %61 : vector<128x8xbf16> to vector<1x128x8xbf16>
    tpu.vector_store %arg9[%c0_39, %c0_40, %c0_41], %64 {strides = array<i32>} : memref<1x128x8xbf16, #tpu.memory_space<vmem>>, vector<1x128x8xbf16>,
    %cst_42 = arith.constant dense<0.000000e+00> : vector<8xf32>
    %65 = vector.multi_reduction <add>, %60, %cst_42 [0] : vector<128x8xf32> to vector<8xf32>
    %66 = vector.shape_cast %65 : vector<8xf32> to vector<1x8xf32>
    %c0_43 = arith.constant 0 : index
    %c0_44 = arith.constant 0 : index
    %c0_45 = arith.constant 0 : index
    %c0_46 = arith.constant 0 : index
    %67 = vector.load %arg10[%c0_43, %c0_44, %c0_45, %c0_46] : memref<1x1x1x8xf32, #tpu.memory_space<vmem>>, vector<1x1x1x8xf32>
    %68 = vector.shape_cast %67 : vector<1x1x1x8xf32> to vector<1x8xf32>
    %69 = vector.shape_cast %66 : vector<1x8xf32> to vector<1x1x1x8xf32>
    tpu.vector_store %arg10[%c0_43, %c0_44, %c0_45, %c0_46], %69 {strides = array<i32>} : memref<1x1x1x8xf32, #tpu.memory_space<vmem>>, vector<1x1x1x8xf32>,
    %70 = arith.mulf %60, %60 : vector<128x8xf32>
    %cst_47 = arith.constant dense<0.000000e+00> : vector<8xf32>
    %71 = vector.multi_reduction <add>, %70, %cst_47 [0] : vector<128x8xf32> to vector<8xf32>
    %72 = vector.shape_cast %71 : vector<8xf32> to vector<1x8xf32>
    %c0_48 = arith.constant 0 : index
    %c0_49 = arith.constant 0 : index
    %c0_50 = arith.constant 0 : index
    %c0_51 = arith.constant 0 : index
    %73 = vector.load %arg11[%c0_48, %c0_49, %c0_50, %c0_51] : memref<1x1x1x8xf32, #tpu.memory_space<vmem>>, vector<1x1x1x8xf32>
    %74 = vector.shape_cast %73 : vector<1x1x1x8xf32> to vector<1x8xf32>
    %75 = vector.shape_cast %72 : vector<1x8xf32> to vector<1x1x1x8xf32>
    tpu.vector_store %arg11[%c0_48, %c0_49, %c0_50, %c0_51], %75 {strides = array<i32>} : memref<1x1x1x8xf32, #tpu.memory_space<vmem>>, vector<1x1x1x8xf32>,
    return
  }
  func.func @transform_0(%arg0: i32, %arg1: i32) -> (i32, i32, i32) {
    %c0_i32 = arith.constant 0 : i32
    %c0_i32_0 = arith.constant 0 : i32
    return %arg0, %arg1, %c0_i32 : i32, i32, i32
  }
  func.func @transform_1(%arg0: i32, %arg1: i32) -> (i32, i32, i32, i32) {
    %c8_i32 = arith.constant 8 : i32
    %0 = arith.muli %arg1, %c8_i32 : i32
    %c1_i32 = arith.constant 1 : i32
    %1 = arith.subi %0, %c1_i32 : i32
    %c0_i32 = arith.constant 0 : i32
    %2 = arith.maxsi %1, %c0_i32 : i32
    %c0_i32_0 = arith.constant 0 : i32
    %c0_i32_1 = arith.constant 0 : i32
    %c0_i32_2 = arith.constant 0 : i32
    return %arg0, %2, %c0_i32_0, %c0_i32_1 : i32, i32, i32, i32
  }
  func.func @transform_2(%arg0: i32, %arg1: i32) -> (i32, i32, i32, i32) {
    %c1_i32 = arith.constant 1 : i32
    %0 = arith.addi %arg1, %c1_i32 : i32
    %c8_i32 = arith.constant 8 : i32
    %1 = arith.muli %0, %c8_i32 : i32
    %c15_i32 = arith.constant 15 : i32
    %2 = arith.minsi %1, %c15_i32 : i32
    %c0_i32 = arith.constant 0 : i32
    %c0_i32_0 = arith.constant 0 : i32
    %c0_i32_1 = arith.constant 0 : i32
    return %arg0, %2, %c0_i32, %c0_i32_0 : i32, i32, i32, i32
  }
  func.func @transform_3(%arg0: i32, %arg1: i32) -> (i32, i32) {
    %c0_i32 = arith.constant 0 : i32
    %c0_i32_0 = arith.constant 0 : i32
    %c0_i32_1 = arith.constant 0 : i32
    return %c0_i32, %c0_i32_0 : i32, i32
  }
  func.func @transform_4(%arg0: i32, %arg1: i32) -> (i32, i32) {
    %c0_i32 = arith.constant 0 : i32
    %c0_i32_0 = arith.constant 0 : i32
    %c0_i32_1 = arith.constant 0 : i32
    return %c0_i32, %c0_i32_0 : i32, i32
  }
  func.func @transform_5(%arg0: i32, %arg1: i32) -> (i32, i32, i32) {
    %c0_i32 = arith.constant 0 : i32
    %c0_i32_0 = arith.constant 0 : i32
    %c0_i32_1 = arith.constant 0 : i32
    %c0_i32_2 = arith.constant 0 : i32
    return %c0_i32, %c0_i32_0, %c0_i32_1 : i32, i32, i32
  }
  func.func @transform_6(%arg0: i32, %arg1: i32) -> (i32, i32) {
    %c0_i32 = arith.constant 0 : i32
    %c0_i32_0 = arith.constant 0 : i32
    %c0_i32_1 = arith.constant 0 : i32
    return %c0_i32, %c0_i32_0 : i32, i32
  }
  func.func @transform_7(%arg0: i32, %arg1: i32) -> (i32, i32, i32) {
    %c0_i32 = arith.constant 0 : i32
    %c0_i32_0 = arith.constant 0 : i32
    return %arg0, %arg1, %c0_i32 : i32, i32, i32
  }
  func.func @transform_8(%arg0: i32, %arg1: i32) -> (i32, i32, i32, i32) {
    %c0_i32 = arith.constant 0 : i32
    %c0_i32_0 = arith.constant 0 : i32
    %c0_i32_1 = arith.constant 0 : i32
    return %arg0, %arg1, %c0_i32, %c0_i32_0 : i32, i32, i32, i32
  }
  func.func @transform_9(%arg0: i32, %arg1: i32) -> (i32, i32, i32, i32) {
    %c0_i32 = arith.constant 0 : i32
    %c0_i32_0 = arith.constant 0 : i32
    %c0_i32_1 = arith.constant 0 : i32
    return %arg0, %arg1, %c0_i32, %c0_i32_0 : i32, i32, i32, i32
  }
}

module attributes {stable_mosaic.version = 11 : i64} {
  func.func @_bn_add_bn_relu_kernel(%arg0: i32, %arg1: i32, %arg2: memref<32x128xbf16, #tpu.memory_space<vmem>>, %arg3: memref<32x128xbf16, #tpu.memory_space<vmem>>, %arg4: memref<1x128xf32, #tpu.memory_space<vmem>>, %arg5: memref<1x128xf32, #tpu.memory_space<vmem>>, %arg6: memref<1x128xf32, #tpu.memory_space<vmem>>, %arg7: memref<1x128xf32, #tpu.memory_space<vmem>>, %arg8: memref<32x128xbf16, #tpu.memory_space<vmem>>) attributes {dimension_semantics = [#tpu.dimension_semantics<parallel>, #tpu.dimension_semantics<parallel>], iteration_bounds = array<i64: 1, 1>, scalar_prefetch = 0 : i64, scratch_operands = 0 : i64, tpu.core_type = #tpu.core_type<tc>, window_params = [{transform_indices = @transform_0, window_bounds = array<i64: 32, 128>}, {transform_indices = @transform_1, window_bounds = array<i64: 32, 128>}, {transform_indices = @transform_2, window_bounds = array<i64: 1, 128>}, {transform_indices = @transform_3, window_bounds = array<i64: 1, 128>}, {transform_indices = @transform_4, window_bounds = array<i64: 1, 128>}, {transform_indices = @transform_5, window_bounds = array<i64: 1, 128>}, {transform_indices = @transform_6, window_bounds = array<i64: 32, 128>}]} {
    %c0 = arith.constant 0 : index
    %c0_0 = arith.constant 0 : index
    %0 = vector.load %arg2[%c0, %c0_0] : memref<32x128xbf16, #tpu.memory_space<vmem>>, vector<32x128xbf16>
    %1 = arith.extf %0 : vector<32x128xbf16> to vector<32x128xf32>
    %c0_1 = arith.constant 0 : index
    %c0_2 = arith.constant 0 : index
    %2 = vector.load %arg3[%c0_1, %c0_2] : memref<32x128xbf16, #tpu.memory_space<vmem>>, vector<32x128xbf16>
    %3 = arith.extf %2 : vector<32x128xbf16> to vector<32x128xf32>
    %c0_3 = arith.constant 0 : index
    %c0_4 = arith.constant 0 : index
    %4 = vector.load %arg4[%c0_3, %c0_4] : memref<1x128xf32, #tpu.memory_space<vmem>>, vector<1x128xf32>
    %5 = vector.broadcast %4 : vector<1x128xf32> to vector<32x128xf32>
    %6 = arith.mulf %1, %5 : vector<32x128xf32>
    %c0_5 = arith.constant 0 : index
    %c0_6 = arith.constant 0 : index
    %7 = vector.load %arg5[%c0_5, %c0_6] : memref<1x128xf32, #tpu.memory_space<vmem>>, vector<1x128xf32>
    %8 = vector.broadcast %7 : vector<1x128xf32> to vector<32x128xf32>
    %9 = arith.addf %6, %8 : vector<32x128xf32>
    %c0_7 = arith.constant 0 : index
    %c0_8 = arith.constant 0 : index
    %10 = vector.load %arg6[%c0_7, %c0_8] : memref<1x128xf32, #tpu.memory_space<vmem>>, vector<1x128xf32>
    %11 = vector.broadcast %10 : vector<1x128xf32> to vector<32x128xf32>
    %12 = arith.mulf %3, %11 : vector<32x128xf32>
    %13 = arith.addf %9, %12 : vector<32x128xf32>
    %c0_9 = arith.constant 0 : index
    %c0_10 = arith.constant 0 : index
    %14 = vector.load %arg7[%c0_9, %c0_10] : memref<1x128xf32, #tpu.memory_space<vmem>>, vector<1x128xf32>
    %15 = vector.broadcast %14 : vector<1x128xf32> to vector<32x128xf32>
    %16 = arith.addf %13, %15 : vector<32x128xf32>
    %cst = arith.constant 0.000000e+00 : f32
    %17 = vector.broadcast %cst : f32 to vector<32x128xf32>
    %18 = arith.maximumf %16, %17 : vector<32x128xf32>
    %19 = arith.truncf %18 : vector<32x128xf32> to vector<32x128xbf16>
    %c0_11 = arith.constant 0 : index
    %c0_12 = arith.constant 0 : index
    %20 = vector.load %arg8[%c0_11, %c0_12] : memref<32x128xbf16, #tpu.memory_space<vmem>>, vector<32x128xbf16>
    tpu.vector_store %arg8[%c0_11, %c0_12], %19 {strides = array<i32>} : memref<32x128xbf16, #tpu.memory_space<vmem>>, vector<32x128xbf16>,
    return
  }
  func.func @transform_0(%arg0: i32, %arg1: i32) -> (i32, i32) {
    %c0_i32 = arith.constant 0 : i32
    return %arg0, %arg1 : i32, i32
  }
  func.func @transform_1(%arg0: i32, %arg1: i32) -> (i32, i32) {
    %c0_i32 = arith.constant 0 : i32
    return %arg0, %arg1 : i32, i32
  }
  func.func @transform_2(%arg0: i32, %arg1: i32) -> (i32, i32) {
    %c0_i32 = arith.constant 0 : i32
    %c0_i32_0 = arith.constant 0 : i32
    return %c0_i32, %arg1 : i32, i32
  }
  func.func @transform_3(%arg0: i32, %arg1: i32) -> (i32, i32) {
    %c0_i32 = arith.constant 0 : i32
    %c0_i32_0 = arith.constant 0 : i32
    return %c0_i32, %arg1 : i32, i32
  }
  func.func @transform_4(%arg0: i32, %arg1: i32) -> (i32, i32) {
    %c0_i32 = arith.constant 0 : i32
    %c0_i32_0 = arith.constant 0 : i32
    return %c0_i32, %arg1 : i32, i32
  }
  func.func @transform_5(%arg0: i32, %arg1: i32) -> (i32, i32) {
    %c0_i32 = arith.constant 0 : i32
    %c0_i32_0 = arith.constant 0 : i32
    return %c0_i32, %arg1 : i32, i32
  }
  func.func @transform_6(%arg0: i32, %arg1: i32) -> (i32, i32) {
    %c0_i32 = arith.constant 0 : i32
    return %arg0, %arg1 : i32, i32
  }
}

</mosaic_0001>

<llo_original>
// kernel: tile.38
$region0: #{tile.38}
  #allocation0 [shape = 's32[1]{0}', space=sflag, size = 0x4, scoped, tag = 'scoped memory for tile.38']
  %s0 = inlined_call_operand.vmem [shape: f32[8], index: 0, kind: input, shape index: {}]
  %s1 = inlined_call_operand.vmem [shape: f32[16,8], index: 1, kind: output, shape index: {}]
  // Predicated region
  $region2: #{tile.38} parent=0 // pred_check
    _
  $region3: #{tile.38} parent=0 // pred_check_branch
    %3 = sbr.rel (0) target = $region5
  $region4: #{tile.38} parent=0 // pred_region
    _
  $region5: #{tile.38} parent=0 // pred_fallthru
    _
  %v4 = vld [vmem:[%s0] ss:$0 sm:$0xff]
  %5 = vst [vmem:[%s1] sm:$0xff] %v4
  %s6 = scalar_lea.vmem %s1, 8
  %7 = vst [vmem:[%s6] sm:$0xff] %v4

// kernel: st_gcn_forward.4
$region0: #{st_gcn_forward.4}
  #allocation0 [shape = 'u32[]', space=smem, size = 0x4, offset = 0x4, fixed_abs, tag = 'smem constant byte address 0x4 - core index']
  #allocation1 [shape = 'u32[144,128]{1,0:T(1,128)}', space=vmem, size = 0x12000, scoped, tag = 'internal scratch']
  %s0 = inlined_call_operand.vmem [shape: bf16[32,64], index: 0, kind: input, shape index: {}]
  %s1 = inlined_call_operand.vmem [shape: bf16[64,128], index: 1, kind: input, shape index: {}]
  %s2 = inlined_call_operand.vmem [shape: f32[1,128], index: 2, kind: input, shape index: {}]
  %s3 = inlined_call_operand.vmem [shape: bf16[32,128], index: 3, kind: output, shape index: {0}]
  %s4 = inlined_call_operand.vmem [shape: f32[1,1,128], index: 4, kind: output, shape index: {1}]
  %s5 = inlined_call_operand.vmem [shape: f32[1,1,128], index: 5, kind: output, shape index: {2}]
  %6 = xla_tuple %s3, %s4, %s5
  %s7 = sld [smem:[#allocation0]]
  $region38: #{st_gcn_forward.4} parent=0
    _
  %s9 = ssub.s32 1, %s7
  %s10 = scalar_select 0, %s9, %s7
  // Predicated region
  $region2: #{st_gcn_forward.4} parent=0 // pred_check
    _
  $region3: #{st_gcn_forward.4} parent=0 // pred_check_branch
    %12 = sbr.rel (0) target = $region5
  $region4: #{st_gcn_forward.4} parent=0 // pred_region
    _
  $region5: #{st_gcn_forward.4} parent=0 // pred_fallthru
    _
  // Predicated region
  $region6: #{st_gcn_forward.4} parent=0 // pred_check
    _
  $region7: #{st_gcn_forward.4} parent=0 // pred_check_branch
    %14 = sbr.rel (0) target = $region9
  $region8: #{st_gcn_forward.4} parent=0 // pred_region
    _
  $region9: #{st_gcn_forward.4} parent=0 // pred_fallthru
    _
  // Predicated region
  $region10: #{st_gcn_forward.4} parent=0 // pred_check
    _
  $region11: #{st_gcn_forward.4} parent=0 // pred_check_branch
    %16 = sbr.rel (0) target = $region13
  $region12: #{st_gcn_forward.4} parent=0 // pred_region
    _
  $region13: #{st_gcn_forward.4} parent=0 // pred_fallthru
    _
  %v18 = vld [vmem:[%s0] sm:$0xf]
  %v19 = vld [vmem:[%s0 + $0x4] sm:$0xf]
  %v20 = vld [vmem:[%s0 + $0x8] sm:$0xf]
  %v21 = vld [vmem:[%s0 + $0xc] sm:$0xf]
  %v22 = vld [vmem:[%s1] sm:$0xf]
  %v23 = vld [vmem:[%s1 + $0x4] sm:$0xf]
  %v24 = vld [vmem:[%s1 + $0x8] sm:$0xf]
  %v25 = vld [vmem:[%s1 + $0xc] sm:$0xf]
  %v26 = vld [vmem:[%s1 + $0x10] sm:$0xf]
  %v27 = vld [vmem:[%s1 + $0x14] sm:$0xf]
  %v28 = vld [vmem:[%s1 + $0x18] sm:$0xf]
  %v29 = vld [vmem:[%s1 + $0x1c] sm:$0xf]
  %v30 = vld [vmem:[%s2] sm:$0x1]
  %v32 = vlaneseq
  %v33 = vshrl.u32 %v32, 7
  %v34 = vsub.s32 0, %v33
  %v35 = vrot.slane %v30, %v34
  %v41 = vunpack.c.l.b16 %v18
  %v42 = vunpack.c.l.b16 %v19
  %v43 = vunpack.c.l.b16 %v20
  %v44 = vunpack.c.l.b16 %v21
  %v45 = vpack.c.b16 %v42, %v41
  %v46 = vpack.c.b16 %v44, %v43
  %v55 = vunpack.c.l.b16 %v22
  %v56 = vunpack.c.l.b16 %v23
  %v57 = vunpack.c.l.b16 %v24
  %v58 = vunpack.c.l.b16 %v25
  %v59 = vunpack.c.l.b16 %v26
  %v60 = vunpack.c.l.b16 %v27
  %v61 = vunpack.c.l.b16 %v28
  %v62 = vunpack.c.l.b16 %v29
  %v63 = vpack.c.b16 %v56, %v55
  %v64 = vpack.c.b16 %v58, %v57
  %v65 = vpack.c.b16 %v60, %v59
  %v66 = vpack.c.b16 %v62, %v61
  %vm71 = vcmask 523264
  %v73 = vsel %vm71, %v45, 0
  %v76 = vsel %vm71, %v46, 0
  %78 = vmatprep.subr.bf16.mxu0 0
  %79 = vmatpush1.bf16.msra.mxu0 0
  %80 = vmatprep.subr.bf16.mxu0 0
  %81 = vmatpush1.bf16.msra.mxu0 0
  %82 = vmatprep.subr.bf16.mxu0 0
  %83 = vmatpush1.bf16.msra.mxu0 0
  %84 = vmatprep.subr.bf16.mxu0 0
  %85 = vmatpush1.bf16.msra.mxu0 0
  %86 = vmatprep.subr.bf16.mxu0 0
  %87 = vmatpush1.bf16.msra.mxu0 %v66
  %88 = vmatprep.subr.bf16.mxu0 0
  %89 = vmatpush1.bf16.msra.mxu0 %v65
  %90 = vmatprep.subr.bf16.mxu0 0
  %91 = vmatpush1.bf16.msra.mxu0 %v64
  %92 = vmatprep.subr.bf16.mxu0 0
  %93 = vmatpush1.bf16.msra.mxu0 %v63
  %94 = vmatprep.subr.bf16.mxu0 0
  %95 = vmatpush2.bf16.msra.mxu0 0
  %96 = vmatprep.subr.bf16.mxu0 0
  %97 = vmatpush2.bf16.msra.mxu0 0
  %98 = vmatprep.subr.bf16.mxu0 0
  %99 = vmatpush2.bf16.msra.mxu0 0
  %100 = vmatprep.subr.bf16.mxu0 0
  %101 = vmatpush2.bf16.msra.mxu0 0
  %102 = vmatprep.subr.bf16.mxu0 0
  %103 = vmatpush2.bf16.msra.mxu0 0
  %104 = vmatprep.subr.bf16.mxu0 0
  %105 = vmatpush2.bf16.msra.mxu0 0
  %106 = vmatprep.subr.bf16.mxu0 0
  %107 = vmatpush2.bf16.msra.mxu0 0
  %108 = vmatprep.subr.bf16.mxu0 0
  %109 = vmatpush2.bf16.msra.mxu0 0
  %110 = vmatprep.mubr.bf16.mxu0 0
  %111 = vmatmul.mubr.bf16.gmra.mxu0 %v73
  %v112 = vpop.f32.mrf.mxu0
  %v113 = vadd.f32 %v35, %v112
  %v114 = vpop.f32.mrf.mxu0
  %v115 = vpop.f32.mrf.mxu0
  %v116 = vadd.f32 %v35, %v115
  %v117 = vpop.f32.mrf.mxu0
  %118 = vmatprep.mubr.bf16.mxu0 0
  %119 = vmatmul.mubr.bf16.gmra.mxu0 %v76
  %v120 = vpop.f32.mrf.mxu0
  %v121 = vadd.f32 %v35, %v120
  %v122 = vpop.f32.mrf.mxu0
  %v123 = vpop.f32.mrf.mxu0
  %v124 = vadd.f32 %v35, %v123
  %v125 = vpop.f32.mrf.mxu0
  %126 = vdwg.mxu0
  %v127 = vpack.c.bf16 %v116, %v113
  %v128 = vpack.c.bf16 %v124, %v121
  %v131 = vunpack.c.l.b16 %v127
  %v132 = vunpack.c.h.b16 %v127
  %v133 = vunpack.c.l.b16 %v128
  %v134 = vunpack.c.h.b16 %v128
  %v135 = vpack.c.b16 %v131, %v131
  %v136 = vpack.c.b16 %v132, %v132
  %v137 = vpack.c.b16 %v133, %v133
  %v138 = vpack.c.b16 %v134, %v134
  %143 = vst [vmem:[%s3] sm:$0xf] %v135
  %144 = vst [vmem:[%s3 + $0x4] sm:$0xf] %v136
  %145 = vst [vmem:[%s3 + $0x8] sm:$0xf] %v137
  %146 = vst [vmem:[%s3 + $0xc] sm:$0xf] %v138
  %v147 = vlaneseq
  %v148 = vshrl.u32 %v147, 7
  %v149 = vadd.s32 %v148, 8
  %v150 = vadd.s32 %v148, 16
  %v151 = vadd.s32 %v148, 24
  %s152 = smul.u32 0, 32
  %v153 = vstv %s152
  %v154 = vadd.s32 %v153, %v148
  %v155 = vadd.s32 %v153, %v149
  %v156 = vadd.s32 %v153, %v150
  %v157 = vadd.s32 %v153, %v151
  %vm158 = vcmp.lt.s32.totalorder %v154, 32
  %vm159 = vcmp.lt.s32.totalorder %v155, 32
  %vm160 = vcmp.lt.s32.totalorder %v156, 32
  %vm161 = vcmp.lt.s32.totalorder %v157, 32
  %v162 = vsel %vm158, 1, 0
  %v163 = vsel %vm159, 1, 0
  %v164 = vsel %vm160, 1, 0
  %v165 = vsel %vm161, 1, 0
  %vm166 = vcmp.eq.s32.totalorder %v162, 1
  %vm167 = vcmp.eq.s32.totalorder %v163, 1
  %vm168 = vcmp.eq.s32.totalorder %v164, 1
  %vm169 = vcmp.eq.s32.totalorder %v165, 1
  %v170 = vsel %vm166, %v113, 0.0
  %v171 = vsel %vm167, %v116, 0.0
  %v172 = vsel %vm168, %v121, 0.0
  %v173 = vsel %vm169, %v124, 0.0
  %v174 = vadd.f32 %v170, %v171
  %v175 = vadd.f32 %v174, %v172
  %v176 = vadd.f32 %v175, %v173
  %v177 = vrot.slane %v176, 4
  %v178 = vadd.f32 %v176, %v177
  %v179 = vrot.slane %v178, 2
  %v180 = vadd.f32 %v178, %v179
  %v181 = vrot.slane %v180, 1
  %v182 = vadd.f32 %v180, %v181
  %183 = vst [vmem:[%s4] sm:$0x1] %v182
  %v184 = vmul.f32 %v170, %v170
  %v185 = vmul.f32 %v171, %v171
  %v186 = vmul.f32 %v172, %v172
  %v187 = vmul.f32 %v173, %v173
  %v188 = vadd.f32 %v184, %v185
  %v189 = vadd.f32 %v188, %v186
  %v190 = vadd.f32 %v189, %v187
  %v191 = vrot.slane %v190, 4
  %v192 = vadd.f32 %v190, %v191
  %v193 = vrot.slane %v192, 2
  %v194 = vadd.f32 %v192, %v193
  %v195 = vrot.slane %v194, 1
  %v196 = vadd.f32 %v194, %v195
  %197 = vst [vmem:[%s5] sm:$0x1] %v196
  // Predicated region
  $region14: #{st_gcn_forward.4} parent=0 // pred_check
    _
  $region15: #{st_gcn_forward.4} parent=0 // pred_check_branch
    %199 = sbr.rel (0) target = $region17
  $region16: #{st_gcn_forward.4} parent=0 // pred_region
    _
  $region17: #{st_gcn_forward.4} parent=0 // pred_fallthru
    _
  // Predicated region
  $region18: #{st_gcn_forward.4} parent=0 // pred_check
    _
  $region19: #{st_gcn_forward.4} parent=0 // pred_check_branch
    %201 = sbr.rel (0) target = $region21
  $region20: #{st_gcn_forward.4} parent=0 // pred_region
    _
  $region21: #{st_gcn_forward.4} parent=0 // pred_fallthru
    _
  // Predicated region
  $region22: #{st_gcn_forward.4} parent=0 // pred_check
    _
  $region23: #{st_gcn_forward.4} parent=0 // pred_check_branch
    %203 = sbr.rel (0) target = $region25
  $region24: #{st_gcn_forward.4} parent=0 // pred_region
    _
  $region25: #{st_gcn_forward.4} parent=0 // pred_fallthru
    _
  // Predicated region
  $region26: #{st_gcn_forward.4} parent=0 // pred_check
    _
  $region27: #{st_gcn_forward.4} parent=0 // pred_check_branch
    %205 = sbr.rel (0) target = $region29
  $region28: #{st_gcn_forward.4} parent=0 // pred_region
    _
  $region29: #{st_gcn_forward.4} parent=0 // pred_fallthru
    _
  // Predicated region
  $region30: #{st_gcn_forward.4} parent=0 // pred_check
    _
  $region31: #{st_gcn_forward.4} parent=0 // pred_check_branch
    %207 = sbr.rel (0) target = $region33
  $region32: #{st_gcn_forward.4} parent=0 // pred_region
    _
  $region33: #{st_gcn_forward.4} parent=0 // pred_fallthru
    _
  // Predicated region
  $region34: #{st_gcn_forward.4} parent=0 // pred_check
    _
  $region35: #{st_gcn_forward.4} parent=0 // pred_check_branch
    %209 = sbr.rel (0) target = $region37
  $region36: #{st_gcn_forward.4} parent=0 // pred_region
    _
  $region37: #{st_gcn_forward.4} parent=0 // pred_fallthru
    _

// kernel: st_gcn_forward.6
$region0: #{st_gcn_forward.6}
  #allocation0 [shape = 'u32[]', space=smem, size = 0x4, offset = 0x4, fixed_abs, tag = 'smem constant byte address 0x4 - core index']
  #allocation1 [shape = 'u32[144,128]{1,0:T(1,128)}', space=vmem, size = 0x12000, scoped, tag = 'internal scratch']
  %s0 = inlined_call_operand.vmem [shape: bf16[512,4], index: 0, kind: input, shape index: {}]
  %s1 = inlined_call_operand.vmem [shape: bf16[4,8], index: 1, kind: input, shape index: {}]
  %s2 = inlined_call_operand.vmem [shape: f32[1,8], index: 2, kind: input, shape index: {}]
  %s3 = inlined_call_operand.vmem [shape: bf16[512,8], index: 3, kind: output, shape index: {0}]
  %s4 = inlined_call_operand.vmem [shape: f32[1,1,8], index: 4, kind: output, shape index: {1}]
  %s5 = inlined_call_operand.vmem [shape: f32[1,1,8], index: 5, kind: output, shape index: {2}]
  %6 = xla_tuple %s3, %s4, %s5
  %s7 = sld [smem:[#allocation0]]
  $region38: #{st_gcn_forward.6} parent=0
    _
  %s9 = ssub.s32 1, %s7
  %s10 = scalar_select 0, %s9, %s7
  // Predicated region
  $region2: #{st_gcn_forward.6} parent=0 // pred_check
    _
  $region3: #{st_gcn_forward.6} parent=0 // pred_check_branch
    %12 = sbr.rel (0) target = $region5
  $region4: #{st_gcn_forward.6} parent=0 // pred_region
    _
  $region5: #{st_gcn_forward.6} parent=0 // pred_fallthru
    _
  // Predicated region
  $region6: #{st_gcn_forward.6} parent=0 // pred_check
    _
  $region7: #{st_gcn_forward.6} parent=0 // pred_check_branch
    %14 = sbr.rel (0) target = $region9
  $region8: #{st_gcn_forward.6} parent=0 // pred_region
    _
  $region9: #{st_gcn_forward.6} parent=0 // pred_fallthru
    _
  // Predicated region
  $region10: #{st_gcn_forward.6} parent=0 // pred_check
    _
  $region11: #{st_gcn_forward.6} parent=0 // pred_check_branch
    %16 = sbr.rel (0) target = $region13
  $region12: #{st_gcn_forward.6} parent=0 // pred_region
    _
  $region13: #{st_gcn_forward.6} parent=0 // pred_fallthru
    _
  %v18 = vld [vmem:[%s0] sm:$0xf]
  %v19 = vld [vmem:[%s0 + $0x4] sm:$0xf]
  %v20 = vld [vmem:[%s0 + $0x8] sm:$0xf]
  %v21 = vld [vmem:[%s0 + $0xc] sm:$0xf]
  %v22 = vld [vmem:[%s0 + $0x10] sm:$0xf]
  %v23 = vld [vmem:[%s0 + $0x14] sm:$0xf]
  %v24 = vld [vmem:[%s0 + $0x18] sm:$0xf]
  %v25 = vld [vmem:[%s0 + $0x1c] sm:$0xf]
  %v26 = vld [vmem:[%s0 + $0x20] sm:$0xf]
  %v27 = vld [vmem:[%s0 + $0x24] sm:$0xf]
  %v28 = vld [vmem:[%s0 + $0x28] sm:$0xf]
  %v29 = vld [vmem:[%s0 + $0x2c] sm:$0xf]
  %v30 = vld [vmem:[%s0 + $0x30] sm:$0xf]
  %v31 = vld [vmem:[%s0 + $0x34] sm:$0xf]
  %v32 = vld [vmem:[%s0 + $0x38] sm:$0xf]
  %v33 = vld [vmem:[%s0 + $0x3c] sm:$0xf]
  %v34 = vld [vmem:[%s0 + $0x40] sm:$0xf]
  %v35 = vld [vmem:[%s0 + $0x44] sm:$0xf]
  %v36 = vld [vmem:[%s0 + $0x48] sm:$0xf]
  %v37 = vld [vmem:[%s0 + $0x4c] sm:$0xf]
  %v38 = vld [vmem:[%s0 + $0x50] sm:$0xf]
  %v39 = vld [vmem:[%s0 + $0x54] sm:$0xf]
  %v40 = vld [vmem:[%s0 + $0x58] sm:$0xf]
  %v41 = vld [vmem:[%s0 + $0x5c] sm:$0xf]
  %v42 = vld [vmem:[%s0 + $0x60] sm:$0xf]
  %v43 = vld [vmem:[%s0 + $0x64] sm:$0xf]
  %v44 = vld [vmem:[%s0 + $0x68] sm:$0xf]
  %v45 = vld [vmem:[%s0 + $0x6c] sm:$0xf]
  %v46 = vld [vmem:[%s0 + $0x70] sm:$0xf]
  %v47 = vld [vmem:[%s0 + $0x74] sm:$0xf]
  %v48 = vld [vmem:[%s0 + $0x78] sm:$0xf]
  %v49 = vld [vmem:[%s0 + $0x7c] sm:$0xf]
  %v50 = vld [vmem:[%s0 + $0x80] sm:$0xf]
  %v51 = vld [vmem:[%s0 + $0x84] sm:$0xf]
  %v52 = vld [vmem:[%s0 + $0x88] sm:$0xf]
  %v53 = vld [vmem:[%s0 + $0x8c] sm:$0xf]
  %v54 = vld [vmem:[%s0 + $0x90] sm:$0xf]
  %v55 = vld [vmem:[%s0 + $0x94] sm:$0xf]
  %v56 = vld [vmem:[%s0 + $0x98] sm:$0xf]
  %v57 = vld [vmem:[%s0 + $0x9c] sm:$0xf]
  %v58 = vld [vmem:[%s0 + $0xa0] sm:$0xf]
  %v59 = vld [vmem:[%s0 + $0xa4] sm:$0xf]
  %v60 = vld [vmem:[%s0 + $0xa8] sm:$0xf]
  %v61 = vld [vmem:[%s0 + $0xac] sm:$0xf]
  %v62 = vld [vmem:[%s0 + $0xb0] sm:$0xf]
  %v63 = vld [vmem:[%s0 + $0xb4] sm:$0xf]
  %v64 = vld [vmem:[%s0 + $0xb8] sm:$0xf]
  %v65 = vld [vmem:[%s0 + $0xbc] sm:$0xf]
  %v66 = vld [vmem:[%s0 + $0xc0] sm:$0xf]
  %v67 = vld [vmem:[%s0 + $0xc4] sm:$0xf]
  %v68 = vld [vmem:[%s0 + $0xc8] sm:$0xf]
  %v69 = vld [vmem:[%s0 + $0xcc] sm:$0xf]
  %v70 = vld [vmem:[%s0 + $0xd0] sm:$0xf]
  %v71 = vld [vmem:[%s0 + $0xd4] sm:$0xf]
  %v72 = vld [vmem:[%s0 + $0xd8] sm:$0xf]
  %v73 = vld [vmem:[%s0 + $0xdc] sm:$0xf]
  %v74 = vld [vmem:[%s0 + $0xe0] sm:$0xf]
  %v75 = vld [vmem:[%s0 + $0xe4] sm:$0xf]
  %v76 = vld [vmem:[%s0 + $0xe8] sm:$0xf]
  %v77 = vld [vmem:[%s0 + $0xec] sm:$0xf]
  %v78 = vld [vmem:[%s0 + $0xf0] sm:$0xf]
  %v79 = vld [vmem:[%s0 + $0xf4] sm:$0xf]
  %v80 = vld [vmem:[%s0 + $0xf8] sm:$0xf]
  %v81 = vld [vmem:[%s0 + $0xfc] sm:$0xf]
  %v82 = vld [vmem:[%s1] sm:$0x3]
  %v83 = vld [vmem:[%s2] sm:$0x1]
  %v85 = vlaneseq
  %v86 = vshrl.u32 %v85, 7
  %v87 = vsub.s32 0, %v86
  %v88 = vrot.slane %v83, %v87
  %v154 = vunpack.c.l.b16 %v18
  %v155 = vunpack.c.l.b16 %v19
  %v156 = vunpack.c.l.b16 %v20
  %v157 = vunpack.c.l.b16 %v21
  %v158 = vunpack.c.l.b16 %v22
  %v159 = vunpack.c.l.b16 %v23
  %v160 = vunpack.c.l.b16 %v24
  %v161 = vunpack.c.l.b16 %v25
  %v162 = vunpack.c.l.b16 %v26
  %v163 = vunpack.c.l.b16 %v27
  %v164 = vunpack.c.l.b16 %v28
  %v165 = vunpack.c.l.b16 %v29
  %v166 = vunpack.c.l.b16 %v30
  %v167 = vunpack.c.l.b16 %v31
  %v168 = vunpack.c.l.b16 %v32
  %v169 = vunpack.c.l.b16 %v33
  %v170 = vunpack.c.l.b16 %v34
  %v171 = vunpack.c.l.b16 %v35
  %v172 = vunpack.c.l.b16 %v36
  %v173 = vunpack.c.l.b16 %v37
  %v174 = vunpack.c.l.b16 %v38
  %v175 = vunpack.c.l.b16 %v39
  %v176 = vunpack.c.l.b16 %v40
  %v177 = vunpack.c.l.b16 %v41
  %v178 = vunpack.c.l.b16 %v42
  %v179 = vunpack.c.l.b16 %v43
  %v180 = vunpack.c.l.b16 %v44
  %v181 = vunpack.c.l.b16 %v45
  %v182 = vunpack.c.l.b16 %v46
  %v183 = vunpack.c.l.b16 %v47
  %v184 = vunpack.c.l.b16 %v48
  %v185 = vunpack.c.l.b16 %v49
  %v186 = vunpack.c.l.b16 %v50
  %v187 = vunpack.c.l.b16 %v51
  %v188 = vunpack.c.l.b16 %v52
  %v189 = vunpack.c.l.b16 %v53
  %v190 = vunpack.c.l.b16 %v54
  %v191 = vunpack.c.l.b16 %v55
  %v192 = vunpack.c.l.b16 %v56
  %v193 = vunpack.c.l.b16 %v57
  %v194 = vunpack.c.l.b16 %v58
  %v195 = vunpack.c.l.b16 %v59
  %v196 = vunpack.c.l.b16 %v60
  %v197 = vunpack.c.l.b16 %v61
  %v198 = vunpack.c.l.b16 %v62
  %v199 = vunpack.c.l.b16 %v63
  %v200 = vunpack.c.l.b16 %v64
  %v201 = vunpack.c.l.b16 %v65
  %v202 = vunpack.c.l.b16 %v66
  %v203 = vunpack.c.l.b16 %v67
  %v204 = vunpack.c.l.b16 %v68
  %v205 = vunpack.c.l.b16 %v69
  %v206 = vunpack.c.l.b16 %v70
  %v207 = vunpack.c.l.b16 %v71
  %v208 = vunpack.c.l.b16 %v72
  %v209 = vunpack.c.l.b16 %v73
  %v210 = vunpack.c.l.b16 %v74
  %v211 = vunpack.c.l.b16 %v75
  %v212 = vunpack.c.l.b16 %v76
  %v213 = vunpack.c.l.b16 %v77
  %v214 = vunpack.c.l.b16 %v78
  %v215 = vunpack.c.l.b16 %v79
  %v216 = vunpack.c.l.b16 %v80
  %v217 = vunpack.c.l.b16 %v81
  %v218 = vpack.c.b16 %v155, %v154
  %v219 = vpack.c.b16 %v157, %v156
  %v220 = vpack.c.b16 %v159, %v158
  %v221 = vpack.c.b16 %v161, %v160
  %v222 = vpack.c.b16 %v163, %v162
  %v223 = vpack.c.b16 %v165, %v164
  %v224 = vpack.c.b16 %v167, %v166
  %v225 = vpack.c.b16 %v169, %v168
  %v226 = vpack.c.b16 %v171, %v170
  %v227 = vpack.c.b16 %v173, %v172
  %v228 = vpack.c.b16 %v175, %v174
  %v229 = vpack.c.b16 %v177, %v176
  %v230 = vpack.c.b16 %v179, %v178
  %v231 = vpack.c.b16 %v181, %v180
  %v232 = vpack.c.b16 %v183, %v182
  %v233 = vpack.c.b16 %v185, %v184
  %v234 = vpack.c.b16 %v187, %v186
  %v235 = vpack.c.b16 %v189, %v188
  %v236 = vpack.c.b16 %v191, %v190
  %v237 = vpack.c.b16 %v193, %v192
  %v238 = vpack.c.b16 %v195, %v194
  %v239 = vpack.c.b16 %v197, %v196
  %v240 = vpack.c.b16 %v199, %v198
  %v241 = vpack.c.b16 %v201, %v200
  %v242 = vpack.c.b16 %v203, %v202
  %v243 = vpack.c.b16 %v205, %v204
  %v244 = vpack.c.b16 %v207, %v206
  %v245 = vpack.c.b16 %v209, %v208
  %v246 = vpack.c.b16 %v211, %v210
  %v247 = vpack.c.b16 %v213, %v212
  %v248 = vpack.c.b16 %v215, %v214
  %v249 = vpack.c.b16 %v217, %v216
  %vm250 = vcmask 31744
  %v252 = vsel %vm250, %v218, 0
  %v255 = vsel %vm250, %v219, 0
  %v258 = vsel %vm250, %v220, 0
  %v261 = vsel %vm250, %v221, 0
  %v264 = vsel %vm250, %v222, 0
  %v267 = vsel %vm250, %v223, 0
  %v270 = vsel %vm250, %v224, 0
  %v273 = vsel %vm250, %v225, 0
  %v276 = vsel %vm250, %v226, 0
  %v279 = vsel %vm250, %v227, 0
  %v282 = vsel %vm250, %v228, 0
  %v285 = vsel %vm250, %v229, 0
  %v288 = vsel %vm250, %v230, 0
  %v291 = vsel %vm250, %v231, 0
  %v294 = vsel %vm250, %v232, 0
  %v297 = vsel %vm250, %v233, 0
  %v300 = vsel %vm250, %v234, 0
  %v303 = vsel %vm250, %v235, 0
  %v306 = vsel %vm250, %v236, 0
  %v309 = vsel %vm250, %v237, 0
  %v312 = vsel %vm250, %v238, 0
  %v315 = vsel %vm250, %v239, 0
  %v318 = vsel %vm250, %v240, 0
  %v321 = vsel %vm250, %v241, 0
  %v324 = vsel %vm250, %v242, 0
  %v327 = vsel %vm250, %v243, 0
  %v330 = vsel %vm250, %v244, 0
  %v333 = vsel %vm250, %v245, 0
  %v336 = vsel %vm250, %v246, 0
  %v339 = vsel %vm250, %v247, 0
  %v342 = vsel %vm250, %v248, 0
  %v345 = vsel %vm250, %v249, 0
  %vm347 = vcmask 1041408
  %v349 = vsel %vm347, %v82, 0
  %351 = vmatprep.subr.bf16.mxu0 0
  %352 = vmatpush1.bf16.msra.mxu0 0
  %353 = vmatprep.subr.bf16.mxu0 0
  %354 = vmatpush1.bf16.msra.mxu0 0
  %355 = vmatprep.subr.bf16.mxu0 0
  %356 = vmatpush1.bf16.msra.mxu0 0
  %357 = vmatprep.subr.bf16.mxu0 0
  %358 = vmatpush1.bf16.msra.mxu0 0
  %359 = vmatprep.subr.bf16.mxu0 0
  %360 = vmatpush1.bf16.msra.mxu0 0
  %361 = vmatprep.subr.bf16.mxu0 0
  %362 = vmatpush1.bf16.msra.mxu0 0
  %363 = vmatprep.subr.bf16.mxu0 0
  %364 = vmatpush1.bf16.msra.mxu0 0
  %365 = vmatprep.subr.bf16.mxu0 0
  %366 = vmatpush1.bf16.msra.mxu0 %v349
  %367 = vmatprep.subr.bf16.mxu0 0
  %368 = vmatpush2.bf16.msra.mxu0 0
  %369 = vmatprep.subr.bf16.mxu0 0
  %370 = vmatpush2.bf16.msra.mxu0 0
  %371 = vmatprep.subr.bf16.mxu0 0
  %372 = vmatpush2.bf16.msra.mxu0 0
  %373 = vmatprep.subr.bf16.mxu0 0
  %374 = vmatpush2.bf16.msra.mxu0 0
  %375 = vmatprep.subr.bf16.mxu0 0
  %376 = vmatpush2.bf16.msra.mxu0 0
  %377 = vmatprep.subr.bf16.mxu0 0
  %378 = vmatpush2.bf16.msra.mxu0 0
  %379 = vmatprep.subr.bf16.mxu0 0
  %380 = vmatpush2.bf16.msra.mxu0 0
  %381 = vmatprep.subr.bf16.mxu0 0
  %382 = vmatpush2.bf16.msra.mxu0 0
  %383 = vmatprep.mubr.bf16.mxu0 0
  %384 = vmatmul.mubr.bf16.gmra.mxu0 %v252
  %v385 = vpop.f32.mrf.mxu0
  %v386 = vadd.f32 %v88, %v385
  %v387 = vpop.f32.mrf.mxu0
  %v388 = vpop.f32.mrf.mxu0
  %v389 = vadd.f32 %v88, %v388
  %v390 = vpop.f32.mrf.mxu0
  %391 = vmatprep.mubr.bf16.mxu0 0
  %392 = vmatmul.mubr.bf16.gmra.mxu0 %v255
  %v393 = vpop.f32.mrf.mxu0
  %v394 = vadd.f32 %v88, %v393
  %v395 = vpop.f32.mrf.mxu0
  %v396 = vpop.f32.mrf.mxu0
  %v397 = vadd.f32 %v88, %v396
  %v398 = vpop.f32.mrf.mxu0
  %399 = vmatprep.mubr.bf16.mxu0 0
  %400 = vmatmul.mubr.bf16.gmra.mxu0 %v258
  %v401 = vpop.f32.mrf.mxu0
  %v402 = vadd.f32 %v88, %v401
  %v403 = vpop.f32.mrf.mxu0
  %v404 = vpop.f32.mrf.mxu0
  %v405 = vadd.f32 %v88, %v404
  %v406 = vpop.f32.mrf.mxu0
  %407 = vmatprep.mubr.bf16.mxu0 0
  %408 = vmatmul.mubr.bf16.gmra.mxu0 %v261
  %v409 = vpop.f32.mrf.mxu0
  %v410 = vadd.f32 %v88, %v409
  %v411 = vpop.f32.mrf.mxu0
  %v412 = vpop.f32.mrf.mxu0
  %v413 = vadd.f32 %v88, %v412
  %v414 = vpop.f32.mrf.mxu0
  %415 = vmatprep.mubr.bf16.mxu0 0
  %416 = vmatmul.mubr.bf16.gmra.mxu0 %v264
  %v417 = vpop.f32.mrf.mxu0
  %v418 = vadd.f32 %v88, %v417
  %v419 = vpop.f32.mrf.mxu0
  %v420 = vpop.f32.mrf.mxu0
  %v421 = vadd.f32 %v88, %v420
  %v422 = vpop.f32.mrf.mxu0
  %423 = vmatprep.mubr.bf16.mxu0 0
  %424 = vmatmul.mubr.bf16.gmra.mxu0 %v267
  %v425 = vpop.f32.mrf.mxu0
  %v426 = vadd.f32 %v88, %v425
  %v427 = vpop.f32.mrf.mxu0
  %v428 = vpop.f32.mrf.mxu0
  %v429 = vadd.f32 %v88, %v428
  %v430 = vpop.f32.mrf.mxu0
  %431 = vmatprep.mubr.bf16.mxu0 0
  %432 = vmatmul.mubr.bf16.gmra.mxu0 %v270
  %v433 = vpop.f32.mrf.mxu0
  %v434 = vadd.f32 %v88, %v433
  %v435 = vpop.f32.mrf.mxu0
  %v436 = vpop.f32.mrf.mxu0
  %v437 = vadd.f32 %v88, %v436
  %v438 = vpop.f32.mrf.mxu0
  %439 = vmatprep.mubr.bf16.mxu0 0
  %440 = vmatmul.mubr.bf16.gmra.mxu0 %v273
  %v441 = vpop.f32.mrf.mxu0
  %v442 = vadd.f32 %v88, %v441
  %v443 = vpop.f32.mrf.mxu0
  %v444 = vpop.f32.mrf.mxu0
  %v445 = vadd.f32 %v88, %v444
  %v446 = vpop.f32.mrf.mxu0
  %447 = vmatprep.mubr.bf16.mxu0 0
  %448 = vmatmul.mubr.bf16.gmra.mxu0 %v276
  %v449 = vpop.f32.mrf.mxu0
  %v450 = vadd.f32 %v88, %v449
  %v451 = vpop.f32.mrf.mxu0
  %v452 = vpop.f32.mrf.mxu0
  %v453 = vadd.f32 %v88, %v452
  %v454 = vpop.f32.mrf.mxu0
  %455 = vmatprep.mubr.bf16.mxu0 0
  %456 = vmatmul.mubr.bf16.gmra.mxu0 %v279
  %v457 = vpop.f32.mrf.mxu0
  %v458 = vadd.f32 %v88, %v457
  %v459 = vpop.f32.mrf.mxu0
  %v460 = vpop.f32.mrf.mxu0
  %v461 = vadd.f32 %v88, %v460
  %v462 = vpop.f32.mrf.mxu0
  %463 = vmatprep.mubr.bf16.mxu0 0
  %464 = vmatmul.mubr.bf16.gmra.mxu0 %v282
  %v465 = vpop.f32.mrf.mxu0
  %v466 = vadd.f32 %v88, %v465
  %v467 = vpop.f32.mrf.mxu0
  %v468 = vpop.f32.mrf.mxu0
  %v469 = vadd.f32 %v88, %v468
  %v470 = vpop.f32.mrf.mxu0
  %471 = vmatprep.mubr.bf16.mxu0 0
  %472 = vmatmul.mubr.bf16.gmra.mxu0 %v285
  %v473 = vpop.f32.mrf.mxu0
  %v474 = vadd.f32 %v88, %v473
  %v475 = vpop.f32.mrf.mxu0
  %v476 = vpop.f32.mrf.mxu0
  %v477 = vadd.f32 %v88, %v476
  %v478 = vpop.f32.mrf.mxu0
  %479 = vmatprep.mubr.bf16.mxu0 0
  %480 = vmatmul.mubr.bf16.gmra.mxu0 %v288
  %v481 = vpop.f32.mrf.mxu0
  %v482 = vadd.f32 %v88, %v481
  %v483 = vpop.f32.mrf.mxu0
  %v484 = vpop.f32.mrf.mxu0
  %v485 = vadd.f32 %v88, %v484
  %v486 = vpop.f32.mrf.mxu0
  %487 = vmatprep.mubr.bf16.mxu0 0
  %488 = vmatmul.mubr.bf16.gmra.mxu0 %v291
  %v489 = vpop.f32.mrf.mxu0
  %v490 = vadd.f32 %v88, %v489
  %v491 = vpop.f32.mrf.mxu0
  %v492 = vpop.f32.mrf.mxu0
  %v493 = vadd.f32 %v88, %v492
  %v494 = vpop.f32.mrf.mxu0
  %495 = vmatprep.mubr.bf16.mxu0 0
  %496 = vmatmul.mubr.bf16.gmra.mxu0 %v294
  %v497 = vpop.f32.mrf.mxu0
  %v498 = vadd.f32 %v88, %v497
  %v499 = vpop.f32.mrf.mxu0
  %v500 = vpop.f32.mrf.mxu0
  %v501 = vadd.f32 %v88, %v500
  %v502 = vpop.f32.mrf.mxu0
  %503 = vmatprep.mubr.bf16.mxu0 0
  %504 = vmatmul.mubr.bf16.gmra.mxu0 %v297
  %v505 = vpop.f32.mrf.mxu0
  %v506 = vadd.f32 %v88, %v505
  %v507 = vpop.f32.mrf.mxu0
  %v508 = vpop.f32.mrf.mxu0
  %v509 = vadd.f32 %v88, %v508
  %v510 = vpop.f32.mrf.mxu0
  %511 = vmatprep.mubr.bf16.mxu0 0
  %512 = vmatmul.mubr.bf16.gmra.mxu0 %v300
  %v513 = vpop.f32.mrf.mxu0
  %v514 = vadd.f32 %v88, %v513
  %v515 = vpop.f32.mrf.mxu0
  %v516 = vpop.f32.mrf.mxu0
  %v517 = vadd.f32 %v88, %v516
  %v518 = vpop.f32.mrf.mxu0
  %519 = vmatprep.mubr.bf16.mxu0 0
  %520 = vmatmul.mubr.bf16.gmra.mxu0 %v303
  %v521 = vpop.f32.mrf.mxu0
  %v522 = vadd.f32 %v88, %v521
  %v523 = vpop.f32.mrf.mxu0
  %v524 = vpop.f32.mrf.mxu0
  %v525 = vadd.f32 %v88, %v524
  %v526 = vpop.f32.mrf.mxu0
  %527 = vmatprep.mubr.bf16.mxu0 0
  %528 = vmatmul.mubr.bf16.gmra.mxu0 %v306
  %v529 = vpop.f32.mrf.mxu0
  %v530 = vadd.f32 %v88, %v529
  %v531 = vpop.f32.mrf.mxu0
  %v532 = vpop.f32.mrf.mxu0
  %v533 = vadd.f32 %v88, %v532
  %v534 = vpop.f32.mrf.mxu0
  %535 = vmatprep.mubr.bf16.mxu0 0
  %536 = vmatmul.mubr.bf16.gmra.mxu0 %v309
  %v537 = vpop.f32.mrf.mxu0
  %v538 = vadd.f32 %v88, %v537
  %v539 = vpop.f32.mrf.mxu0
  %v540 = vpop.f32.mrf.mxu0
  %v541 = vadd.f32 %v88, %v540
  %v542 = vpop.f32.mrf.mxu0
  %543 = vmatprep.mubr.bf16.mxu0 0
  %544 = vmatmul.mubr.bf16.gmra.mxu0 %v312
  %v545 = vpop.f32.mrf.mxu0
  %v546 = vadd.f32 %v88, %v545
  %v547 = vpop.f32.mrf.mxu0
  %v548 = vpop.f32.mrf.mxu0
  %v549 = vadd.f32 %v88, %v548
  %v550 = vpop.f32.mrf.mxu0
  %551 = vmatprep.mubr.bf16.mxu0 0
  %552 = vmatmul.mubr.bf16.gmra.mxu0 %v315
  %v553 = vpop.f32.mrf.mxu0
  %v554 = vadd.f32 %v88, %v553
  %v555 = vpop.f32.mrf.mxu0
  %v556 = vpop.f32.mrf.mxu0
  %v557 = vadd.f32 %v88, %v556
  %v558 = vpop.f32.mrf.mxu0
  %559 = vmatprep.mubr.bf16.mxu0 0
  %560 = vmatmul.mubr.bf16.gmra.mxu0 %v318
  %v561 = vpop.f32.mrf.mxu0
  %v562 = vadd.f32 %v88, %v561
  %v563 = vpop.f32.mrf.mxu0
  %v564 = vpop.f32.mrf.mxu0
  %v565 = vadd.f32 %v88, %v564
  %v566 = vpop.f32.mrf.mxu0
  %567 = vmatprep.mubr.bf16.mxu0 0
  %568 = vmatmul.mubr.bf16.gmra.mxu0 %v321
  %v569 = vpop.f32.mrf.mxu0
  %v570 = vadd.f32 %v88, %v569
  %v571 = vpop.f32.mrf.mxu0
  %v572 = vpop.f32.mrf.mxu0
  %v573 = vadd.f32 %v88, %v572
  %v574 = vpop.f32.mrf.mxu0
  %575 = vmatprep.mubr.bf16.mxu0 0
  %576 = vmatmul.mubr.bf16.gmra.mxu0 %v324
  %v577 = vpop.f32.mrf.mxu0
  %v578 = vadd.f32 %v88, %v577
  %v579 = vpop.f32.mrf.mxu0
  %v580 = vpop.f32.mrf.mxu0
  %v581 = vadd.f32 %v88, %v580
  %v582 = vpop.f32.mrf.mxu0
  %583 = vmatprep.mubr.bf16.mxu0 0
  %584 = vmatmul.mubr.bf16.gmra.mxu0 %v327
  %v585 = vpop.f32.mrf.mxu0
  %v586 = vadd.f32 %v88, %v585
  %v587 = vpop.f32.mrf.mxu0
  %v588 = vpop.f32.mrf.mxu0
  %v589 = vadd.f32 %v88, %v588
  %v590 = vpop.f32.mrf.mxu0
  %591 = vmatprep.mubr.bf16.mxu0 0
  %592 = vmatmul.mubr.bf16.gmra.mxu0 %v330
  %v593 = vpop.f32.mrf.mxu0
  %v594 = vadd.f32 %v88, %v593
  %v595 = vpop.f32.mrf.mxu0
  %v596 = vpop.f32.mrf.mxu0
  %v597 = vadd.f32 %v88, %v596
  %v598 = vpop.f32.mrf.mxu0
  %599 = vmatprep.mubr.bf16.mxu0 0
  %600 = vmatmul.mubr.bf16.gmra.mxu0 %v333
  %v601 = vpop.f32.mrf.mxu0
  %v602 = vadd.f32 %v88, %v601
  %v603 = vpop.f32.mrf.mxu0
  %v604 = vpop.f32.mrf.mxu0
  %v605 = vadd.f32 %v88, %v604
  %v606 = vpop.f32.mrf.mxu0
  %607 = vmatprep.mubr.bf16.mxu0 0
  %608 = vmatmul.mubr.bf16.gmra.mxu0 %v336
  %v609 = vpop.f32.mrf.mxu0
  %v610 = vadd.f32 %v88, %v609
  %v611 = vpop.f32.mrf.mxu0
  %v612 = vpop.f32.mrf.mxu0
  %v613 = vadd.f32 %v88, %v612
  %v614 = vpop.f32.mrf.mxu0
  %615 = vmatprep.mubr.bf16.mxu0 0
  %616 = vmatmul.mubr.bf16.gmra.mxu0 %v339
  %v617 = vpop.f32.mrf.mxu0
  %v618 = vadd.f32 %v88, %v617
  %v619 = vpop.f32.mrf.mxu0
  %v620 = vpop.f32.mrf.mxu0
  %v621 = vadd.f32 %v88, %v620
  %v622 = vpop.f32.mrf.mxu0
  %623 = vmatprep.mubr.bf16.mxu0 0
  %624 = vmatmul.mubr.bf16.gmra.mxu0 %v342
  %v625 = vpop.f32.mrf.mxu0
  %v626 = vadd.f32 %v88, %v625
  %v627 = vpop.f32.mrf.mxu0
  %v628 = vpop.f32.mrf.mxu0
  %v629 = vadd.f32 %v88, %v628
  %v630 = vpop.f32.mrf.mxu0
  %631 = vmatprep.mubr.bf16.mxu0 0
  %632 = vmatmul.mubr.bf16.gmra.mxu0 %v345
  %v633 = vpop.f32.mrf.mxu0
  %v634 = vadd.f32 %v88, %v633
  %v635 = vpop.f32.mrf.mxu0
  %v636 = vpop.f32.mrf.mxu0
  %v637 = vadd.f32 %v88, %v636
  %v638 = vpop.f32.mrf.mxu0
  %639 = vdwg.mxu0
  %v640 = vpack.c.bf16 %v389, %v386
  %v641 = vpack.c.bf16 %v397, %v394
  %v642 = vpack.c.bf16 %v405, %v402
  %v643 = vpack.c.bf16 %v413, %v410
  %v644 = vpack.c.bf16 %v421, %v418
  %v645 = vpack.c.bf16 %v429, %v426
  %v646 = vpack.c.bf16 %v437, %v434
  %v647 = vpack.c.bf16 %v445, %v442
  %v648 = vpack.c.bf16 %v453, %v450
  %v649 = vpack.c.bf16 %v461, %v458
  %v650 = vpack.c.bf16 %v469, %v466
  %v651 = vpack.c.bf16 %v477, %v474
  %v652 = vpack.c.bf16 %v485, %v482
  %v653 = vpack.c.bf16 %v493, %v490
  %v654 = vpack.c.bf16 %v501, %v498
  %v655 = vpack.c.bf16 %v509, %v506
  %v656 = vpack.c.bf16 %v517, %v514
  %v657 = vpack.c.bf16 %v525, %v522
  %v658 = vpack.c.bf16 %v533, %v530
  %v659 = vpack.c.bf16 %v541, %v538
  %v660 = vpack.c.bf16 %v549, %v546
  %v661 = vpack.c.bf16 %v557, %v554
  %v662 = vpack.c.bf16 %v565, %v562
  %v663 = vpack.c.bf16 %v573, %v570
  %v664 = vpack.c.bf16 %v581, %v578
  %v665 = vpack.c.bf16 %v589, %v586
  %v666 = vpack.c.bf16 %v597, %v594
  %v667 = vpack.c.bf16 %v605, %v602
  %v668 = vpack.c.bf16 %v613, %v610
  %v669 = vpack.c.bf16 %v621, %v618
  %v670 = vpack.c.bf16 %v629, %v626
  %v671 = vpack.c.bf16 %v637, %v634
  %v704 = vunpack.c.l.b16 %v640
  %v705 = vunpack.c.h.b16 %v640
  %v706 = vunpack.c.l.b16 %v641
  %v707 = vunpack.c.h.b16 %v641
  %v708 = vunpack.c.l.b16 %v642
  %v709 = vunpack.c.h.b16 %v642
  %v710 = vunpack.c.l.b16 %v643
  %v711 = vunpack.c.h.b16 %v643
  %v712 = vunpack.c.l.b16 %v644
  %v713 = vunpack.c.h.b16 %v644
  %v714 = vunpack.c.l.b16 %v645
  %v715 = vunpack.c.h.b16 %v645
  %v716 = vunpack.c.l.b16 %v646
  %v717 = vunpack.c.h.b16 %v646
  %v718 = vunpack.c.l.b16 %v647
  %v719 = vunpack.c.h.b16 %v647
  %v720 = vunpack.c.l.b16 %v648
  %v721 = vunpack.c.h.b16 %v648
  %v722 = vunpack.c.l.b16 %v649
  %v723 = vunpack.c.h.b16 %v649
  %v724 = vunpack.c.l.b16 %v650
  %v725 = vunpack.c.h.b16 %v650
  %v726 = vunpack.c.l.b16 %v651
  %v727 = vunpack.c.h.b16 %v651
  %v728 = vunpack.c.l.b16 %v652
  %v729 = vunpack.c.h.b16 %v652
  %v730 = vunpack.c.l.b16 %v653
  %v731 = vunpack.c.h.b16 %v653
  %v732 = vunpack.c.l.b16 %v654
  %v733 = vunpack.c.h.b16 %v654
  %v734 = vunpack.c.l.b16 %v655
  %v735 = vunpack.c.h.b16 %v655
  %v736 = vunpack.c.l.b16 %v656
  %v737 = vunpack.c.h.b16 %v656
  %v738 = vunpack.c.l.b16 %v657
  %v739 = vunpack.c.h.b16 %v657
  %v740 = vunpack.c.l.b16 %v658
  %v741 = vunpack.c.h.b16 %v658
  %v742 = vunpack.c.l.b16 %v659
  %v743 = vunpack.c.h.b16 %v659
  %v744 = vunpack.c.l.b16 %v660
  %v745 = vunpack.c.h.b16 %v660
  %v746 = vunpack.c.l.b16 %v661
  %v747 = vunpack.c.h.b16 %v661
  %v748 = vunpack.c.l.b16 %v662
  %v749 = vunpack.c.h.b16 %v662
  %v750 = vunpack.c.l.b16 %v663
  %v751 = vunpack.c.h.b16 %v663
  %v752 = vunpack.c.l.b16 %v664
  %v753 = vunpack.c.h.b16 %v664
  %v754 = vunpack.c.l.b16 %v665
  %v755 = vunpack.c.h.b16 %v665
  %v756 = vunpack.c.l.b16 %v666
  %v757 = vunpack.c.h.b16 %v666
  %v758 = vunpack.c.l.b16 %v667
  %v759 = vunpack.c.h.b16 %v667
  %v760 = vunpack.c.l.b16 %v668
  %v761 = vunpack.c.h.b16 %v668
  %v762 = vunpack.c.l.b16 %v669
  %v763 = vunpack.c.h.b16 %v669
  %v764 = vunpack.c.l.b16 %v670
  %v765 = vunpack.c.h.b16 %v670
  %v766 = vunpack.c.l.b16 %v671
  %v767 = vunpack.c.h.b16 %v671
  %v768 = vpack.c.b16 %v704, %v704
  %v769 = vpack.c.b16 %v705, %v705
  %v770 = vpack.c.b16 %v706, %v706
  %v771 = vpack.c.b16 %v707, %v707
  %v772 = vpack.c.b16 %v708, %v708
  %v773 = vpack.c.b16 %v709, %v709
  %v774 = vpack.c.b16 %v710, %v710
  %v775 = vpack.c.b16 %v711, %v711
  %v776 = vpack.c.b16 %v712, %v712
  %v777 = vpack.c.b16 %v713, %v713
  %v778 = vpack.c.b16 %v714, %v714
  %v779 = vpack.c.b16 %v715, %v715
  %v780 = vpack.c.b16 %v716, %v716
  %v781 = vpack.c.b16 %v717, %v717
  %v782 = vpack.c.b16 %v718, %v718
  %v783 = vpack.c.b16 %v719, %v719
  %v784 = vpack.c.b16 %v720, %v720
  %v785 = vpack.c.b16 %v721, %v721
  %v786 = vpack.c.b16 %v722, %v722
  %v787 = vpack.c.b16 %v723, %v723
  %v788 = vpack.c.b16 %v724, %v724
  %v789 = vpack.c.b16 %v725, %v725
  %v790 = vpack.c.b16 %v726, %v726
  %v791 = vpack.c.b16 %v727, %v727
  %v792 = vpack.c.b16 %v728, %v728
  %v793 = vpack.c.b16 %v729, %v729
  %v794 = vpack.c.b16 %v730, %v730
  %v795 = vpack.c.b16 %v731, %v731
  %v796 = vpack.c.b16 %v732, %v732
  %v797 = vpack.c.b16 %v733, %v733
  %v798 = vpack.c.b16 %v734, %v734
  %v799 = vpack.c.b16 %v735, %v735
  %v800 = vpack.c.b16 %v736, %v736
  %v801 = vpack.c.b16 %v737, %v737
  %v802 = vpack.c.b16 %v738, %v738
  %v803 = vpack.c.b16 %v739, %v739
  %v804 = vpack.c.b16 %v740, %v740
  %v805 = vpack.c.b16 %v741, %v741
  %v806 = vpack.c.b16 %v742, %v742
  %v807 = vpack.c.b16 %v743, %v743
  %v808 = vpack.c.b16 %v744, %v744
  %v809 = vpack.c.b16 %v745, %v745
  %v810 = vpack.c.b16 %v746, %v746
  %v811 = vpack.c.b16 %v747, %v747
  %v812 = vpack.c.b16 %v748, %v748
  %v813 = vpack.c.b16 %v749, %v749
  %v814 = vpack.c.b16 %v750, %v750
  %v815 = vpack.c.b16 %v751, %v751
  %v816 = vpack.c.b16 %v752, %v752
  %v817 = vpack.c.b16 %v753, %v753
  %v818 = vpack.c.b16 %v754, %v754
  %v819 = vpack.c.b16 %v755, %v755
  %v820 = vpack.c.b16 %v756, %v756
  %v821 = vpack.c.b16 %v757, %v757
  %v822 = vpack.c.b16 %v758, %v758
  %v823 = vpack.c.b16 %v759, %v759
  %v824 = vpack.c.b16 %v760, %v760
  %v825 = vpack.c.b16 %v761, %v761
  %v826 = vpack.c.b16 %v762, %v762
  %v827 = vpack.c.b16 %v763, %v763
  %v828 = vpack.c.b16 %v764, %v764
  %v829 = vpack.c.b16 %v765, %v765
  %v830 = vpack.c.b16 %v766, %v766
  %v831 = vpack.c.b16 %v767, %v767
  %vm896 = vcmask 60416
  %897 = vst.msk [vmem:[%s3] sm:$0xf] %vm896, %v768
  %898 = vst.msk [vmem:[%s3 + $0x4] sm:$0xf] %vm896, %v769
  %899 = vst.msk [vmem:[%s3 + $0x8] sm:$0xf] %vm896, %v770
  %900 = vst.msk [vmem:[%s3 + $0xc] sm:$0xf] %vm896, %v771
  %901 = vst.msk [vmem:[%s3 + $0x10] sm:$0xf] %vm896, %v772
  %902 = vst.msk [vmem:[%s3 + $0x14] sm:$0xf] %vm896, %v773
  %903 = vst.msk [vmem:[%s3 + $0x18] sm:$0xf] %vm896, %v774
  %904 = vst.msk [vmem:[%s3 + $0x1c] sm:$0xf] %vm896, %v775
  %905 = vst.msk [vmem:[%s3 + $0x20] sm:$0xf] %vm896, %v776
  %906 = vst.msk [vmem:[%s3 + $0x24] sm:$0xf] %vm896, %v777
  %907 = vst.msk [vmem:[%s3 + $0x28] sm:$0xf] %vm896, %v778
  %908 = vst.msk [vmem:[%s3 + $0x2c] sm:$0xf] %vm896, %v779
  %909 = vst.msk [vmem:[%s3 + $0x30] sm:$0xf] %vm896, %v780
  %910 = vst.msk [vmem:[%s3 + $0x34] sm:$0xf] %vm896, %v781
  %911 = vst.msk [vmem:[%s3 + $0x38] sm:$0xf] %vm896, %v782
  %912 = vst.msk [vmem:[%s3 + $0x3c] sm:$0xf] %vm896, %v783
  %913 = vst.msk [vmem:[%s3 + $0x40] sm:$0xf] %vm896, %v784
  %914 = vst.msk [vmem:[%s3 + $0x44] sm:$0xf] %vm896, %v785
  %915 = vst.msk [vmem:[%s3 + $0x48] sm:$0xf] %vm896, %v786
  %916 = vst.msk [vmem:[%s3 + $0x4c] sm:$0xf] %vm896, %v787
  %917 = vst.msk [vmem:[%s3 + $0x50] sm:$0xf] %vm896, %v788
  %918 = vst.msk [vmem:[%s3 + $0x54] sm:$0xf] %vm896, %v789
  %919 = vst.msk [vmem:[%s3 + $0x58] sm:$0xf] %vm896, %v790
  %920 = vst.msk [vmem:[%s3 + $0x5c] sm:$0xf] %vm896, %v791
  %921 = vst.msk [vmem:[%s3 + $0x60] sm:$0xf] %vm896, %v792
  %922 = vst.msk [vmem:[%s3 + $0x64] sm:$0xf] %vm896, %v793
  %923 = vst.msk [vmem:[%s3 + $0x68] sm:$0xf] %vm896, %v794
  %924 = vst.msk [vmem:[%s3 + $0x6c] sm:$0xf] %vm896, %v795
  %925 = vst.msk [vmem:[%s3 + $0x70] sm:$0xf] %vm896, %v796
  %926 = vst.msk [vmem:[%s3 + $0x74] sm:$0xf] %vm896, %v797
  %927 = vst.msk [vmem:[%s3 + $0x78] sm:$0xf] %vm896, %v798
  %928 = vst.msk [vmem:[%s3 + $0x7c] sm:$0xf] %vm896, %v799
  %929 = vst.msk [vmem:[%s3 + $0x80] sm:$0xf] %vm896, %v800
  %930 = vst.msk [vmem:[%s3 + $0x84] sm:$0xf] %vm896, %v801
  %931 = vst.msk [vmem:[%s3 + $0x88] sm:$0xf] %vm896, %v802
  %932 = vst.msk [vmem:[%s3 + $0x8c] sm:$0xf] %vm896, %v803
  %933 = vst.msk [vmem:[%s3 + $0x90] sm:$0xf] %vm896, %v804
  %934 = vst.msk [vmem:[%s3 + $0x94] sm:$0xf] %vm896, %v805
  %935 = vst.msk [vmem:[%s3 + $0x98] sm:$0xf] %vm896, %v806
  %936 = vst.msk [vmem:[%s3 + $0x9c] sm:$0xf] %vm896, %v807
  %937 = vst.msk [vmem:[%s3 + $0xa0] sm:$0xf] %vm896, %v808
  %938 = vst.msk [vmem:[%s3 + $0xa4] sm:$0xf] %vm896, %v809
  %939 = vst.msk [vmem:[%s3 + $0xa8] sm:$0xf] %vm896, %v810
  %940 = vst.msk [vmem:[%s3 + $0xac] sm:$0xf] %vm896, %v811
  %941 = vst.msk [vmem:[%s3 + $0xb0] sm:$0xf] %vm896, %v812
  %942 = vst.msk [vmem:[%s3 + $0xb4] sm:$0xf] %vm896, %v813
  %943 = vst.msk [vmem:[%s3 + $0xb8] sm:$0xf] %vm896, %v814
  %944 = vst.msk [vmem:[%s3 + $0xbc] sm:$0xf] %vm896, %v815
  %945 = vst.msk [vmem:[%s3 + $0xc0] sm:$0xf] %vm896, %v816
  %946 = vst.msk [vmem:[%s3 + $0xc4] sm:$0xf] %vm896, %v817
  %947 = vst.msk [vmem:[%s3 + $0xc8] sm:$0xf] %vm896, %v818
  %948 = vst.msk [vmem:[%s3 + $0xcc] sm:$0xf] %vm896, %v819
  %949 = vst.msk [vmem:[%s3 + $0xd0] sm:$0xf] %vm896, %v820
  %950 = vst.msk [vmem:[%s3 + $0xd4] sm:$0xf] %vm896, %v821
  %951 = vst.msk [vmem:[%s3 + $0xd8] sm:$0xf] %vm896, %v822
  %952 = vst.msk [vmem:[%s3 + $0xdc] sm:$0xf] %vm896, %v823
  %953 = vst.msk [vmem:[%s3 + $0xe0] sm:$0xf] %vm896, %v824
  %954 = vst.msk [vmem:[%s3 + $0xe4] sm:$0xf] %vm896, %v825
  %955 = vst.msk [vmem:[%s3 + $0xe8] sm:$0xf] %vm896, %v826
  %956 = vst.msk [vmem:[%s3 + $0xec] sm:$0xf] %vm896, %v827
  %957 = vst.msk [vmem:[%s3 + $0xf0] sm:$0xf] %vm896, %v828
  %958 = vst.msk [vmem:[%s3 + $0xf4] sm:$0xf] %vm896, %v829
  %959 = vst.msk [vmem:[%s3 + $0xf8] sm:$0xf] %vm896, %v830
  %960 = vst.msk [vmem:[%s3 + $0xfc] sm:$0xf] %vm896, %v831
  %v961 = vlaneseq
  %v962 = vshrl.u32 %v961, 7
  %v963 = vadd.s32 %v962, 8
  %v964 = vadd.s32 %v962, 16
  %v965 = vadd.s32 %v962, 24
  %v966 = vadd.s32 %v962, 32
  %v967 = vadd.s32 %v962, 40
  %v968 = vadd.s32 %v962, 48
  %v969 = vadd.s32 %v962, 56
  %v970 = vadd.s32 %v962, 64
  %v971 = vadd.s32 %v962, 72
  %v972 = vadd.s32 %v962, 80
  %v973 = vadd.s32 %v962, 88
  %v974 = vadd.s32 %v962, 96
  %v975 = vadd.s32 %v962, 104
  %v976 = vadd.s32 %v962, 112
  %v977 = vadd.s32 %v962, 120
  %v978 = vadd.s32 %v962, 128
  %v979 = vadd.s32 %v962, 136
  %v980 = vadd.s32 %v962, 144
  %v981 = vadd.s32 %v962, 152
  %v982 = vadd.s32 %v962, 160
  %v983 = vadd.s32 %v962, 168
  %v984 = vadd.s32 %v962, 176
  %v985 = vadd.s32 %v962, 184
  %v986 = vadd.s32 %v962, 192
  %v987 = vadd.s32 %v962, 200
  %v988 = vadd.s32 %v962, 208
  %v989 = vadd.s32 %v962, 216
  %v990 = vadd.s32 %v962, 224
  %v991 = vadd.s32 %v962, 232
  %v992 = vadd.s32 %v962, 240
  %v993 = vadd.s32 %v962, 248
  %v994 = vadd.s32 %v962, 256
  %v995 = vadd.s32 %v962, 264
  %v996 = vadd.s32 %v962, 272
  %v997 = vadd.s32 %v962, 280
  %v998 = vadd.s32 %v962, 288
  %v999 = vadd.s32 %v962, 296
  %v1000 = vadd.s32 %v962, 304
  %v1001 = vadd.s32 %v962, 312
  %v1002 = vadd.s32 %v962, 320
  %v1003 = vadd.s32 %v962, 328
  %v1004 = vadd.s32 %v962, 336
  %v1005 = vadd.s32 %v962, 344
  %v1006 = vadd.s32 %v962, 352
  %v1007 = vadd.s32 %v962, 360
  %v1008 = vadd.s32 %v962, 368
  %v1009 = vadd.s32 %v962, 376
  %v1010 = vadd.s32 %v962, 384
  %v1011 = vadd.s32 %v962, 392
  %v1012 = vadd.s32 %v962, 400
  %v1013 = vadd.s32 %v962, 408
  %v1014 = vadd.s32 %v962, 416
  %v1015 = vadd.s32 %v962, 424
  %v1016 = vadd.s32 %v962, 432
  %v1017 = vadd.s32 %v962, 440
  %v1018 = vadd.s32 %v962, 448
  %v1019 = vadd.s32 %v962, 456
  %v1020 = vadd.s32 %v962, 464
  %v1021 = vadd.s32 %v962, 472
  %v1022 = vadd.s32 %v962, 480
  %v1023 = vadd.s32 %v962, 488
  %v1024 = vadd.s32 %v962, 496
  %v1025 = vadd.s32 %v962, 504
  %s1026 = smul.u32 0, 512
  %v1027 = vstv %s1026
  %v1028 = vadd.s32 %v1027, %v962
  %v1029 = vadd.s32 %v1027, %v963
  %v1030 = vadd.s32 %v1027, %v964
  %v1031 = vadd.s32 %v1027, %v965
  %v1032 = vadd.s32 %v1027, %v966
  %v1033 = vadd.s32 %v1027, %v967
  %v1034 = vadd.s32 %v1027, %v968
  %v1035 = vadd.s32 %v1027, %v969
  %v1036 = vadd.s32 %v1027, %v970
  %v1037 = vadd.s32 %v1027, %v971
  %v1038 = vadd.s32 %v1027, %v972
  %v1039 = vadd.s32 %v1027, %v973
  %v1040 = vadd.s32 %v1027, %v974
  %v1041 = vadd.s32 %v1027, %v975
  %v1042 = vadd.s32 %v1027, %v976
  %v1043 = vadd.s32 %v1027, %v977
  %v1044 = vadd.s32 %v1027, %v978
  %v1045 = vadd.s32 %v1027, %v979
  %v1046 = vadd.s32 %v1027, %v980
  %v1047 = vadd.s32 %v1027, %v981
  %v1048 = vadd.s32 %v1027, %v982
  %v1049 = vadd.s32 %v1027, %v983
  %v1050 = vadd.s32 %v1027, %v984
  %v1051 = vadd.s32 %v1027, %v985
  %v1052 = vadd.s32 %v1027, %v986
  %v1053 = vadd.s32 %v1027, %v987
  %v1054 = vadd.s32 %v1027, %v988
  %v1055 = vadd.s32 %v1027, %v989
  %v1056 = vadd.s32 %v1027, %v990
  %v1057 = vadd.s32 %v1027, %v991
  %v1058 = vadd.s32 %v1027, %v992
  %v1059 = vadd.s32 %v1027, %v993
  %v1060 = vadd.s32 %v1027, %v994
  %v1061 = vadd.s32 %v1027, %v995
  %v1062 = vadd.s32 %v1027, %v996
  %v1063 = vadd.s32 %v1027, %v997
  %v1064 = vadd.s32 %v1027, %v998
  %v1065 = vadd.s32 %v1027, %v999
  %v1066 = vadd.s32 %v1027, %v1000
  %v1067 = vadd.s32 %v1027, %v1001
  %v1068 = vadd.s32 %v1027, %v1002
  %v1069 = vadd.s32 %v1027, %v1003
  %v1070 = vadd.s32 %v1027, %v1004
  %v1071 = vadd.s32 %v1027, %v1005
  %v1072 = vadd.s32 %v1027, %v1006
  %v1073 = vadd.s32 %v1027, %v1007
  %v1074 = vadd.s32 %v1027, %v1008
  %v1075 = vadd.s32 %v1027, %v1009
  %v1076 = vadd.s32 %v1027, %v1010
  %v1077 = vadd.s32 %v1027, %v1011
  %v1078 = vadd.s32 %v1027, %v1012
  %v1079 = vadd.s32 %v1027, %v1013
  %v1080 = vadd.s32 %v1027, %v1014
  %v1081 = vadd.s32 %v1027, %v1015
  %v1082 = vadd.s32 %v1027, %v1016
  %v1083 = vadd.s32 %v1027, %v1017
  %v1084 = vadd.s32 %v1027, %v1018
  %v1085 = vadd.s32 %v1027, %v1019
  %v1086 = vadd.s32 %v1027, %v1020
  %v1087 = vadd.s32 %v1027, %v1021
  %v1088 = vadd.s32 %v1027, %v1022
  %v1089 = vadd.s32 %v1027, %v1023
  %v1090 = vadd.s32 %v1027, %v1024
  %v1091 = vadd.s32 %v1027, %v1025
  %vm1092 = vcmp.lt.s32.totalorder %v1028, 512
  %vm1093 = vcmp.lt.s32.totalorder %v1029, 512
  %vm1094 = vcmp.lt.s32.totalorder %v1030, 512
  %vm1095 = vcmp.lt.s32.totalorder %v1031, 512
  %vm1096 = vcmp.lt.s32.totalorder %v1032, 512
  %vm1097 = vcmp.lt.s32.totalorder %v1033, 512
  %vm1098 = vcmp.lt.s32.totalorder %v1034, 512
  %vm1099 = vcmp.lt.s32.totalorder %v1035, 512
  %vm1100 = vcmp.lt.s32.totalorder %v1036, 512
  %vm1101 = vcmp.lt.s32.totalorder %v1037, 512
  %vm1102 = vcmp.lt.s32.totalorder %v1038, 512
  %vm1103 = vcmp.lt.s32.totalorder %v1039, 512
  %vm1104 = vcmp.lt.s32.totalorder %v1040, 512
  %vm1105 = vcmp.lt.s32.totalorder %v1041, 512
  %vm1106 = vcmp.lt.s32.totalorder %v1042, 512
  %vm1107 = vcmp.lt.s32.totalorder %v1043, 512
  %vm1108 = vcmp.lt.s32.totalorder %v1044, 512
  %vm1109 = vcmp.lt.s32.totalorder %v1045, 512
  %vm1110 = vcmp.lt.s32.totalorder %v1046, 512
  %vm1111 = vcmp.lt.s32.totalorder %v1047, 512
  %vm1112 = vcmp.lt.s32.totalorder %v1048, 512
  %vm1113 = vcmp.lt.s32.totalorder %v1049, 512
  %vm1114 = vcmp.lt.s32.totalorder %v1050, 512
  %vm1115 = vcmp.lt.s32.totalorder %v1051, 512
  %vm1116 = vcmp.lt.s32.totalorder %v1052, 512
  %vm1117 = vcmp.lt.s32.totalorder %v1053, 512
  %vm1118 = vcmp.lt.s32.totalorder %v1054, 512
  %vm1119 = vcmp.lt.s32.totalorder %v1055, 512
  %vm1120 = vcmp.lt.s32.totalorder %v1056, 512
  %vm1121 = vcmp.lt.s32.totalorder %v1057, 512
  %vm1122 = vcmp.lt.s32.totalorder %v1058, 512
  %vm1123 = vcmp.lt.s32.totalorder %v1059, 512
  %vm1124 = vcmp.lt.s32.totalorder %v1060, 512
  %vm1125 = vcmp.lt.s32.totalorder %v1061, 512
  %vm1126 = vcmp.lt.s32.totalorder %v1062, 512
  %vm1127 = vcmp.lt.s32.totalorder %v1063, 512
  %vm1128 = vcmp.lt.s32.totalorder %v1064, 512
  %vm1129 = vcmp.lt.s32.totalorder %v1065, 512
  %vm1130 = vcmp.lt.s32.totalorder %v1066, 512
  %vm1131 = vcmp.lt.s32.totalorder %v1067, 512
  %vm1132 = vcmp.lt.s32.totalorder %v1068, 512
  %vm1133 = vcmp.lt.s32.totalorder %v1069, 512
  %vm1134 = vcmp.lt.s32.totalorder %v1070, 512
  %vm1135 = vcmp.lt.s32.totalorder %v1071, 512
  %vm1136 = vcmp.lt.s32.totalorder %v1072, 512
  %vm1137 = vcmp.lt.s32.totalorder %v1073, 512
  %vm1138 = vcmp.lt.s32.totalorder %v1074, 512
  %vm1139 = vcmp.lt.s32.totalorder %v1075, 512
  %vm1140 = vcmp.lt.s32.totalorder %v1076, 512
  %vm1141 = vcmp.lt.s32.totalorder %v1077, 512
  %vm1142 = vcmp.lt.s32.totalorder %v1078, 512
  %vm1143 = vcmp.lt.s32.totalorder %v1079, 512
  %vm1144 = vcmp.lt.s32.totalorder %v1080, 512
  %vm1145 = vcmp.lt.s32.totalorder %v1081, 512
  %vm1146 = vcmp.lt.s32.totalorder %v1082, 512
  %vm1147 = vcmp.lt.s32.totalorder %v1083, 512
  %vm1148 = vcmp.lt.s32.totalorder %v1084, 512
  %vm1149 = vcmp.lt.s32.totalorder %v1085, 512
  %vm1150 = vcmp.lt.s32.totalorder %v1086, 512
  %vm1151 = vcmp.lt.s32.totalorder %v1087, 512
  %vm1152 = vcmp.lt.s32.totalorder %v1088, 512
  %vm1153 = vcmp.lt.s32.totalorder %v1089, 512
  %vm1154 = vcmp.lt.s32.totalorder %v1090, 512
  %vm1155 = vcmp.lt.s32.totalorder %v1091, 512
  %v1156 = vsel %vm1092, 1, 0
  %v1157 = vsel %vm1093, 1, 0
  %v1158 = vsel %vm1094, 1, 0
  %v1159 = vsel %vm1095, 1, 0
  %v1160 = vsel %vm1096, 1, 0
  %v1161 = vsel %vm1097, 1, 0
  %v1162 = vsel %vm1098, 1, 0
  %v1163 = vsel %vm1099, 1, 0
  %v1164 = vsel %vm1100, 1, 0
  %v1165 = vsel %vm1101, 1, 0
  %v1166 = vsel %vm1102, 1, 0
  %v1167 = vsel %vm1103, 1, 0
  %v1168 = vsel %vm1104, 1, 0
  %v1169 = vsel %vm1105, 1, 0
  %v1170 = vsel %vm1106, 1, 0
  %v1171 = vsel %vm1107, 1, 0
  %v1172 = vsel %vm1108, 1, 0
  %v1173 = vsel %vm1109, 1, 0
  %v1174 = vsel %vm1110, 1, 0
  %v1175 = vsel %vm1111, 1, 0
  %v1176 = vsel %vm1112, 1, 0
  %v1177 = vsel %vm1113, 1, 0
  %v1178 = vsel %vm1114, 1, 0
  %v1179 = vsel %vm1115, 1, 0
  %v1180 = vsel %vm1116, 1, 0
  %v1181 = vsel %vm1117, 1, 0
  %v1182 = vsel %vm1118, 1, 0
  %v1183 = vsel %vm1119, 1, 0
  %v1184 = vsel %vm1120, 1, 0
  %v1185 = vsel %vm1121, 1, 0
  %v1186 = vsel %vm1122, 1, 0
  %v1187 = vsel %vm1123, 1, 0
  %v1188 = vsel %vm1124, 1, 0
  %v1189 = vsel %vm1125, 1, 0
  %v1190 = vsel %vm1126, 1, 0
  %v1191 = vsel %vm1127, 1, 0
  %v1192 = vsel %vm1128, 1, 0
  %v1193 = vsel %vm1129, 1, 0
  %v1194 = vsel %vm1130, 1, 0
  %v1195 = vsel %vm1131, 1, 0
  %v1196 = vsel %vm1132, 1, 0
  %v1197 = vsel %vm1133, 1, 0
  %v1198 = vsel %vm1134, 1, 0
  %v1199 = vsel %vm1135, 1, 0
  %v1200 = vsel %vm1136, 1, 0
  %v1201 = vsel %vm1137, 1, 0
  %v1202 = vsel %vm1138, 1, 0
  %v1203 = vsel %vm1139, 1, 0
  %v1204 = vsel %vm1140, 1, 0
  %v1205 = vsel %vm1141, 1, 0
  %v1206 = vsel %vm1142, 1, 0
  %v1207 = vsel %vm1143, 1, 0
  %v1208 = vsel %vm1144, 1, 0
  %v1209 = vsel %vm1145, 1, 0
  %v1210 = vsel %vm1146, 1, 0
  %v1211 = vsel %vm1147, 1, 0
  %v1212 = vsel %vm1148, 1, 0
  %v1213 = vsel %vm1149, 1, 0
  %v1214 = vsel %vm1150, 1, 0
  %v1215 = vsel %vm1151, 1, 0
  %v1216 = vsel %vm1152, 1, 0
  %v1217 = vsel %vm1153, 1, 0
  %v1218 = vsel %vm1154, 1, 0
  %v1219 = vsel %vm1155, 1, 0
  %vm1220 = vcmp.eq.s32.totalorder %v1156, 1
  %vm1221 = vcmp.eq.s32.totalorder %v1157, 1
  %vm1222 = vcmp.eq.s32.totalorder %v1158, 1
  %vm1223 = vcmp.eq.s32.totalorder %v1159, 1
  %vm1224 = vcmp.eq.s32.totalorder %v1160, 1
  %vm1225 = vcmp.eq.s32.totalorder %v1161, 1
  %vm1226 = vcmp.eq.s32.totalorder %v1162, 1
  %vm1227 = vcmp.eq.s32.totalorder %v1163, 1
  %vm1228 = vcmp.eq.s32.totalorder %v1164, 1
  %vm1229 = vcmp.eq.s32.totalorder %v1165, 1
  %vm1230 = vcmp.eq.s32.totalorder %v1166, 1
  %vm1231 = vcmp.eq.s32.totalorder %v1167, 1
  %vm1232 = vcmp.eq.s32.totalorder %v1168, 1
  %vm1233 = vcmp.eq.s32.totalorder %v1169, 1
  %vm1234 = vcmp.eq.s32.totalorder %v1170, 1
  %vm1235 = vcmp.eq.s32.totalorder %v1171, 1
  %vm1236 = vcmp.eq.s32.totalorder %v1172, 1
  %vm1237 = vcmp.eq.s32.totalorder %v1173, 1
  %vm1238 = vcmp.eq.s32.totalorder %v1174, 1
  %vm1239 = vcmp.eq.s32.totalorder %v1175, 1
  %vm1240 = vcmp.eq.s32.totalorder %v1176, 1
  %vm1241 = vcmp.eq.s32.totalorder %v1177, 1
  %vm1242 = vcmp.eq.s32.totalorder %v1178, 1
  %vm1243 = vcmp.eq.s32.totalorder %v1179, 1
  %vm1244 = vcmp.eq.s32.totalorder %v1180, 1
  %vm1245 = vcmp.eq.s32.totalorder %v1181, 1
  %vm1246 = vcmp.eq.s32.totalorder %v1182, 1
  %vm1247 = vcmp.eq.s32.totalorder %v1183, 1
  %vm1248 = vcmp.eq.s32.totalorder %v1184, 1
  %vm1249 = vcmp.eq.s32.totalorder %v1185, 1
  %vm1250 = vcmp.eq.s32.totalorder %v1186, 1
  %vm1251 = vcmp.eq.s32.totalorder %v1187, 1
  %vm1252 = vcmp.eq.s32.totalorder %v1188, 1
  %vm1253 = vcmp.eq.s32.totalorder %v1189, 1
  %vm1254 = vcmp.eq.s32.totalorder %v1190, 1
  %vm1255 = vcmp.eq.s32.totalorder %v1191, 1
  %vm1256 = vcmp.eq.s32.totalorder %v1192, 1
  %vm1257 = vcmp.eq.s32.totalorder %v1193, 1
  %vm1258 = vcmp.eq.s32.totalorder %v1194, 1
  %vm1259 = vcmp.eq.s32.totalorder %v1195, 1
  %vm1260 = vcmp.eq.s32.totalorder %v1196, 1
  %vm1261 = vcmp.eq.s32.totalorder %v1197, 1
  %vm1262 = vcmp.eq.s32.totalorder %v1198, 1
  %vm1263 = vcmp.eq.s32.totalorder %v1199, 1
  %vm1264 = vcmp.eq.s32.totalorder %v1200, 1
  %vm1265 = vcmp.eq.s32.totalorder %v1201, 1
  %vm1266 = vcmp.eq.s32.totalorder %v1202, 1
  %vm1267 = vcmp.eq.s32.totalorder %v1203, 1
  %vm1268 = vcmp.eq.s32.totalorder %v1204, 1
  %vm1269 = vcmp.eq.s32.totalorder %v1205, 1
  %vm1270 = vcmp.eq.s32.totalorder %v1206, 1
  %vm1271 = vcmp.eq.s32.totalorder %v1207, 1
  %vm1272 = vcmp.eq.s32.totalorder %v1208, 1
  %vm1273 = vcmp.eq.s32.totalorder %v1209, 1
  %vm1274 = vcmp.eq.s32.totalorder %v1210, 1
  %vm1275 = vcmp.eq.s32.totalorder %v1211, 1
  %vm1276 = vcmp.eq.s32.totalorder %v1212, 1
  %vm1277 = vcmp.eq.s32.totalorder %v1213, 1
  %vm1278 = vcmp.eq.s32.totalorder %v1214, 1
  %vm1279 = vcmp.eq.s32.totalorder %v1215, 1
  %vm1280 = vcmp.eq.s32.totalorder %v1216, 1
  %vm1281 = vcmp.eq.s32.totalorder %v1217, 1
  %vm1282 = vcmp.eq.s32.totalorder %v1218, 1
  %vm1283 = vcmp.eq.s32.totalorder %v1219, 1
  %v1284 = vsel %vm1220, %v386, 0.0
  %v1285 = vsel %vm1221, %v389, 0.0
  %v1286 = vsel %vm1222, %v394, 0.0
  %v1287 = vsel %vm1223, %v397, 0.0
  %v1288 = vsel %vm1224, %v402, 0.0
  %v1289 = vsel %vm1225, %v405, 0.0
  %v1290 = vsel %vm1226, %v410, 0.0
  %v1291 = vsel %vm1227, %v413, 0.0
  %v1292 = vsel %vm1228, %v418, 0.0
  %v1293 = vsel %vm1229, %v421, 0.0
  %v1294 = vsel %vm1230, %v426, 0.0
  %v1295 = vsel %vm1231, %v429, 0.0
  %v1296 = vsel %vm1232, %v434, 0.0
  %v1297 = vsel %vm1233, %v437, 0.0
  %v1298 = vsel %vm1234, %v442, 0.0
  %v1299 = vsel %vm1235, %v445, 0.0
  %v1300 = vsel %vm1236, %v450, 0.0
  %v1301 = vsel %vm1237, %v453, 0.0
  %v1302 = vsel %vm1238, %v458, 0.0
  %v1303 = vsel %vm1239, %v461, 0.0
  %v1304 = vsel %vm1240, %v466, 0.0
  %v1305 = vsel %vm1241, %v469, 0.0
  %v1306 = vsel %vm1242, %v474, 0.0
  %v1307 = vsel %vm1243, %v477, 0.0
  %v1308 = vsel %vm1244, %v482, 0.0
  %v1309 = vsel %vm1245, %v485, 0.0
  %v1310 = vsel %vm1246, %v490, 0.0
  %v1311 = vsel %vm1247, %v493, 0.0
  %v1312 = vsel %vm1248, %v498, 0.0
  %v1313 = vsel %vm1249, %v501, 0.0
  %v1314 = vsel %vm1250, %v506, 0.0
  %v1315 = vsel %vm1251, %v509, 0.0
  %v1316 = vsel %vm1252, %v514, 0.0
  %v1317 = vsel %vm1253, %v517, 0.0
  %v1318 = vsel %vm1254, %v522, 0.0
  %v1319 = vsel %vm1255, %v525, 0.0
  %v1320 = vsel %vm1256, %v530, 0.0
  %v1321 = vsel %vm1257, %v533, 0.0
  %v1322 = vsel %vm1258, %v538, 0.0
  %v1323 = vsel %vm1259, %v541, 0.0
  %v1324 = vsel %vm1260, %v546, 0.0
  %v1325 = vsel %vm1261, %v549, 0.0
  %v1326 = vsel %vm1262, %v554, 0.0
  %v1327 = vsel %vm1263, %v557, 0.0
  %v1328 = vsel %vm1264, %v562, 0.0
  %v1329 = vsel %vm1265, %v565, 0.0
  %v1330 = vsel %vm1266, %v570, 0.0
  %v1331 = vsel %vm1267, %v573, 0.0
  %v1332 = vsel %vm1268, %v578, 0.0
  %v1333 = vsel %vm1269, %v581, 0.0
  %v1334 = vsel %vm1270, %v586, 0.0
  %v1335 = vsel %vm1271, %v589, 0.0
  %v1336 = vsel %vm1272, %v594, 0.0
  %v1337 = vsel %vm1273, %v597, 0.0
  %v1338 = vsel %vm1274, %v602, 0.0
  %v1339 = vsel %vm1275, %v605, 0.0
  %v1340 = vsel %vm1276, %v610, 0.0
  %v1341 = vsel %vm1277, %v613, 0.0
  %v1342 = vsel %vm1278, %v618, 0.0
  %v1343 = vsel %vm1279, %v621, 0.0
  %v1344 = vsel %vm1280, %v626, 0.0
  %v1345 = vsel %vm1281, %v629, 0.0
  %v1346 = vsel %vm1282, %v634, 0.0
  %v1347 = vsel %vm1283, %v637, 0.0
  %vm1348 = vcmask 64512
  %v1349 = vsel %vm1348, %v1284, 0.0
  %v1350 = vsel %vm1348, %v1285, 0.0
  %v1351 = vadd.f32 %v1349, %v1350
  %v1352 = vsel %vm1348, %v1286, 0.0
  %v1353 = vadd.f32 %v1351, %v1352
  %v1354 = vsel %vm1348, %v1287, 0.0
  %v1355 = vadd.f32 %v1353, %v1354
  %v1356 = vsel %vm1348, %v1288, 0.0
  %v1357 = vadd.f32 %v1355, %v1356
  %v1358 = vsel %vm1348, %v1289, 0.0
  %v1359 = vadd.f32 %v1357, %v1358
  %v1360 = vsel %vm1348, %v1290, 0.0
  %v1361 = vadd.f32 %v1359, %v1360
  %v1362 = vsel %vm1348, %v1291, 0.0
  %v1363 = vadd.f32 %v1361, %v1362
  %v1364 = vsel %vm1348, %v1292, 0.0
  %v1365 = vadd.f32 %v1363, %v1364
  %v1366 = vsel %vm1348, %v1293, 0.0
  %v1367 = vadd.f32 %v1365, %v1366
  %v1368 = vsel %vm1348, %v1294, 0.0
  %v1369 = vadd.f32 %v1367, %v1368
  %v1370 = vsel %vm1348, %v1295, 0.0
  %v1371 = vadd.f32 %v1369, %v1370
  %v1372 = vsel %vm1348, %v1296, 0.0
  %v1373 = vadd.f32 %v1371, %v1372
  %v1374 = vsel %vm1348, %v1297, 0.0
  %v1375 = vadd.f32 %v1373, %v1374
  %v1376 = vsel %vm1348, %v1298, 0.0
  %v1377 = vadd.f32 %v1375, %v1376
  %v1378 = vsel %vm1348, %v1299, 0.0
  %v1379 = vadd.f32 %v1377, %v1378
  %v1380 = vsel %vm1348, %v1300, 0.0
  %v1381 = vadd.f32 %v1379, %v1380
  %v1382 = vsel %vm1348, %v1301, 0.0
  %v1383 = vadd.f32 %v1381, %v1382
  %v1384 = vsel %vm1348, %v1302, 0.0
  %v1385 = vadd.f32 %v1383, %v1384
  %v1386 = vsel %vm1348, %v1303, 0.0
  %v1387 = vadd.f32 %v1385, %v1386
  %v1388 = vsel %vm1348, %v1304, 0.0
  %v1389 = vadd.f32 %v1387, %v1388
  %v1390 = vsel %vm1348, %v1305, 0.0
  %v1391 = vadd.f32 %v1389, %v1390
  %v1392 = vsel %vm1348, %v1306, 0.0
  %v1393 = vadd.f32 %v1391, %v1392
  %v1394 = vsel %vm1348, %v1307, 0.0
  %v1395 = vadd.f32 %v1393, %v1394
  %v1396 = vsel %vm1348, %v1308, 0.0
  %v1397 = vadd.f32 %v1395, %v1396
  %v1398 = vsel %vm1348, %v1309, 0.0
  %v1399 = vadd.f32 %v1397, %v1398
  %v1400 = vsel %vm1348, %v1310, 0.0
  %v1401 = vadd.f32 %v1399, %v1400
  %v1402 = vsel %vm1348, %v1311, 0.0
  %v1403 = vadd.f32 %v1401, %v1402
  %v1404 = vsel %vm1348, %v1312, 0.0
  %v1405 = vadd.f32 %v1403, %v1404
  %v1406 = vsel %vm1348, %v1313, 0.0
  %v1407 = vadd.f32 %v1405, %v1406
  %v1408 = vsel %vm1348, %v1314, 0.0
  %v1409 = vadd.f32 %v1407, %v1408
  %v1410 = vsel %vm1348, %v1315, 0.0
  %v1411 = vadd.f32 %v1409, %v1410
  %v1412 = vsel %vm1348, %v1316, 0.0
  %v1413 = vadd.f32 %v1411, %v1412
  %v1414 = vsel %vm1348, %v1317, 0.0
  %v1415 = vadd.f32 %v1413, %v1414
  %v1416 = vsel %vm1348, %v1318, 0.0
  %v1417 = vadd.f32 %v1415, %v1416
  %v1418 = vsel %vm1348, %v1319, 0.0
  %v1419 = vadd.f32 %v1417, %v1418
  %v1420 = vsel %vm1348, %v1320, 0.0
  %v1421 = vadd.f32 %v1419, %v1420
  %v1422 = vsel %vm1348, %v1321, 0.0
  %v1423 = vadd.f32 %v1421, %v1422
  %v1424 = vsel %vm1348, %v1322, 0.0
  %v1425 = vadd.f32 %v1423, %v1424
  %v1426 = vsel %vm1348, %v1323, 0.0
  %v1427 = vadd.f32 %v1425, %v1426
  %v1428 = vsel %vm1348, %v1324, 0.0
  %v1429 = vadd.f32 %v1427, %v1428
  %v1430 = vsel %vm1348, %v1325, 0.0
  %v1431 = vadd.f32 %v1429, %v1430
  %v1432 = vsel %vm1348, %v1326, 0.0
  %v1433 = vadd.f32 %v1431, %v1432
  %v1434 = vsel %vm1348, %v1327, 0.0
  %v1435 = vadd.f32 %v1433, %v1434
  %v1436 = vsel %vm1348, %v1328, 0.0
  %v1437 = vadd.f32 %v1435, %v1436
  %v1438 = vsel %vm1348, %v1329, 0.0
  %v1439 = vadd.f32 %v1437, %v1438
  %v1440 = vsel %vm1348, %v1330, 0.0
  %v1441 = vadd.f32 %v1439, %v1440
  %v1442 = vsel %vm1348, %v1331, 0.0
  %v1443 = vadd.f32 %v1441, %v1442
  %v1444 = vsel %vm1348, %v1332, 0.0
  %v1445 = vadd.f32 %v1443, %v1444
  %v1446 = vsel %vm1348, %v1333, 0.0
  %v1447 = vadd.f32 %v1445, %v1446
  %v1448 = vsel %vm1348, %v1334, 0.0
  %v1449 = vadd.f32 %v1447, %v1448
  %v1450 = vsel %vm1348, %v1335, 0.0
  %v1451 = vadd.f32 %v1449, %v1450
  %v1452 = vsel %vm1348, %v1336, 0.0
  %v1453 = vadd.f32 %v1451, %v1452
  %v1454 = vsel %vm1348, %v1337, 0.0
  %v1455 = vadd.f32 %v1453, %v1454
  %v1456 = vsel %vm1348, %v1338, 0.0
  %v1457 = vadd.f32 %v1455, %v1456
  %v1458 = vsel %vm1348, %v1339, 0.0
  %v1459 = vadd.f32 %v1457, %v1458
  %v1460 = vsel %vm1348, %v1340, 0.0
  %v1461 = vadd.f32 %v1459, %v1460
  %v1462 = vsel %vm1348, %v1341, 0.0
  %v1463 = vadd.f32 %v1461, %v1462
  %v1464 = vsel %vm1348, %v1342, 0.0
  %v1465 = vadd.f32 %v1463, %v1464
  %v1466 = vsel %vm1348, %v1343, 0.0
  %v1467 = vadd.f32 %v1465, %v1466
  %v1468 = vsel %vm1348, %v1344, 0.0
  %v1469 = vadd.f32 %v1467, %v1468
  %v1470 = vsel %vm1348, %v1345, 0.0
  %v1471 = vadd.f32 %v1469, %v1470
  %v1472 = vsel %vm1348, %v1346, 0.0
  %v1473 = vadd.f32 %v1471, %v1472
  %v1474 = vsel %vm1348, %v1347, 0.0
  %v1475 = vadd.f32 %v1473, %v1474
  %v1476 = vrot.slane %v1475, 4
  %v1477 = vadd.f32 %v1475, %v1476
  %v1478 = vrot.slane %v1477, 2
  %v1479 = vadd.f32 %v1477, %v1478
  %v1480 = vrot.slane %v1479, 1
  %v1481 = vadd.f32 %v1479, %v1480
  %vm1482 = vcmask 57344
  %1483 = vst.msk [vmem:[%s4] sm:$0x1] %vm1482, %v1481
  %v1484 = vmul.f32 %v1284, %v1284
  %v1485 = vmul.f32 %v1285, %v1285
  %v1486 = vmul.f32 %v1286, %v1286
  %v1487 = vmul.f32 %v1287, %v1287
  %v1488 = vmul.f32 %v1288, %v1288
  %v1489 = vmul.f32 %v1289, %v1289
  %v1490 = vmul.f32 %v1290, %v1290
  %v1491 = vmul.f32 %v1291, %v1291
  %v1492 = vmul.f32 %v1292, %v1292
  %v1493 = vmul.f32 %v1293, %v1293
  %v1494 = vmul.f32 %v1294, %v1294
  %v1495 = vmul.f32 %v1295, %v1295
  %v1496 = vmul.f32 %v1296, %v1296
  %v1497 = vmul.f32 %v1297, %v1297
  %v1498 = vmul.f32 %v1298, %v1298
  %v1499 = vmul.f32 %v1299, %v1299
  %v1500 = vmul.f32 %v1300, %v1300
  %v1501 = vmul.f32 %v1301, %v1301
  %v1502 = vmul.f32 %v1302, %v1302
  %v1503 = vmul.f32 %v1303, %v1303
  %v1504 = vmul.f32 %v1304, %v1304
  %v1505 = vmul.f32 %v1305, %v1305
  %v1506 = vmul.f32 %v1306, %v1306
  %v1507 = vmul.f32 %v1307, %v1307
  %v1508 = vmul.f32 %v1308, %v1308
  %v1509 = vmul.f32 %v1309, %v1309
  %v1510 = vmul.f32 %v1310, %v1310
  %v1511 = vmul.f32 %v1311, %v1311
  %v1512 = vmul.f32 %v1312, %v1312
  %v1513 = vmul.f32 %v1313, %v1313
  %v1514 = vmul.f32 %v1314, %v1314
  %v1515 = vmul.f32 %v1315, %v1315
  %v1516 = vmul.f32 %v1316, %v1316
  %v1517 = vmul.f32 %v1317, %v1317
  %v1518 = vmul.f32 %v1318, %v1318
  %v1519 = vmul.f32 %v1319, %v1319
  %v1520 = vmul.f32 %v1320, %v1320
  %v1521 = vmul.f32 %v1321, %v1321
  %v1522 = vmul.f32 %v1322, %v1322
  %v1523 = vmul.f32 %v1323, %v1323
  %v1524 = vmul.f32 %v1324, %v1324
  %v1525 = vmul.f32 %v1325, %v1325
  %v1526 = vmul.f32 %v1326, %v1326
  %v1527 = vmul.f32 %v1327, %v1327
  %v1528 = vmul.f32 %v1328, %v1328
  %v1529 = vmul.f32 %v1329, %v1329
  %v1530 = vmul.f32 %v1330, %v1330
  %v1531 = vmul.f32 %v1331, %v1331
  %v1532 = vmul.f32 %v1332, %v1332
  %v1533 = vmul.f32 %v1333, %v1333
  %v1534 = vmul.f32 %v1334, %v1334
  %v1535 = vmul.f32 %v1335, %v1335
  %v1536 = vmul.f32 %v1336, %v1336
  %v1537 = vmul.f32 %v1337, %v1337
  %v1538 = vmul.f32 %v1338, %v1338
  %v1539 = vmul.f32 %v1339, %v1339
  %v1540 = vmul.f32 %v1340, %v1340
  %v1541 = vmul.f32 %v1341, %v1341
  %v1542 = vmul.f32 %v1342, %v1342
  %v1543 = vmul.f32 %v1343, %v1343
  %v1544 = vmul.f32 %v1344, %v1344
  %v1545 = vmul.f32 %v1345, %v1345
  %v1546 = vmul.f32 %v1346, %v1346
  %v1547 = vmul.f32 %v1347, %v1347
  %v1548 = vsel %vm1348, %v1484, 0.0
  %v1549 = vsel %vm1348, %v1485, 0.0
  %v1550 = vadd.f32 %v1548, %v1549
  %v1551 = vsel %vm1348, %v1486, 0.0
  %v1552 = vadd.f32 %v1550, %v1551
  %v1553 = vsel %vm1348, %v1487, 0.0
  %v1554 = vadd.f32 %v1552, %v1553
  %v1555 = vsel %vm1348, %v1488, 0.0
  %v1556 = vadd.f32 %v1554, %v1555
  %v1557 = vsel %vm1348, %v1489, 0.0
  %v1558 = vadd.f32 %v1556, %v1557
  %v1559 = vsel %vm1348, %v1490, 0.0
  %v1560 = vadd.f32 %v1558, %v1559
  %v1561 = vsel %vm1348, %v1491, 0.0
  %v1562 = vadd.f32 %v1560, %v1561
  %v1563 = vsel %vm1348, %v1492, 0.0
  %v1564 = vadd.f32 %v1562, %v1563
  %v1565 = vsel %vm1348, %v1493, 0.0
  %v1566 = vadd.f32 %v1564, %v1565
  %v1567 = vsel %vm1348, %v1494, 0.0
  %v1568 = vadd.f32 %v1566, %v1567
  %v1569 = vsel %vm1348, %v1495, 0.0
  %v1570 = vadd.f32 %v1568, %v1569
  %v1571 = vsel %vm1348, %v1496, 0.0
  %v1572 = vadd.f32 %v1570, %v1571
  %v1573 = vsel %vm1348, %v1497, 0.0
  %v1574 = vadd.f32 %v1572, %v1573
  %v1575 = vsel %vm1348, %v1498, 0.0
  %v1576 = vadd.f32 %v1574, %v1575
  %v1577 = vsel %vm1348, %v1499, 0.0
  %v1578 = vadd.f32 %v1576, %v1577
  %v1579 = vsel %vm1348, %v1500, 0.0
  %v1580 = vadd.f32 %v1578, %v1579
  %v1581 = vsel %vm1348, %v1501, 0.0
  %v1582 = vadd.f32 %v1580, %v1581
  %v1583 = vsel %vm1348, %v1502, 0.0
  %v1584 = vadd.f32 %v1582, %v1583
  %v1585 = vsel %vm1348, %v1503, 0.0
  %v1586 = vadd.f32 %v1584, %v1585
  %v1587 = vsel %vm1348, %v1504, 0.0
  %v1588 = vadd.f32 %v1586, %v1587
  %v1589 = vsel %vm1348, %v1505, 0.0
  %v1590 = vadd.f32 %v1588, %v1589
  %v1591 = vsel %vm1348, %v1506, 0.0
  %v1592 = vadd.f32 %v1590, %v1591
  %v1593 = vsel %vm1348, %v1507, 0.0
  %v1594 = vadd.f32 %v1592, %v1593
  %v1595 = vsel %vm1348, %v1508, 0.0
  %v1596 = vadd.f32 %v1594, %v1595
  %v1597 = vsel %vm1348, %v1509, 0.0
  %v1598 = vadd.f32 %v1596, %v1597
  %v1599 = vsel %vm1348, %v1510, 0.0
  %v1600 = vadd.f32 %v1598, %v1599
  %v1601 = vsel %vm1348, %v1511, 0.0
  %v1602 = vadd.f32 %v1600, %v1601
  %v1603 = vsel %vm1348, %v1512, 0.0
  %v1604 = vadd.f32 %v1602, %v1603
  %v1605 = vsel %vm1348, %v1513, 0.0
  %v1606 = vadd.f32 %v1604, %v1605
  %v1607 = vsel %vm1348, %v1514, 0.0
  %v1608 = vadd.f32 %v1606, %v1607
  %v1609 = vsel %vm1348, %v1515, 0.0
  %v1610 = vadd.f32 %v1608, %v1609
  %v1611 = vsel %vm1348, %v1516, 0.0
  %v1612 = vadd.f32 %v1610, %v1611
  %v1613 = vsel %vm1348, %v1517, 0.0
  %v1614 = vadd.f32 %v1612, %v1613
  %v1615 = vsel %vm1348, %v1518, 0.0
  %v1616 = vadd.f32 %v1614, %v1615
  %v1617 = vsel %vm1348, %v1519, 0.0
  %v1618 = vadd.f32 %v1616, %v1617
  %v1619 = vsel %vm1348, %v1520, 0.0
  %v1620 = vadd.f32 %v1618, %v1619
  %v1621 = vsel %vm1348, %v1521, 0.0
  %v1622 = vadd.f32 %v1620, %v1621
  %v1623 = vsel %vm1348, %v1522, 0.0
  %v1624 = vadd.f32 %v1622, %v1623
  %v1625 = vsel %vm1348, %v1523, 0.0
  %v1626 = vadd.f32 %v1624, %v1625
  %v1627 = vsel %vm1348, %v1524, 0.0
  %v1628 = vadd.f32 %v1626, %v1627
  %v1629 = vsel %vm1348, %v1525, 0.0
  %v1630 = vadd.f32 %v1628, %v1629
  %v1631 = vsel %vm1348, %v1526, 0.0
  %v1632 = vadd.f32 %v1630, %v1631
  %v1633 = vsel %vm1348, %v1527, 0.0
  %v1634 = vadd.f32 %v1632, %v1633
  %v1635 = vsel %vm1348, %v1528, 0.0
  %v1636 = vadd.f32 %v1634, %v1635
  %v1637 = vsel %vm1348, %v1529, 0.0
  %v1638 = vadd.f32 %v1636, %v1637
  %v1639 = vsel %vm1348, %v1530, 0.0
  %v1640 = vadd.f32 %v1638, %v1639
  %v1641 = vsel %vm1348, %v1531, 0.0
  %v1642 = vadd.f32 %v1640, %v1641
  %v1643 = vsel %vm1348, %v1532, 0.0
  %v1644 = vadd.f32 %v1642, %v1643
  %v1645 = vsel %vm1348, %v1533, 0.0
  %v1646 = vadd.f32 %v1644, %v1645
  %v1647 = vsel %vm1348, %v1534, 0.0
  %v1648 = vadd.f32 %v1646, %v1647
  %v1649 = vsel %vm1348, %v1535, 0.0
  %v1650 = vadd.f32 %v1648, %v1649
  %v1651 = vsel %vm1348, %v1536, 0.0
  %v1652 = vadd.f32 %v1650, %v1651
  %v1653 = vsel %vm1348, %v1537, 0.0
  %v1654 = vadd.f32 %v1652, %v1653
  %v1655 = vsel %vm1348, %v1538, 0.0
  %v1656 = vadd.f32 %v1654, %v1655
  %v1657 = vsel %vm1348, %v1539, 0.0
  %v1658 = vadd.f32 %v1656, %v1657
  %v1659 = vsel %vm1348, %v1540, 0.0
  %v1660 = vadd.f32 %v1658, %v1659
  %v1661 = vsel %vm1348, %v1541, 0.0
  %v1662 = vadd.f32 %v1660, %v1661
  %v1663 = vsel %vm1348, %v1542, 0.0
  %v1664 = vadd.f32 %v1662, %v1663
  %v1665 = vsel %vm1348, %v1543, 0.0
  %v1666 = vadd.f32 %v1664, %v1665
  %v1667 = vsel %vm1348, %v1544, 0.0
  %v1668 = vadd.f32 %v1666, %v1667
  %v1669 = vsel %vm1348, %v1545, 0.0
  %v1670 = vadd.f32 %v1668, %v1669
  %v1671 = vsel %vm1348, %v1546, 0.0
  %v1672 = vadd.f32 %v1670, %v1671
  %v1673 = vsel %vm1348, %v1547, 0.0
  %v1674 = vadd.f32 %v1672, %v1673
  %v1675 = vrot.slane %v1674, 4
  %v1676 = vadd.f32 %v1674, %v1675
  %v1677 = vrot.slane %v1676, 2
  %v1678 = vadd.f32 %v1676, %v1677
  %v1679 = vrot.slane %v1678, 1
  %v1680 = vadd.f32 %v1678, %v1679
  %1681 = vst.msk [vmem:[%s5] sm:$0x1] %vm1482, %v1680
  // Predicated region
  $region14: #{st_gcn_forward.6} parent=0 // pred_check
    _
  $region15: #{st_gcn_forward.6} parent=0 // pred_check_branch
    %1683 = sbr.rel (0) target = $region17
  $region16: #{st_gcn_forward.6} parent=0 // pred_region
    _
  $region17: #{st_gcn_forward.6} parent=0 // pred_fallthru
    _
  // Predicated region
  $region18: #{st_gcn_forward.6} parent=0 // pred_check
    _
  $region19: #{st_gcn_forward.6} parent=0 // pred_check_branch
    %1685 = sbr.rel (0) target = $region21
  $region20: #{st_gcn_forward.6} parent=0 // pred_region
    _
  $region21: #{st_gcn_forward.6} parent=0 // pred_fallthru
    _
  // Predicated region
  $region22: #{st_gcn_forward.6} parent=0 // pred_check
    _
  $region23: #{st_gcn_forward.6} parent=0 // pred_check_branch
    %1687 = sbr.rel (0) target = $region25
  $region24: #{st_gcn_forward.6} parent=0 // pred_region
    _
  $region25: #{st_gcn_forward.6} parent=0 // pred_fallthru
    _
  // Predicated region
  $region26: #{st_gcn_forward.6} parent=0 // pred_check
    _
  $region27: #{st_gcn_forward.6} parent=0 // pred_check_branch
    %1689 = sbr.rel (0) target = $region29
  $region28: #{st_gcn_forward.6} parent=0 // pred_region
    _
  $region29: #{st_gcn_forward.6} parent=0 // pred_fallthru
    _
  // Predicated region
  $region30: #{st_gcn_forward.6} parent=0 // pred_check
    _
  $region31: #{st_gcn_forward.6} parent=0 // pred_check_branch
    %1691 = sbr.rel (0) target = $region33
  $region32: #{st_gcn_forward.6} parent=0 // pred_region
    _
  $region33: #{st_gcn_forward.6} parent=0 // pred_fallthru
    _
  // Predicated region
  $region34: #{st_gcn_forward.6} parent=0 // pred_check
    _
  $region35: #{st_gcn_forward.6} parent=0 // pred_check_branch
    %1693 = sbr.rel (0) target = $region37
  $region36: #{st_gcn_forward.6} parent=0 // pred_region
    _
  $region37: #{st_gcn_forward.6} parent=0 // pred_fallthru
    _

// kernel: st_gcn_forward.7
$region0: #{st_gcn_forward.7}
  #allocation0 [shape = 'u32[]', space=smem, size = 0x4, offset = 0x4, fixed_abs, tag = 'smem constant byte address 0x4 - core index']
  #allocation1 [shape = 'u32[144,128]{1,0:T(1,128)}', space=vmem, size = 0x12000, scoped, tag = 'internal scratch']
  %s0 = inlined_call_operand.vmem [shape: bf16[32,128], index: 0, kind: input, shape index: {}]
  %s1 = inlined_call_operand.vmem [shape: bf16[32,128], index: 1, kind: input, shape index: {}]
  %s2 = inlined_call_operand.vmem [shape: f32[1,128], index: 2, kind: input, shape index: {}]
  %s3 = inlined_call_operand.vmem [shape: f32[1,128], index: 3, kind: input, shape index: {}]
  %s4 = inlined_call_operand.vmem [shape: f32[1,128], index: 4, kind: input, shape index: {}]
  %s5 = inlined_call_operand.vmem [shape: f32[1,128], index: 5, kind: input, shape index: {}]
  %s6 = inlined_call_operand.vmem [shape: bf16[32,128], index: 6, kind: output, shape index: {}]
  %s7 = sld [smem:[#allocation0]]
  $region34: #{st_gcn_forward.7} parent=0
    _
  %s9 = ssub.s32 1, %s7
  %s10 = scalar_select 0, %s9, %s7
  // Predicated region
  $region2: #{st_gcn_forward.7} parent=0 // pred_check
    _
  $region3: #{st_gcn_forward.7} parent=0 // pred_check_branch
    %12 = sbr.rel (0) target = $region5
  $region4: #{st_gcn_forward.7} parent=0 // pred_region
    _
  $region5: #{st_gcn_forward.7} parent=0 // pred_fallthru
    _
  // Predicated region
  $region6: #{st_gcn_forward.7} parent=0 // pred_check
    _
  $region7: #{st_gcn_forward.7} parent=0 // pred_check_branch
    %14 = sbr.rel (0) target = $region9
  $region8: #{st_gcn_forward.7} parent=0 // pred_region
    _
  $region9: #{st_gcn_forward.7} parent=0 // pred_fallthru
    _
  // Predicated region
  $region10: #{st_gcn_forward.7} parent=0 // pred_check
    _
  $region11: #{st_gcn_forward.7} parent=0 // pred_check_branch
    %16 = sbr.rel (0) target = $region13
  $region12: #{st_gcn_forward.7} parent=0 // pred_region
    _
  $region13: #{st_gcn_forward.7} parent=0 // pred_fallthru
    _
  // Predicated region
  $region14: #{st_gcn_forward.7} parent=0 // pred_check
    _
  $region15: #{st_gcn_forward.7} parent=0 // pred_check_branch
    %18 = sbr.rel (0) target = $region17
  $region16: #{st_gcn_forward.7} parent=0 // pred_region
    _
  $region17: #{st_gcn_forward.7} parent=0 // pred_fallthru
    _
  // Predicated region
  $region18: #{st_gcn_forward.7} parent=0 // pred_check
    _
  $region19: #{st_gcn_forward.7} parent=0 // pred_check_branch
    %20 = sbr.rel (0) target = $region21
  $region20: #{st_gcn_forward.7} parent=0 // pred_region
    _
  $region21: #{st_gcn_forward.7} parent=0 // pred_fallthru
    _
  // Predicated region
  $region22: #{st_gcn_forward.7} parent=0 // pred_check
    _
  $region23: #{st_gcn_forward.7} parent=0 // pred_check_branch
    %22 = sbr.rel (0) target = $region25
  $region24: #{st_gcn_forward.7} parent=0 // pred_region
    _
  $region25: #{st_gcn_forward.7} parent=0 // pred_fallthru
    _
  %v23 = vld [vmem:[%s0] sm:$0xf]
  %v24 = vld [vmem:[%s0 + $0x4] sm:$0xf]
  %v25 = vld [vmem:[%s0 + $0x8] sm:$0xf]
  %v26 = vld [vmem:[%s0 + $0xc] sm:$0xf]
  %v27 = vunpack.c.l.bf16 %v23
  %v28 = vunpack.c.l.bf16 %v24
  %v29 = vunpack.c.l.bf16 %v25
  %v30 = vunpack.c.l.bf16 %v26
  %v31 = vld [vmem:[%s1] sm:$0xf]
  %v32 = vld [vmem:[%s1 + $0x4] sm:$0xf]
  %v33 = vld [vmem:[%s1 + $0x8] sm:$0xf]
  %v34 = vld [vmem:[%s1 + $0xc] sm:$0xf]
  %v35 = vunpack.c.l.bf16 %v31
  %v36 = vunpack.c.l.bf16 %v32
  %v37 = vunpack.c.l.bf16 %v33
  %v38 = vunpack.c.l.bf16 %v34
  %v39 = vld [vmem:[%s2] sm:$0x1]
  %v41 = vlaneseq
  %v42 = vshrl.u32 %v41, 7
  %v43 = vsub.s32 0, %v42
  %v44 = vrot.slane %v39, %v43
  %v46 = vmul.f32 %v27, %v44
  %v47 = vmul.f32 %v28, %v44
  %v48 = vmul.f32 %v29, %v44
  %v49 = vmul.f32 %v30, %v44
  %v50 = vld [vmem:[%s3] sm:$0x1]
  %v52 = vlaneseq
  %v53 = vshrl.u32 %v52, 7
  %v54 = vsub.s32 0, %v53
  %v55 = vrot.slane %v50, %v54
  %v57 = vadd.f32 %v46, %v55
  %v58 = vadd.f32 %v47, %v55
  %v59 = vadd.f32 %v48, %v55
  %v60 = vadd.f32 %v49, %v55
  %v61 = vld [vmem:[%s4] sm:$0x1]
  %v63 = vlaneseq
  %v64 = vshrl.u32 %v63, 7
  %v65 = vsub.s32 0, %v64
  %v66 = vrot.slane %v61, %v65
  %v68 = vmul.f32 %v35, %v66
  %v69 = vmul.f32 %v36, %v66
  %v70 = vmul.f32 %v37, %v66
  %v71 = vmul.f32 %v38, %v66
  %v72 = vadd.f32 %v57, %v68
  %v73 = vadd.f32 %v58, %v69
  %v74 = vadd.f32 %v59, %v70
  %v75 = vadd.f32 %v60, %v71
  %v76 = vld [vmem:[%s5] sm:$0x1]
  %v78 = vlaneseq
  %v79 = vshrl.u32 %v78, 7
  %v80 = vsub.s32 0, %v79
  %v81 = vrot.slane %v76, %v80
  %v83 = vadd.f32 %v72, %v81
  %v84 = vadd.f32 %v73, %v81
  %v85 = vadd.f32 %v74, %v81
  %v86 = vadd.f32 %v75, %v81
  %v87 = vmax.f32 %v83, 0.0
  %v88 = vmax.f32 %v84, 0.0
  %v89 = vmax.f32 %v85, 0.0
  %v90 = vmax.f32 %v86, 0.0
  %v91 = vpack.c.bf16 %v88, %v87
  %v92 = vpack.c.bf16 %v90, %v89
  %v95 = vunpack.c.l.b16 %v91
  %v96 = vunpack.c.h.b16 %v91
  %v97 = vunpack.c.l.b16 %v92
  %v98 = vunpack.c.h.b16 %v92
  %v99 = vpack.c.b16 %v95, %v95
  %v100 = vpack.c.b16 %v96, %v96
  %v101 = vpack.c.b16 %v97, %v97
  %v102 = vpack.c.b16 %v98, %v98
  %107 = vst [vmem:[%s6] sm:$0xf] %v99
  %108 = vst [vmem:[%s6 + $0x4] sm:$0xf] %v100
  %109 = vst [vmem:[%s6 + $0x8] sm:$0xf] %v101
  %110 = vst [vmem:[%s6 + $0xc] sm:$0xf] %v102
  // Predicated region
  $region26: #{st_gcn_forward.7} parent=0 // pred_check
    _
  $region27: #{st_gcn_forward.7} parent=0 // pred_check_branch
    %112 = sbr.rel (0) target = $region29
  $region28: #{st_gcn_forward.7} parent=0 // pred_region
    _
  $region29: #{st_gcn_forward.7} parent=0 // pred_fallthru
    _
  // Predicated region
  $region30: #{st_gcn_forward.7} parent=0 // pred_check
    _
  $region31: #{st_gcn_forward.7} parent=0 // pred_check_branch
    %114 = sbr.rel (0) target = $region33
  $region32: #{st_gcn_forward.7} parent=0 // pred_region
    _
  $region33: #{st_gcn_forward.7} parent=0 // pred_fallthru
    _

// kernel: st_gcn_forward.5
$region0: #{st_gcn_forward.5}
  #allocation0 [shape = 'u32[]', space=smem, size = 0x4, offset = 0x4, fixed_abs, tag = 'smem constant byte address 0x4 - core index']
  #allocation1 [shape = 'u32[144,128]{1,0:T(1,128)}', space=vmem, size = 0x12000, scoped, tag = 'internal scratch']
  #allocation2 [shape = 'bf16[160,8]{1,0:T(8,128)(2,1)}', space=vmem, size = 0xa000, scoped, tag = 'scratch operand']
  %s0 = inlined_call_operand.vmem [shape: bf16[2,256,8], index: 0, kind: input, shape index: {}]
  %s1 = inlined_call_operand.vmem [shape: bf16[2,16,16,8], index: 1, kind: input, shape index: {}, may-alias: {1,2}]
  %s2 = inlined_call_operand.vmem [shape: bf16[2,16,16,8], index: 2, kind: input, shape index: {}, may-alias: {1,2}]
  %s3 = inlined_call_operand.vmem [shape: f32[1,8], index: 3, kind: input, shape index: {}]
  %s4 = inlined_call_operand.vmem [shape: f32[1,8], index: 4, kind: input, shape index: {}]
  %s5 = inlined_call_operand.vmem [shape: bf16[3,8,8], index: 5, kind: input, shape index: {}]
  %s6 = inlined_call_operand.vmem [shape: f32[1,8], index: 6, kind: input, shape index: {}]
  %s7 = inlined_call_operand.vmem [shape: bf16[2,256,8], index: 7, kind: output, shape index: {0}]
  %s8 = inlined_call_operand.vmem [shape: f32[2,2,1,8], index: 8, kind: output, shape index: {1}]
  %s9 = inlined_call_operand.vmem [shape: f32[2,2,1,8], index: 9, kind: output, shape index: {2}]
  %10 = xla_tuple %s7, %s8, %s9
  %s11 = sld [smem:[#allocation0]]
  $region77: #{st_gcn_forward.5} parent=0
    _
  %s13 = ssub.s32 1, %s11
  %s14 = scalar_select 0, %s13, %s11
  loop: start=0, step=1, limit=6
  $region2: #{st_gcn_forward.5} parent=0 // loop_pre_header
    _
  $region3: #{st_gcn_forward.5} parent=0 // loop_header
    %s16 = sphi 0, %s20
    %p17 = scmp.ge.s32.totalorder %s16, 6
    %s23 = sphi 0, %s35
    %s24 = sphi 0, %s31
    %s25 = sphi 0, %s23
    %s26 = sphi 0, %s24
    %s27 = sphi 0, %s25
    %s28 = sphi 0, %s26
    %s40 = sphi 0, %s42
    %s43 = sphi 0, %s40
    %s44 = sphi 0, %s43
    %s60 = sphi 0, %s44
    %s76 = sphi 0, %s78
    %s79 = sphi 0, %s76
    %s80 = sphi 0, %s79
    %s96 = sphi 0, %s80
    %s112 = sphi 0, %s114
    %s115 = sphi 0, %s112
    %s116 = sphi 0, %s115
    %s132 = sphi 0, %s116
    %s136 = sphi 0, %s136
    %s138 = sphi 0, %s136
    %s139 = sphi 0, %s138
    %s153 = sphi 0, %s139
    %s157 = sphi 0, %s157
    %s159 = sphi 0, %s157
    %s160 = sphi 0, %s159
    %s174 = sphi 0, %s160
    %s178 = sphi 0, %s178
    %s180 = sphi 0, %s178
    %s181 = sphi 0, %s180
    %s195 = sphi 0, %s181
    %s199 = sphi 0, %s199
    %s201 = sphi 0, %s199
    %s202 = sphi 0, %s201
    %s216 = sphi 0, %s202
    %s224 = sphi 0, %s226
    %s227 = sphi 0, %s224
    %s228 = sphi 0, %s227
    %s244 = sphi 0, %s228
    %s252 = sphi 0, %s254
    %s255 = sphi 0, %s252
    %s256 = sphi 0, %s255
    %s272 = sphi 0, %s256
    %s280 = sphi 0, %s282
    %s283 = sphi 0, %s280
    %s284 = sphi 0, %s283
    %s300 = sphi 0, %s284
  $region4: #{st_gcn_forward.5} parent=0 // loop_header_branch
    %19 = sbr.rel (%p17) target = $region8
  $region5: #{st_gcn_forward.5} parent=0 // loop_body
    %s21 = ssub.s32 %s16, 1
    %s22 = ssub.s32 %s16, 2
    %s29 = sadd.s32 1, %s24
    %p30 = scmp.ge.s32.totalorder %s29, 2
    %s31 = scalar_select %p30, 0, %s29
    %s32 = sadd.s32 1, %s23
    %s33 = scalar_select %p30, %s32, %s23
    %p34 = scmp.ge.s32.totalorder %s33, 2
    %s35 = scalar_select %p34, 0, %s33
    %s36 = ssub.s32 %s23, %s35
    %s37 = ssub.s32 %s24, %s31
    %s38 = sor.u32 %s36, %s37
    %p39 = scmp.eq.s32.totalorder %s38, 0
    %s41 = sadd.s32 %s40, 1
    %s42 = scalar_select %p39, %s40, %s41
    %p45 = pneg %p39
    %p46 = scmp.eq.s32.totalorder %s16, 3
    %p47 = por %p45, %p46
    %p48 = scmp.ne.s32.totalorder %s40, %s43
    %p49 = scmp.eq.s32.totalorder %s16, 0
    %p50 = por %p48, %p49
    %p51 = scmp.ne.s32.totalorder %s40, %s43
    %p52 = scmp.eq.s32.totalorder %s21, 3
    %p53 = por %p51, %p52
    %p54 = scmp.ne.s32.totalorder %s43, %s44
    %p55 = scmp.eq.s32.totalorder %s21, 0
    %p56 = por %p54, %p55
    %p57 = scmp.ne.s32.totalorder %s43, %s44
    %p58 = scmp.eq.s32.totalorder %s22, 3
    %p59 = por %p57, %p58
    %p61 = scmp.ne.s32.totalorder %s44, %s60
    %p62 = scmp.eq.s32.totalorder %s22, 0
    %p63 = por %p61, %p62
    %s64 = smul.u32 %s24, 8
    %s65 = ssub.s32 %s64, 1
    %p66 = scmp.gt.s32.totalorder %s65, 0
    %s67 = scalar_select %p66, %s65, 0
    %s68 = smul.u32 %s31, 8
    %s69 = ssub.s32 %s68, 1
    %p70 = scmp.gt.s32.totalorder %s69, 0
    %s71 = scalar_select %p70, %s69, 0
    %s72 = ssub.s32 %s23, %s35
    %s73 = ssub.s32 %s67, %s71
    %s74 = sor.u32 %s72, %s73
    %p75 = scmp.eq.s32.totalorder %s74, 0
    %s77 = sadd.s32 %s76, 1
    %s78 = scalar_select %p75, %s76, %s77
    %p81 = pneg %p75
    %p82 = scmp.eq.s32.totalorder %s16, 3
    %p83 = por %p81, %p82
    %p84 = scmp.ne.s32.totalorder %s76, %s79
    %p85 = scmp.eq.s32.totalorder %s16, 0
    %p86 = por %p84, %p85
    %p87 = scmp.ne.s32.totalorder %s76, %s79
    %p88 = scmp.eq.s32.totalorder %s21, 3
    %p89 = por %p87, %p88
    %p90 = scmp.ne.s32.totalorder %s79, %s80
    %p91 = scmp.eq.s32.totalorder %s21, 0
    %p92 = por %p90, %p91
    %p93 = scmp.ne.s32.totalorder %s79, %s80
    %p94 = scmp.eq.s32.totalorder %s22, 3
    %p95 = por %p93, %p94
    %p97 = scmp.ne.s32.totalorder %s80, %s96
    %p98 = scmp.eq.s32.totalorder %s22, 0
    %p99 = por %p97, %p98
    %s100 = sadd.s32 %s24, 1
    %s101 = smul.u32 %s100, 8
    %p102 = scmp.lt.s32.totalorder %s101, 15
    %s103 = scalar_select %p102, %s101, 15
    %s104 = sadd.s32 %s31, 1
    %s105 = smul.u32 %s104, 8
    %p106 = scmp.lt.s32.totalorder %s105, 15
    %s107 = scalar_select %p106, %s105, 15
    %s108 = ssub.s32 %s23, %s35
    %s109 = ssub.s32 %s103, %s107
    %s110 = sor.u32 %s108, %s109
    %p111 = scmp.eq.s32.totalorder %s110, 0
    %s113 = sadd.s32 %s112, 1
    %s114 = scalar_select %p111, %s112, %s113
    %p117 = pneg %p111
    %p118 = scmp.eq.s32.totalorder %s16, 3
    %p119 = por %p117, %p118
    %p120 = scmp.ne.s32.totalorder %s112, %s115
    %p121 = scmp.eq.s32.totalorder %s16, 0
    %p122 = por %p120, %p121
    %p123 = scmp.ne.s32.totalorder %s112, %s115
    %p124 = scmp.eq.s32.totalorder %s21, 3
    %p125 = por %p123, %p124
    %p126 = scmp.ne.s32.totalorder %s115, %s116
    %p127 = scmp.eq.s32.totalorder %s21, 0
    %p128 = por %p126, %p127
    %p129 = scmp.ne.s32.totalorder %s115, %s116
    %p130 = scmp.eq.s32.totalorder %s22, 3
    %p131 = por %p129, %p130
    %p133 = scmp.ne.s32.totalorder %s116, %s132
    %p134 = scmp.eq.s32.totalorder %s22, 0
    %p135 = por %p133, %p134
    %s137 = sadd.s32 %s136, 1
    %p140 = scmp.eq.s32.totalorder %s16, 3
    %p141 = scmp.ne.s32.totalorder %s136, %s138
    %p142 = scmp.eq.s32.totalorder %s16, 0
    %p143 = por %p141, %p142
    %p144 = scmp.ne.s32.totalorder %s136, %s138
    %p145 = scmp.eq.s32.totalorder %s21, 3
    %p146 = por %p144, %p145
    %p147 = scmp.ne.s32.totalorder %s138, %s139
    %p148 = scmp.eq.s32.totalorder %s21, 0
    %p149 = por %p147, %p148
    %p150 = scmp.ne.s32.totalorder %s138, %s139
    %p151 = scmp.eq.s32.totalorder %s22, 3
    %p152 = por %p150, %p151
    %p154 = scmp.ne.s32.totalorder %s139, %s153
    %p155 = scmp.eq.s32.totalorder %s22, 0
    %p156 = por %p154, %p155
    %s158 = sadd.s32 %s157, 1
    %p161 = scmp.eq.s32.totalorder %s16, 3
    %p162 = scmp.ne.s32.totalorder %s157, %s159
    %p163 = scmp.eq.s32.totalorder %s16, 0
    %p164 = por %p162, %p163
    %p165 = scmp.ne.s32.totalorder %s157, %s159
    %p166 = scmp.eq.s32.totalorder %s21, 3
    %p167 = por %p165, %p166
    %p168 = scmp.ne.s32.totalorder %s159, %s160
    %p169 = scmp.eq.s32.totalorder %s21, 0
    %p170 = por %p168, %p169
    %p171 = scmp.ne.s32.totalorder %s159, %s160
    %p172 = scmp.eq.s32.totalorder %s22, 3
    %p173 = por %p171, %p172
    %p175 = scmp.ne.s32.totalorder %s160, %s174
    %p176 = scmp.eq.s32.totalorder %s22, 0
    %p177 = por %p175, %p176
    %s179 = sadd.s32 %s178, 1
    %p182 = scmp.eq.s32.totalorder %s16, 3
    %p183 = scmp.ne.s32.totalorder %s178, %s180
    %p184 = scmp.eq.s32.totalorder %s16, 0
    %p185 = por %p183, %p184
    %p186 = scmp.ne.s32.totalorder %s178, %s180
    %p187 = scmp.eq.s32.totalorder %s21, 3
    %p188 = por %p186, %p187
    %p189 = scmp.ne.s32.totalorder %s180, %s181
    %p190 = scmp.eq.s32.totalorder %s21, 0
    %p191 = por %p189, %p190
    %p192 = scmp.ne.s32.totalorder %s180, %s181
    %p193 = scmp.eq.s32.totalorder %s22, 3
    %p194 = por %p192, %p193
    %p196 = scmp.ne.s32.totalorder %s181, %s195
    %p197 = scmp.eq.s32.totalorder %s22, 0
    %p198 = por %p196, %p197
    %s200 = sadd.s32 %s199, 1
    %p203 = scmp.eq.s32.totalorder %s16, 3
    %p204 = scmp.ne.s32.totalorder %s199, %s201
    %p205 = scmp.eq.s32.totalorder %s16, 0
    %p206 = por %p204, %p205
    %p207 = scmp.ne.s32.totalorder %s199, %s201
    %p208 = scmp.eq.s32.totalorder %s21, 3
    %p209 = por %p207, %p208
    %p210 = scmp.ne.s32.totalorder %s201, %s202
    %p211 = scmp.eq.s32.totalorder %s21, 0
    %p212 = por %p210, %p211
    %p213 = scmp.ne.s32.totalorder %s201, %s202
    %p214 = scmp.eq.s32.totalorder %s22, 3
    %p215 = por %p213, %p214
    %p217 = scmp.ne.s32.totalorder %s202, %s216
    %p218 = scmp.eq.s32.totalorder %s22, 0
    %p219 = por %p217, %p218
    %s220 = ssub.s32 %s23, %s35
    %s221 = ssub.s32 %s24, %s31
    %s222 = sor.u32 %s220, %s221
    %p223 = scmp.eq.s32.totalorder %s222, 0
    %s225 = sadd.s32 %s224, 1
    %s226 = scalar_select %p223, %s224, %s225
    %p229 = pneg %p223
    %p230 = scmp.eq.s32.totalorder %s16, 3
    %p231 = por %p229, %p230
    %p232 = scmp.ne.s32.totalorder %s224, %s227
    %p233 = scmp.eq.s32.totalorder %s16, 0
    %p234 = por %p232, %p233
    %p235 = scmp.ne.s32.totalorder %s224, %s227
    %p236 = scmp.eq.s32.totalorder %s21, 3
    %p237 = por %p235, %p236
    %p238 = scmp.ne.s32.totalorder %s227, %s228
    %p239 = scmp.eq.s32.totalorder %s21, 0
    %p240 = por %p238, %p239
    %p241 = scmp.ne.s32.totalorder %s227, %s228
    %p242 = scmp.eq.s32.totalorder %s22, 3
    %p243 = por %p241, %p242
    %p245 = scmp.ne.s32.totalorder %s228, %s244
    %p246 = scmp.eq.s32.totalorder %s22, 0
    %p247 = por %p245, %p246
    %s248 = ssub.s32 %s23, %s35
    %s249 = ssub.s32 %s24, %s31
    %s250 = sor.u32 %s248, %s249
    %p251 = scmp.eq.s32.totalorder %s250, 0
    %s253 = sadd.s32 %s252, 1
    %s254 = scalar_select %p251, %s252, %s253
    %p257 = pneg %p251
    %p258 = scmp.eq.s32.totalorder %s16, 3
    %p259 = por %p257, %p258
    %p260 = scmp.ne.s32.totalorder %s252, %s255
    %p261 = scmp.eq.s32.totalorder %s16, 0
    %p262 = por %p260, %p261
    %p263 = scmp.ne.s32.totalorder %s252, %s255
    %p264 = scmp.eq.s32.totalorder %s21, 3
    %p265 = por %p263, %p264
    %p266 = scmp.ne.s32.totalorder %s255, %s256
    %p267 = scmp.eq.s32.totalorder %s21, 0
    %p268 = por %p266, %p267
    %p269 = scmp.ne.s32.totalorder %s255, %s256
    %p270 = scmp.eq.s32.totalorder %s22, 3
    %p271 = por %p269, %p270
    %p273 = scmp.ne.s32.totalorder %s256, %s272
    %p274 = scmp.eq.s32.totalorder %s22, 0
    %p275 = por %p273, %p274
    %s276 = ssub.s32 %s23, %s35
    %s277 = ssub.s32 %s24, %s31
    %s278 = sor.u32 %s276, %s277
    %p279 = scmp.eq.s32.totalorder %s278, 0
    %s281 = sadd.s32 %s280, 1
    %s282 = scalar_select %p279, %s280, %s281
    %p285 = pneg %p279
    %p286 = scmp.eq.s32.totalorder %s16, 3
    %p287 = por %p285, %p286
    %p288 = scmp.ne.s32.totalorder %s280, %s283
    %p289 = scmp.eq.s32.totalorder %s16, 0
    %p290 = por %p288, %p289
    %p291 = scmp.ne.s32.totalorder %s280, %s283
    %p292 = scmp.eq.s32.totalorder %s21, 3
    %p293 = por %p291, %p292
    %p294 = scmp.ne.s32.totalorder %s283, %s284
    %p295 = scmp.eq.s32.totalorder %s21, 0
    %p296 = por %p294, %p295
    %p297 = scmp.ne.s32.totalorder %s283, %s284
    %p298 = scmp.eq.s32.totalorder %s22, 3
    %p299 = por %p297, %p298
    %p301 = scmp.ne.s32.totalorder %s284, %s300
    %p302 = scmp.eq.s32.totalorder %s22, 0
    %p303 = por %p301, %p302
    %p304 = scmp.le.s32.totalorder 1, %s16
    %p305 = scmp.lt.s32.totalorder %s16, 5
    %p306 = pnand %p304, %p305
    %p307 = pneg %p306
    // Predicated region
    $region9: #{st_gcn_forward.5} parent=5 // pred_check
      _
    $region10: #{st_gcn_forward.5} parent=5 // pred_check_branch
      %309 = sbr.rel (%p306) target = $region12
    $region11: #{st_gcn_forward.5} parent=5 // pred_region
      %s310 = ssub.s32 %s16, 1
      // Predicated region
      $region13: #{st_gcn_forward.5} parent=11 // pred_check
        %p311 = pneg %p149
      $region14: #{st_gcn_forward.5} parent=11 // pred_check_branch
        %313 = sbr.rel (%p311) target = $region16
      $region15: #{st_gcn_forward.5} parent=11 // pred_region
        _
      $region16: #{st_gcn_forward.5} parent=11 // pred_fallthru
        _
      // Predicated region
      $region17: #{st_gcn_forward.5} parent=11 // pred_check
        %p314 = pneg %p170
      $region18: #{st_gcn_forward.5} parent=11 // pred_check_branch
        %316 = sbr.rel (%p314) target = $region20
      $region19: #{st_gcn_forward.5} parent=11 // pred_region
        _
      $region20: #{st_gcn_forward.5} parent=11 // pred_fallthru
        _
      // Predicated region
      $region21: #{st_gcn_forward.5} parent=11 // pred_check
        %p317 = pneg %p191
      $region22: #{st_gcn_forward.5} parent=11 // pred_check_branch
        %319 = sbr.rel (%p317) target = $region24
      $region23: #{st_gcn_forward.5} parent=11 // pred_region
        _
      $region24: #{st_gcn_forward.5} parent=11 // pred_fallthru
        _
      // Predicated region
      $region25: #{st_gcn_forward.5} parent=11 // pred_check
        %p320 = pneg %p212
      $region26: #{st_gcn_forward.5} parent=11 // pred_check_branch
        %322 = sbr.rel (%p320) target = $region28
      $region27: #{st_gcn_forward.5} parent=11 // pred_region
        _
      $region28: #{st_gcn_forward.5} parent=11 // pred_fallthru
        _
    $region12: #{st_gcn_forward.5} parent=5 // pred_fallthru
      _
    %p323 = scmp.lt.s32.totalorder %s16, 4
    // Predicated region
    $region29: #{st_gcn_forward.5} parent=5 // pred_check
      %p324 = pneg %p323
    $region30: #{st_gcn_forward.5} parent=5 // pred_check_branch
      %326 = sbr.rel (%p324) target = $region32
    $region31: #{st_gcn_forward.5} parent=5 // pred_region
      // Predicated region
      $region33: #{st_gcn_forward.5} parent=31 // pred_check
        %p327 = pneg %p50
      $region34: #{st_gcn_forward.5} parent=31 // pred_check_branch
        %329 = sbr.rel (%p327) target = $region36
      $region35: #{st_gcn_forward.5} parent=31 // pred_region
        %s330 = smul.u32 16, %s24
        %p331 = scmp.lt.s32.totalorder %s23, 1
        %s332 = scalar_select %p331, %s23, 1
        %p333 = scmp.lt.s32.totalorder %s330, 31
        %s334 = scalar_select %p333, %s330, 31
        %s335 = smul.addr %s332, 32
        %s336 = sadd.s32 %s334, %s335
        %s337 = smul.addr %s336, 4
        %s338 = scalar_lea.vmem %s0, %s337
        %s339 = smul.u32 16, %s24
      $region36: #{st_gcn_forward.5} parent=31 // pred_fallthru
        _
      // Predicated region
      $region37: #{st_gcn_forward.5} parent=31 // pred_check
        %p340 = pneg %p86
      $region38: #{st_gcn_forward.5} parent=31 // pred_check_branch
        %342 = sbr.rel (%p340) target = $region40
      $region39: #{st_gcn_forward.5} parent=31 // pred_region
        %s343 = smul.u32 %s24, 8
        %s344 = ssub.s32 %s343, 1
        %p345 = scmp.gt.s32.totalorder %s344, 0
        %s346 = scalar_select %p345, %s344, 0
        %p347 = scmp.lt.s32.totalorder %s23, 1
        %s348 = scalar_select %p347, %s23, 1
        %p349 = scmp.lt.s32.totalorder %s346, 15
        %s350 = scalar_select %p349, %s346, 15
        %s351 = smul.addr %s350, 2
        %s352 = smul.addr %s348, 32
        %s353 = sadd.s32 %s351, %s352
        %s354 = smul.addr %s353, 4
        %s355 = scalar_lea.vmem %s1, %s354
        %s356 = smul.u32 %s24, 8
        %s357 = ssub.s32 %s356, 1
        %p358 = scmp.gt.s32.totalorder %s357, 0
        %s359 = scalar_select %p358, %s357, 0
      $region40: #{st_gcn_forward.5} parent=31 // pred_fallthru
        _
      // Predicated region
      $region41: #{st_gcn_forward.5} parent=31 // pred_check
        %p360 = pneg %p122
      $region42: #{st_gcn_forward.5} parent=31 // pred_check_branch
        %362 = sbr.rel (%p360) target = $region44
      $region43: #{st_gcn_forward.5} parent=31 // pred_region
        %s363 = sadd.s32 %s24, 1
        %s364 = smul.u32 %s363, 8
        %p365 = scmp.lt.s32.totalorder %s364, 15
        %s366 = scalar_select %p365, %s364, 15
        %p367 = scmp.lt.s32.totalorder %s23, 1
        %s368 = scalar_select %p367, %s23, 1
        %p369 = scmp.lt.s32.totalorder %s366, 15
        %s370 = scalar_select %p369, %s366, 15
        %s371 = smul.addr %s370, 2
        %s372 = smul.addr %s368, 32
        %s373 = sadd.s32 %s371, %s372
        %s374 = smul.addr %s373, 4
        %s375 = scalar_lea.vmem %s2, %s374
        %s376 = sadd.s32 %s24, 1
        %s377 = smul.u32 %s376, 8
        %p378 = scmp.lt.s32.totalorder %s377, 15
        %s379 = scalar_select %p378, %s377, 15
      $region44: #{st_gcn_forward.5} parent=31 // pred_fallthru
        _
    $region32: #{st_gcn_forward.5} parent=5 // pred_fallthru
      _
    %p380 = scmp.le.s32.totalorder 1, %s16
    %p381 = scmp.lt.s32.totalorder %s16, 5
    %p382 = pnand %p380, %p381
    %p383 = pneg %p382
    // Predicated region
    $region45: #{st_gcn_forward.5} parent=5 // pred_check
      _
    $region46: #{st_gcn_forward.5} parent=5 // pred_check_branch
      %385 = sbr.rel (%p382) target = $region48
    $region47: #{st_gcn_forward.5} parent=5 // pred_region
      %s386 = ssub.s32 %s16, 1
      %s387 = smul.u32 16, %s26
      %p388 = scmp.lt.s32.totalorder %s25, 1
      %s389 = scalar_select %p388, %s25, 1
      %p390 = scmp.lt.s32.totalorder %s387, 31
      %s391 = scalar_select %p390, %s387, 31
      %s392 = smul.addr %s389, 32
      %s393 = sadd.s32 %s391, %s392
      %s394 = smul.addr %s393, 4
      %s395 = scalar_lea.vmem %s0, %s394
      %p396 = pneg %p56
      %p397 = pneg %p53
      %s398 = smul.u32 %s26, 8
      %s399 = ssub.s32 %s398, 1
      %p400 = scmp.gt.s32.totalorder %s399, 0
      %s401 = scalar_select %p400, %s399, 0
      %p402 = scmp.lt.s32.totalorder %s25, 1
      %s403 = scalar_select %p402, %s25, 1
      %p404 = scmp.lt.s32.totalorder %s401, 15
      %s405 = scalar_select %p404, %s401, 15
      %s406 = smul.addr %s405, 2
      %s407 = smul.addr %s403, 32
      %s408 = sadd.s32 %s406, %s407
      %s409 = smul.addr %s408, 4
      %s410 = scalar_lea.vmem %s1, %s409
      %p411 = pneg %p92
      %p412 = pneg %p89
      %s413 = sadd.s32 %s26, 1
      %s414 = smul.u32 %s413, 8
      %p415 = scmp.lt.s32.totalorder %s414, 15
      %s416 = scalar_select %p415, %s414, 15
      %p417 = scmp.lt.s32.totalorder %s25, 1
      %s418 = scalar_select %p417, %s25, 1
      %p419 = scmp.lt.s32.totalorder %s416, 15
      %s420 = scalar_select %p419, %s416, 15
      %s421 = smul.addr %s420, 2
      %s422 = smul.addr %s418, 32
      %s423 = sadd.s32 %s421, %s422
      %s424 = smul.addr %s423, 4
      %s425 = scalar_lea.vmem %s2, %s424
      %p426 = pneg %p128
      %p427 = pneg %p125
      %p428 = pneg %p149
      %p429 = pneg %p146
      %p430 = pneg %p170
      %p431 = pneg %p167
      %p432 = pneg %p191
      %p433 = pneg %p188
      %p434 = pneg %p212
      %p435 = pneg %p209
      %p436 = pneg %p240
      %p437 = pneg %p237
      %s438 = smul.u32 16, %s26
      %p439 = scmp.lt.s32.totalorder %s25, 1
      %s440 = scalar_select %p439, %s25, 1
      %p441 = scmp.lt.s32.totalorder %s438, 31
      %s442 = scalar_select %p441, %s438, 31
      %s443 = smul.addr %s440, 32
      %s444 = sadd.s32 %s442, %s443
      %s445 = smul.addr %s444, 4
      %s446 = scalar_lea.vmem %s7, %s445
      %p447 = pneg %p268
      %p448 = pneg %p265
      %p449 = scmp.lt.s32.totalorder %s25, 1
      %s450 = scalar_select %p449, %s25, 1
      %p451 = scmp.lt.s32.totalorder %s26, 1
      %s452 = scalar_select %p451, %s26, 1
      %s453 = smul.addr %s450, 2
      %s454 = sadd.s32 %s452, %s453
      %s455 = scalar_lea.vmem %s8, %s454
      %p456 = pneg %p296
      %p457 = pneg %p293
      %p458 = scmp.lt.s32.totalorder %s25, 1
      %s459 = scalar_select %p458, %s25, 1
      %p460 = scmp.lt.s32.totalorder %s26, 1
      %s461 = scalar_select %p460, %s26, 1
      %s462 = smul.addr %s459, 2
      %s463 = sadd.s32 %s461, %s462
      %s464 = scalar_lea.vmem %s9, %s463
      %s465 = smul.u32 16, %s26
      %p466 = scmp.lt.s32.totalorder %s25, 1
      %s467 = scalar_select %p466, %s25, 1
      %p468 = scmp.lt.s32.totalorder %s465, 31
      %s469 = scalar_select %p468, %s465, 31
      %s470 = smul.addr %s467, 32
      %s471 = sadd.s32 %s469, %s470
      %s472 = smul.addr %s471, 4
      %s473 = scalar_lea.vmem %s0, %s472
      %s474 = smul.u32 16, %s26
      %s475 = smul.u32 %s26, 8
      %s476 = ssub.s32 %s475, 1
      %p477 = scmp.gt.s32.totalorder %s476, 0
      %s478 = scalar_select %p477, %s476, 0
      %p479 = scmp.lt.s32.totalorder %s25, 1
      %s480 = scalar_select %p479, %s25, 1
      %p481 = scmp.lt.s32.totalorder %s478, 15
      %s482 = scalar_select %p481, %s478, 15
      %s483 = smul.addr %s482, 2
      %s484 = smul.addr %s480, 32
      %s485 = sadd.s32 %s483, %s484
      %s486 = smul.addr %s485, 4
      %s487 = scalar_lea.vmem %s1, %s486
      %s488 = smul.u32 %s26, 8
      %s489 = ssub.s32 %s488, 1
      %p490 = scmp.gt.s32.totalorder %s489, 0
      %s491 = scalar_select %p490, %s489, 0
      %s492 = sadd.s32 %s26, 1
      %s493 = smul.u32 %s492, 8
      %p494 = scmp.lt.s32.totalorder %s493, 15
      %s495 = scalar_select %p494, %s493, 15
      %p496 = scmp.lt.s32.totalorder %s25, 1
      %s497 = scalar_select %p496, %s25, 1
      %p498 = scmp.lt.s32.totalorder %s495, 15
      %s499 = scalar_select %p498, %s495, 15
      %s500 = smul.addr %s499, 2
      %s501 = smul.addr %s497, 32
      %s502 = sadd.s32 %s500, %s501
      %s503 = smul.addr %s502, 4
      %s504 = scalar_lea.vmem %s2, %s503
      %s505 = sadd.s32 %s26, 1
      %s506 = smul.u32 %s505, 8
      %p507 = scmp.lt.s32.totalorder %s506, 15
      %s508 = scalar_select %p507, %s506, 15
      %s509 = smul.u32 16, %s26
      %p510 = scmp.lt.s32.totalorder %s25, 1
      %s511 = scalar_select %p510, %s25, 1
      %p512 = scmp.lt.s32.totalorder %s509, 31
      %s513 = scalar_select %p512, %s509, 31
      %s514 = smul.addr %s511, 32
      %s515 = sadd.s32 %s513, %s514
      %s516 = smul.addr %s515, 4
      %s517 = scalar_lea.vmem %s7, %s516
      %s518 = smul.u32 16, %s26
      %p519 = scmp.lt.s32.totalorder %s25, 1
      %s520 = scalar_select %p519, %s25, 1
      %p521 = scmp.lt.s32.totalorder %s26, 1
      %s522 = scalar_select %p521, %s26, 1
      %s523 = smul.addr %s520, 2
      %s524 = sadd.s32 %s522, %s523
      %s525 = scalar_lea.vmem %s8, %s524
      %p526 = scmp.lt.s32.totalorder %s25, 1
      %s527 = scalar_select %p526, %s25, 1
      %p528 = scmp.lt.s32.totalorder %s26, 1
      %s529 = scalar_select %p528, %s26, 1
      %s530 = smul.addr %s527, 2
      %s531 = sadd.s32 %s529, %s530
      %s532 = scalar_lea.vmem %s9, %s531
      %v534 = vld [vmem:[%s3] sm:$0x1]
      %v535 = vld [vmem:[%s4] sm:$0x1]
      %v536 = vld [vmem:[%s473] sm:$0xf]
      %v537 = vld [vmem:[%s473 + $0x4] sm:$0xf]
      %v538 = vld [vmem:[%s473 + $0x8] sm:$0xf]
      %v539 = vld [vmem:[%s473 + $0xc] sm:$0xf]
      %v540 = vld [vmem:[%s473 + $0x10] sm:$0xf]
      %v541 = vld [vmem:[%s473 + $0x14] sm:$0xf]
      %v542 = vld [vmem:[%s473 + $0x18] sm:$0xf]
      %v543 = vld [vmem:[%s473 + $0x1c] sm:$0xf]
      %v544 = vld [vmem:[%s473 + $0x20] sm:$0xf]
      %v545 = vld [vmem:[%s473 + $0x24] sm:$0xf]
      %v546 = vld [vmem:[%s473 + $0x28] sm:$0xf]
      %v547 = vld [vmem:[%s473 + $0x2c] sm:$0xf]
      %v548 = vld [vmem:[%s473 + $0x30] sm:$0xf]
      %v549 = vld [vmem:[%s473 + $0x34] sm:$0xf]
      %v550 = vld [vmem:[%s473 + $0x38] sm:$0xf]
      %v551 = vld [vmem:[%s473 + $0x3c] sm:$0xf]
      %v552 = vunpack.c.l.bf16 %v536
      %v553 = vunpack.c.l.bf16 %v537
      %v554 = vunpack.c.l.bf16 %v538
      %v555 = vunpack.c.l.bf16 %v539
      %v556 = vunpack.c.l.bf16 %v540
      %v557 = vunpack.c.l.bf16 %v541
      %v558 = vunpack.c.l.bf16 %v542
      %v559 = vunpack.c.l.bf16 %v543
      %v560 = vunpack.c.l.bf16 %v544
      %v561 = vunpack.c.l.bf16 %v545
      %v562 = vunpack.c.l.bf16 %v546
      %v563 = vunpack.c.l.bf16 %v547
      %v564 = vunpack.c.l.bf16 %v548
      %v565 = vunpack.c.l.bf16 %v549
      %v566 = vunpack.c.l.bf16 %v550
      %v567 = vunpack.c.l.bf16 %v551
      %v569 = vlaneseq
      %v570 = vshrl.u32 %v569, 7
      %v571 = vsub.s32 0, %v570
      %v572 = vrot.slane %v534, %v571
      %v574 = vmul.f32 %v552, %v572
      %v575 = vmul.f32 %v553, %v572
      %v576 = vmul.f32 %v554, %v572
      %v577 = vmul.f32 %v555, %v572
      %v578 = vmul.f32 %v556, %v572
      %v579 = vmul.f32 %v557, %v572
      %v580 = vmul.f32 %v558, %v572
      %v581 = vmul.f32 %v559, %v572
      %v582 = vmul.f32 %v560, %v572
      %v583 = vmul.f32 %v561, %v572
      %v584 = vmul.f32 %v562, %v572
      %v585 = vmul.f32 %v563, %v572
      %v586 = vmul.f32 %v564, %v572
      %v587 = vmul.f32 %v565, %v572
      %v588 = vmul.f32 %v566, %v572
      %v589 = vmul.f32 %v567, %v572
      %v591 = vlaneseq
      %v592 = vshrl.u32 %v591, 7
      %v593 = vsub.s32 0, %v592
      %v594 = vrot.slane %v535, %v593
      %v596 = vadd.f32 %v574, %v594
      %v597 = vadd.f32 %v575, %v594
      %v598 = vadd.f32 %v576, %v594
      %v599 = vadd.f32 %v577, %v594
      %v600 = vadd.f32 %v578, %v594
      %v601 = vadd.f32 %v579, %v594
      %v602 = vadd.f32 %v580, %v594
      %v603 = vadd.f32 %v581, %v594
      %v604 = vadd.f32 %v582, %v594
      %v605 = vadd.f32 %v583, %v594
      %v606 = vadd.f32 %v584, %v594
      %v607 = vadd.f32 %v585, %v594
      %v608 = vadd.f32 %v586, %v594
      %v609 = vadd.f32 %v587, %v594
      %v610 = vadd.f32 %v588, %v594
      %v611 = vadd.f32 %v589, %v594
      %v612 = vmax.f32 %v596, 0.0
      %v613 = vmax.f32 %v597, 0.0
      %v614 = vmax.f32 %v598, 0.0
      %v615 = vmax.f32 %v599, 0.0
      %v616 = vmax.f32 %v600, 0.0
      %v617 = vmax.f32 %v601, 0.0
      %v618 = vmax.f32 %v602, 0.0
      %v619 = vmax.f32 %v603, 0.0
      %v620 = vmax.f32 %v604, 0.0
      %v621 = vmax.f32 %v605, 0.0
      %v622 = vmax.f32 %v606, 0.0
      %v623 = vmax.f32 %v607, 0.0
      %v624 = vmax.f32 %v608, 0.0
      %v625 = vmax.f32 %v609, 0.0
      %v626 = vmax.f32 %v610, 0.0
      %v627 = vmax.f32 %v611, 0.0
      %v628 = vpack.c.bf16 %v613, %v612
      %v629 = vpack.c.bf16 %v615, %v614
      %v630 = vpack.c.bf16 %v617, %v616
      %v631 = vpack.c.bf16 %v619, %v618
      %v632 = vpack.c.bf16 %v621, %v620
      %v633 = vpack.c.bf16 %v623, %v622
      %v634 = vpack.c.bf16 %v625, %v624
      %v635 = vpack.c.bf16 %v627, %v626
      %v644 = vunpack.c.l.b16 %v628
      %v645 = vunpack.c.h.b16 %v628
      %v646 = vunpack.c.l.b16 %v629
      %v647 = vunpack.c.h.b16 %v629
      %v648 = vunpack.c.l.b16 %v630
      %v649 = vunpack.c.h.b16 %v630
      %v650 = vunpack.c.l.b16 %v631
      %v651 = vunpack.c.h.b16 %v631
      %v652 = vunpack.c.l.b16 %v632
      %v653 = vunpack.c.h.b16 %v632
      %v654 = vunpack.c.l.b16 %v633
      %v655 = vunpack.c.h.b16 %v633
      %v656 = vunpack.c.l.b16 %v634
      %v657 = vunpack.c.h.b16 %v634
      %v658 = vunpack.c.l.b16 %v635
      %v659 = vunpack.c.h.b16 %v635
      %v660 = vpack.c.b16 %v644, %v644
      %v661 = vpack.c.b16 %v645, %v645
      %v662 = vpack.c.b16 %v646, %v646
      %v663 = vpack.c.b16 %v647, %v647
      %v664 = vpack.c.b16 %v648, %v648
      %v665 = vpack.c.b16 %v649, %v649
      %v666 = vpack.c.b16 %v650, %v650
      %v667 = vpack.c.b16 %v651, %v651
      %v668 = vpack.c.b16 %v652, %v652
      %v669 = vpack.c.b16 %v653, %v653
      %v670 = vpack.c.b16 %v654, %v654
      %v671 = vpack.c.b16 %v655, %v655
      %v672 = vpack.c.b16 %v656, %v656
      %v673 = vpack.c.b16 %v657, %v657
      %v674 = vpack.c.b16 %v658, %v658
      %v675 = vpack.c.b16 %v659, %v659
      %vm692 = vcmask 60416
      %693 = vst.msk [vmem:[#allocation2 + $0x8] sm:$0xf] %vm692, %v660
      %694 = vst.msk [vmem:[#allocation2 + $0xc] sm:$0xf] %vm692, %v661
      %695 = vst.msk [vmem:[#allocation2 + $0x10] sm:$0xf] %vm692, %v662
      %696 = vst.msk [vmem:[#allocation2 + $0x14] sm:$0xf] %vm692, %v663
      %697 = vst.msk [vmem:[#allocation2 + $0x18] sm:$0xf] %vm692, %v664
      %698 = vst.msk [vmem:[#allocation2 + $0x1c] sm:$0xf] %vm692, %v665
      %699 = vst.msk [vmem:[#allocation2 + $0x20] sm:$0xf] %vm692, %v666
      %700 = vst.msk [vmem:[#allocation2 + $0x24] sm:$0xf] %vm692, %v667
      %701 = vst.msk [vmem:[#allocation2 + $0x28] sm:$0xf] %vm692, %v668
      %702 = vst.msk [vmem:[#allocation2 + $0x2c] sm:$0xf] %vm692, %v669
      %703 = vst.msk [vmem:[#allocation2 + $0x30] sm:$0xf] %vm692, %v670
      %704 = vst.msk [vmem:[#allocation2 + $0x34] sm:$0xf] %vm692, %v671
      %705 = vst.msk [vmem:[#allocation2 + $0x38] sm:$0xf] %vm692, %v672
      %706 = vst.msk [vmem:[#allocation2 + $0x3c] sm:$0xf] %vm692, %v673
      %707 = vst.msk [vmem:[#allocation2 + $0x40] sm:$0xf] %vm692, %v674
      %708 = vst.msk [vmem:[#allocation2 + $0x44] sm:$0xf] %vm692, %v675
      %v709 = vld [vmem:[%s487] sm:$0xf]
      %v710 = vld [vmem:[%s487 + $0x4] sm:$0xf]
      %v711 = vunpack.c.l.bf16 %v709
      %v712 = vunpack.c.l.bf16 %v710
      %v713 = vld [vmem:[%s504] sm:$0xf]
      %v714 = vld [vmem:[%s504 + $0x4] sm:$0xf]
      %v715 = vunpack.c.l.bf16 %v713
      %v716 = vunpack.c.l.bf16 %v714
      %p717 = scmp.gt.s32.totalorder %s26, 0
      %v718 = vmul.f32 %v711, %v572
      %v719 = vmul.f32 %v712, %v572
      %v720 = vadd.f32 %v718, %v594
      %v721 = vadd.f32 %v719, %v594
      %v722 = vmax.f32 %v720, 0.0
      %v723 = vmax.f32 %v721, 0.0
      %s724 = scalar_select %p717, 1, 0
      %v725 = vstv %s724
      %vm726 = vcmp.eq.s32.totalorder %v725, 1
      %v727 = vsel %vm726, %v722, 0.0
      %v728 = vsel %vm726, %v723, 0.0
      %p729 = scmp.lt.s32.totalorder %s26, 1
      %v730 = vmul.f32 %v715, %v572
      %v731 = vmul.f32 %v716, %v572
      %v732 = vadd.f32 %v730, %v594
      %v733 = vadd.f32 %v731, %v594
      %v734 = vmax.f32 %v732, 0.0
      %v735 = vmax.f32 %v733, 0.0
      %s736 = scalar_select %p729, 1, 0
      %v737 = vstv %s736
      %vm738 = vcmp.eq.s32.totalorder %v737, 1
      %v739 = vsel %vm738, %v734, 0.0
      %v740 = vsel %vm738, %v735, 0.0
      %v741 = vpack.c.bf16 %v728, %v727
      %v743 = vunpack.c.l.b16 %v741
      %v744 = vunpack.c.h.b16 %v741
      %v745 = vpack.c.b16 %v743, %v743
      %v746 = vpack.c.b16 %v744, %v744
      %749 = vst.msk [vmem:[#allocation2] sm:$0xf] %vm692, %v745
      %750 = vst.msk [vmem:[#allocation2 + $0x4] sm:$0xf] %vm692, %v746
      %v751 = vpack.c.bf16 %v740, %v739
      %v753 = vunpack.c.l.b16 %v751
      %v754 = vunpack.c.h.b16 %v751
      %v755 = vpack.c.b16 %v753, %v753
      %v756 = vpack.c.b16 %v754, %v754
      %759 = vst.msk [vmem:[#allocation2 + $0x48] sm:$0xf] %vm692, %v755
      %760 = vst.msk [vmem:[#allocation2 + $0x4c] sm:$0xf] %vm692, %v756
      %v761 = vld [vmem:[%s6] sm:$0x1]
      %v763 = vlaneseq
      %v764 = vshrl.u32 %v763, 7
      %v765 = vsub.s32 0, %v764
      %v766 = vrot.slane %v761, %v765
      %v768 = vld [vmem:[#allocation2] sm:$0xf]
      %v769 = vld [vmem:[#allocation2 + $0x4] sm:$0xf]
      %v770 = vld [vmem:[#allocation2 + $0x8] sm:$0xf]
      %v771 = vld [vmem:[#allocation2 + $0xc] sm:$0xf]
      %v772 = vld [vmem:[#allocation2 + $0x10] sm:$0xf]
      %v773 = vld [vmem:[#allocation2 + $0x14] sm:$0xf]
      %v774 = vld [vmem:[#allocation2 + $0x18] sm:$0xf]
      %v775 = vld [vmem:[#allocation2 + $0x1c] sm:$0xf]
      %v776 = vld [vmem:[#allocation2 + $0x20] sm:$0xf]
      %v777 = vld [vmem:[#allocation2 + $0x24] sm:$0xf]
      %v778 = vld [vmem:[#allocation2 + $0x28] sm:$0xf]
      %v779 = vld [vmem:[#allocation2 + $0x2c] sm:$0xf]
      %v780 = vld [vmem:[#allocation2 + $0x30] sm:$0xf]
      %v781 = vld [vmem:[#allocation2 + $0x34] sm:$0xf]
      %v782 = vld [vmem:[#allocation2 + $0x38] sm:$0xf]
      %v783 = vld [vmem:[#allocation2 + $0x3c] sm:$0xf]
      %v784 = vld [vmem:[%s5] sm:$0xf]
      %v801 = vunpack.c.l.b16 %v768
      %v802 = vunpack.c.l.b16 %v769
      %v803 = vunpack.c.l.b16 %v770
      %v804 = vunpack.c.l.b16 %v771
      %v805 = vunpack.c.l.b16 %v772
      %v806 = vunpack.c.l.b16 %v773
      %v807 = vunpack.c.l.b16 %v774
      %v808 = vunpack.c.l.b16 %v775
      %v809 = vunpack.c.l.b16 %v776
      %v810 = vunpack.c.l.b16 %v777
      %v811 = vunpack.c.l.b16 %v778
      %v812 = vunpack.c.l.b16 %v779
      %v813 = vunpack.c.l.b16 %v780
      %v814 = vunpack.c.l.b16 %v781
      %v815 = vunpack.c.l.b16 %v782
      %v816 = vunpack.c.l.b16 %v783
      %v817 = vpack.c.b16 %v802, %v801
      %v818 = vpack.c.b16 %v804, %v803
      %v819 = vpack.c.b16 %v806, %v805
      %v820 = vpack.c.b16 %v808, %v807
      %v821 = vpack.c.b16 %v810, %v809
      %v822 = vpack.c.b16 %v812, %v811
      %v823 = vpack.c.b16 %v814, %v813
      %v824 = vpack.c.b16 %v816, %v815
      %vm825 = vcmask 64512
      %v827 = vsel %vm825, %v817, 0
      %v830 = vsel %vm825, %v818, 0
      %v833 = vsel %vm825, %v819, 0
      %v836 = vsel %vm825, %v820, 0
      %v839 = vsel %vm825, %v821, 0
      %v842 = vsel %vm825, %v822, 0
      %v845 = vsel %vm825, %v823, 0
      %v848 = vsel %vm825, %v824, 0
      %vm850 = vcmask 1043456
      %v852 = vsel %vm850, %v784, 0
      %854 = vmatprep.subr.bf16.mxu0 0
      %855 = vmatpush1.bf16.msra.mxu0 0
      %856 = vmatprep.subr.bf16.mxu0 0
      %857 = vmatpush1.bf16.msra.mxu0 0
      %858 = vmatprep.subr.bf16.mxu0 0
      %859 = vmatpush1.bf16.msra.mxu0 0
      %860 = vmatprep.subr.bf16.mxu0 0
      %861 = vmatpush1.bf16.msra.mxu0 0
      %862 = vmatprep.subr.bf16.mxu0 0
      %863 = vmatpush1.bf16.msra.mxu0 0
      %864 = vmatprep.subr.bf16.mxu0 0
      %865 = vmatpush1.bf16.msra.mxu0 0
      %866 = vmatprep.subr.bf16.mxu0 0
      %867 = vmatpush1.bf16.msra.mxu0 0
      %868 = vmatprep.subr.bf16.mxu0 0
      %869 = vmatpush1.bf16.msra.mxu0 %v852
      %870 = vmatprep.subr.bf16.mxu0 0
      %871 = vmatpush2.bf16.msra.mxu0 0
      %872 = vmatprep.subr.bf16.mxu0 0
      %873 = vmatpush2.bf16.msra.mxu0 0
      %874 = vmatprep.subr.bf16.mxu0 0
      %875 = vmatpush2.bf16.msra.mxu0 0
      %876 = vmatprep.subr.bf16.mxu0 0
      %877 = vmatpush2.bf16.msra.mxu0 0
      %878 = vmatprep.subr.bf16.mxu0 0
      %879 = vmatpush2.bf16.msra.mxu0 0
      %880 = vmatprep.subr.bf16.mxu0 0
      %881 = vmatpush2.bf16.msra.mxu0 0
      %882 = vmatprep.subr.bf16.mxu0 0
      %883 = vmatpush2.bf16.msra.mxu0 0
      %884 = vmatprep.subr.bf16.mxu0 0
      %885 = vmatpush2.bf16.msra.mxu0 0
      %886 = vmatprep.mubr.bf16.mxu0 0
      %887 = vmatmul.mubr.bf16.gmra.mxu0 %v827
      %v888 = vpop.f32.mrf.mxu0
      %v889 = vadd.f32 0.0, %v888
      %v890 = vpop.f32.mrf.mxu0
      %v891 = vpop.f32.mrf.mxu0
      %v892 = vadd.f32 0.0, %v891
      %v893 = vpop.f32.mrf.mxu0
      %894 = vmatprep.mubr.bf16.mxu0 0
      %895 = vmatmul.mubr.bf16.gmra.mxu0 %v830
      %v896 = vpop.f32.mrf.mxu0
      %v897 = vadd.f32 0.0, %v896
      %v898 = vpop.f32.mrf.mxu0
      %v899 = vpop.f32.mrf.mxu0
      %v900 = vadd.f32 0.0, %v899
      %v901 = vpop.f32.mrf.mxu0
      %902 = vmatprep.mubr.bf16.mxu0 0
      %903 = vmatmul.mubr.bf16.gmra.mxu0 %v833
      %v904 = vpop.f32.mrf.mxu0
      %v905 = vadd.f32 0.0, %v904
      %v906 = vpop.f32.mrf.mxu0
      %v907 = vpop.f32.mrf.mxu0
      %v908 = vadd.f32 0.0, %v907
      %v909 = vpop.f32.mrf.mxu0
      %910 = vmatprep.mubr.bf16.mxu0 0
      %911 = vmatmul.mubr.bf16.gmra.mxu0 %v836
      %v912 = vpop.f32.mrf.mxu0
      %v913 = vadd.f32 0.0, %v912
      %v914 = vpop.f32.mrf.mxu0
      %v915 = vpop.f32.mrf.mxu0
      %v916 = vadd.f32 0.0, %v915
      %v917 = vpop.f32.mrf.mxu0
      %918 = vmatprep.mubr.bf16.mxu0 0
      %919 = vmatmul.mubr.bf16.gmra.mxu0 %v839
      %v920 = vpop.f32.mrf.mxu0
      %v921 = vadd.f32 0.0, %v920
      %v922 = vpop.f32.mrf.mxu0
      %v923 = vpop.f32.mrf.mxu0
      %v924 = vadd.f32 0.0, %v923
      %v925 = vpop.f32.mrf.mxu0
      %926 = vmatprep.mubr.bf16.mxu0 0
      %927 = vmatmul.mubr.bf16.gmra.mxu0 %v842
      %v928 = vpop.f32.mrf.mxu0
      %v929 = vadd.f32 0.0, %v928
      %v930 = vpop.f32.mrf.mxu0
      %v931 = vpop.f32.mrf.mxu0
      %v932 = vadd.f32 0.0, %v931
      %v933 = vpop.f32.mrf.mxu0
      %934 = vmatprep.mubr.bf16.mxu0 0
      %935 = vmatmul.mubr.bf16.gmra.mxu0 %v845
      %v936 = vpop.f32.mrf.mxu0
      %v937 = vadd.f32 0.0, %v936
      %v938 = vpop.f32.mrf.mxu0
      %v939 = vpop.f32.mrf.mxu0
      %v940 = vadd.f32 0.0, %v939
      %v941 = vpop.f32.mrf.mxu0
      %942 = vmatprep.mubr.bf16.mxu0 0
      %943 = vmatmul.mubr.bf16.gmra.mxu0 %v848
      %v944 = vpop.f32.mrf.mxu0
      %v945 = vadd.f32 0.0, %v944
      %v946 = vpop.f32.mrf.mxu0
      %v947 = vpop.f32.mrf.mxu0
      %v948 = vadd.f32 0.0, %v947
      %v949 = vpop.f32.mrf.mxu0
      %950 = vdwg.mxu0
      %v951 = vadd.f32 %v766, %v889
      %v952 = vadd.f32 %v766, %v892
      %v953 = vadd.f32 %v766, %v897
      %v954 = vadd.f32 %v766, %v900
      %v955 = vadd.f32 %v766, %v905
      %v956 = vadd.f32 %v766, %v908
      %v957 = vadd.f32 %v766, %v913
      %v958 = vadd.f32 %v766, %v916
      %v959 = vadd.f32 %v766, %v921
      %v960 = vadd.f32 %v766, %v924
      %v961 = vadd.f32 %v766, %v929
      %v962 = vadd.f32 %v766, %v932
      %v963 = vadd.f32 %v766, %v937
      %v964 = vadd.f32 %v766, %v940
      %v965 = vadd.f32 %v766, %v945
      %v966 = vadd.f32 %v766, %v948
      %v967 = vld [vmem:[#allocation2 + $0x8] sm:$0xf]
      %v968 = vld [vmem:[#allocation2 + $0xc] sm:$0xf]
      %v969 = vld [vmem:[#allocation2 + $0x10] sm:$0xf]
      %v970 = vld [vmem:[#allocation2 + $0x14] sm:$0xf]
      %v971 = vld [vmem:[#allocation2 + $0x18] sm:$0xf]
      %v972 = vld [vmem:[#allocation2 + $0x1c] sm:$0xf]
      %v973 = vld [vmem:[#allocation2 + $0x20] sm:$0xf]
      %v974 = vld [vmem:[#allocation2 + $0x24] sm:$0xf]
      %v975 = vld [vmem:[#allocation2 + $0x28] sm:$0xf]
      %v976 = vld [vmem:[#allocation2 + $0x2c] sm:$0xf]
      %v977 = vld [vmem:[#allocation2 + $0x30] sm:$0xf]
      %v978 = vld [vmem:[#allocation2 + $0x34] sm:$0xf]
      %v979 = vld [vmem:[#allocation2 + $0x38] sm:$0xf]
      %v980 = vld [vmem:[#allocation2 + $0x3c] sm:$0xf]
      %v981 = vld [vmem:[#allocation2 + $0x40] sm:$0xf]
      %v982 = vld [vmem:[#allocation2 + $0x44] sm:$0xf]
      %s983 = scalar_lea.vmem %s5, 4
      %v984 = vld [vmem:[%s983] sm:$0xf]
      %v1001 = vunpack.c.l.b16 %v967
      %v1002 = vunpack.c.l.b16 %v968
      %v1003 = vunpack.c.l.b16 %v969
      %v1004 = vunpack.c.l.b16 %v970
      %v1005 = vunpack.c.l.b16 %v971
      %v1006 = vunpack.c.l.b16 %v972
      %v1007 = vunpack.c.l.b16 %v973
      %v1008 = vunpack.c.l.b16 %v974
      %v1009 = vunpack.c.l.b16 %v975
      %v1010 = vunpack.c.l.b16 %v976
      %v1011 = vunpack.c.l.b16 %v977
      %v1012 = vunpack.c.l.b16 %v978
      %v1013 = vunpack.c.l.b16 %v979
      %v1014 = vunpack.c.l.b16 %v980
      %v1015 = vunpack.c.l.b16 %v981
      %v1016 = vunpack.c.l.b16 %v982
      %v1017 = vpack.c.b16 %v1002, %v1001
      %v1018 = vpack.c.b16 %v1004, %v1003
      %v1019 = vpack.c.b16 %v1006, %v1005
      %v1020 = vpack.c.b16 %v1008, %v1007
      %v1021 = vpack.c.b16 %v1010, %v1009
      %v1022 = vpack.c.b16 %v1012, %v1011
      %v1023 = vpack.c.b16 %v1014, %v1013
      %v1024 = vpack.c.b16 %v1016, %v1015
      %v1026 = vsel %vm825, %v1017, 0
      %v1029 = vsel %vm825, %v1018, 0
      %v1032 = vsel %vm825, %v1019, 0
      %v1035 = vsel %vm825, %v1020, 0
      %v1038 = vsel %vm825, %v1021, 0
      %v1041 = vsel %vm825, %v1022, 0
      %v1044 = vsel %vm825, %v1023, 0
      %v1047 = vsel %vm825, %v1024, 0
      %v1050 = vsel %vm850, %v984, 0
      %1052 = vmatprep.subr.bf16.mxu0 0
      %1053 = vmatpush1.bf16.msra.mxu0 0
      %1054 = vmatprep.subr.bf16.mxu0 0
      %1055 = vmatpush1.bf16.msra.mxu0 0
      %1056 = vmatprep.subr.bf16.mxu0 0
      %1057 = vmatpush1.bf16.msra.mxu0 0
      %1058 = vmatprep.subr.bf16.mxu0 0
      %1059 = vmatpush1.bf16.msra.mxu0 0
      %1060 = vmatprep.subr.bf16.mxu0 0
      %1061 = vmatpush1.bf16.msra.mxu0 0
      %1062 = vmatprep.subr.bf16.mxu0 0
      %1063 = vmatpush1.bf16.msra.mxu0 0
      %1064 = vmatprep.subr.bf16.mxu0 0
      %1065 = vmatpush1.bf16.msra.mxu0 0
      %1066 = vmatprep.subr.bf16.mxu0 0
      %1067 = vmatpush1.bf16.msra.mxu0 %v1050
      %1068 = vmatprep.subr.bf16.mxu0 0
      %1069 = vmatpush2.bf16.msra.mxu0 0
      %1070 = vmatprep.subr.bf16.mxu0 0
      %1071 = vmatpush2.bf16.msra.mxu0 0
      %1072 = vmatprep.subr.bf16.mxu0 0
      %1073 = vmatpush2.bf16.msra.mxu0 0
      %1074 = vmatprep.subr.bf16.mxu0 0
      %1075 = vmatpush2.bf16.msra.mxu0 0
      %1076 = vmatprep.subr.bf16.mxu0 0
      %1077 = vmatpush2.bf16.msra.mxu0 0
      %1078 = vmatprep.subr.bf16.mxu0 0
      %1079 = vmatpush2.bf16.msra.mxu0 0
      %1080 = vmatprep.subr.bf16.mxu0 0
      %1081 = vmatpush2.bf16.msra.mxu0 0
      %1082 = vmatprep.subr.bf16.mxu0 0
      %1083 = vmatpush2.bf16.msra.mxu0 0
      %1084 = vmatprep.mubr.bf16.mxu0 0
      %1085 = vmatmul.mubr.bf16.gmra.mxu0 %v1026
      %v1086 = vpop.f32.mrf.mxu0
      %v1087 = vadd.f32 0.0, %v1086
      %v1088 = vpop.f32.mrf.mxu0
      %v1089 = vpop.f32.mrf.mxu0
      %v1090 = vadd.f32 0.0, %v1089
      %v1091 = vpop.f32.mrf.mxu0
      %1092 = vmatprep.mubr.bf16.mxu0 0
      %1093 = vmatmul.mubr.bf16.gmra.mxu0 %v1029
      %v1094 = vpop.f32.mrf.mxu0
      %v1095 = vadd.f32 0.0, %v1094
      %v1096 = vpop.f32.mrf.mxu0
      %v1097 = vpop.f32.mrf.mxu0
      %v1098 = vadd.f32 0.0, %v1097
      %v1099 = vpop.f32.mrf.mxu0
      %1100 = vmatprep.mubr.bf16.mxu0 0
      %1101 = vmatmul.mubr.bf16.gmra.mxu0 %v1032
      %v1102 = vpop.f32.mrf.mxu0
      %v1103 = vadd.f32 0.0, %v1102
      %v1104 = vpop.f32.mrf.mxu0
      %v1105 = vpop.f32.mrf.mxu0
      %v1106 = vadd.f32 0.0, %v1105
      %v1107 = vpop.f32.mrf.mxu0
      %1108 = vmatprep.mubr.bf16.mxu0 0
      %1109 = vmatmul.mubr.bf16.gmra.mxu0 %v1035
      %v1110 = vpop.f32.mrf.mxu0
      %v1111 = vadd.f32 0.0, %v1110
      %v1112 = vpop.f32.mrf.mxu0
      %v1113 = vpop.f32.mrf.mxu0
      %v1114 = vadd.f32 0.0, %v1113
      %v1115 = vpop.f32.mrf.mxu0
      %1116 = vmatprep.mubr.bf16.mxu0 0
      %1117 = vmatmul.mubr.bf16.gmra.mxu0 %v1038
      %v1118 = vpop.f32.mrf.mxu0
      %v1119 = vadd.f32 0.0, %v1118
      %v1120 = vpop.f32.mrf.mxu0
      %v1121 = vpop.f32.mrf.mxu0
      %v1122 = vadd.f32 0.0, %v1121
      %v1123 = vpop.f32.mrf.mxu0
      %1124 = vmatprep.mubr.bf16.mxu0 0
      %1125 = vmatmul.mubr.bf16.gmra.mxu0 %v1041
      %v1126 = vpop.f32.mrf.mxu0
      %v1127 = vadd.f32 0.0, %v1126
      %v1128 = vpop.f32.mrf.mxu0
      %v1129 = vpop.f32.mrf.mxu0
      %v1130 = vadd.f32 0.0, %v1129
      %v1131 = vpop.f32.mrf.mxu0
      %1132 = vmatprep.mubr.bf16.mxu0 0
      %1133 = vmatmul.mubr.bf16.gmra.mxu0 %v1044
      %v1134 = vpop.f32.mrf.mxu0
      %v1135 = vadd.f32 0.0, %v1134
      %v1136 = vpop.f32.mrf.mxu0
      %v1137 = vpop.f32.mrf.mxu0
      %v1138 = vadd.f32 0.0, %v1137
      %v1139 = vpop.f32.mrf.mxu0
      %1140 = vmatprep.mubr.bf16.mxu0 0
      %1141 = vmatmul.mubr.bf16.gmra.mxu0 %v1047
      %v1142 = vpop.f32.mrf.mxu0
      %v1143 = vadd.f32 0.0, %v1142
      %v1144 = vpop.f32.mrf.mxu0
      %v1145 = vpop.f32.mrf.mxu0
      %v1146 = vadd.f32 0.0, %v1145
      %v1147 = vpop.f32.mrf.mxu0
      %1148 = vdwg.mxu0
      %v1149 = vadd.f32 %v951, %v1087
      %v1150 = vadd.f32 %v952, %v1090
      %v1151 = vadd.f32 %v953, %v1095
      %v1152 = vadd.f32 %v954, %v1098
      %v1153 = vadd.f32 %v955, %v1103
      %v1154 = vadd.f32 %v956, %v1106
      %v1155 = vadd.f32 %v957, %v1111
      %v1156 = vadd.f32 %v958, %v1114
      %v1157 = vadd.f32 %v959, %v1119
      %v1158 = vadd.f32 %v960, %v1122
      %v1159 = vadd.f32 %v961, %v1127
      %v1160 = vadd.f32 %v962, %v1130
      %v1161 = vadd.f32 %v963, %v1135
      %v1162 = vadd.f32 %v964, %v1138
      %v1163 = vadd.f32 %v965, %v1143
      %v1164 = vadd.f32 %v966, %v1146
      %v1165 = vld [vmem:[#allocation2 + $0x10] sm:$0xf]
      %v1166 = vld [vmem:[#allocation2 + $0x14] sm:$0xf]
      %v1167 = vld [vmem:[#allocation2 + $0x18] sm:$0xf]
      %v1168 = vld [vmem:[#allocation2 + $0x1c] sm:$0xf]
      %v1169 = vld [vmem:[#allocation2 + $0x20] sm:$0xf]
      %v1170 = vld [vmem:[#allocation2 + $0x24] sm:$0xf]
      %v1171 = vld [vmem:[#allocation2 + $0x28] sm:$0xf]
      %v1172 = vld [vmem:[#allocation2 + $0x2c] sm:$0xf]
      %v1173 = vld [vmem:[#allocation2 + $0x30] sm:$0xf]
      %v1174 = vld [vmem:[#allocation2 + $0x34] sm:$0xf]
      %v1175 = vld [vmem:[#allocation2 + $0x38] sm:$0xf]
      %v1176 = vld [vmem:[#allocation2 + $0x3c] sm:$0xf]
      %v1177 = vld [vmem:[#allocation2 + $0x40] sm:$0xf]
      %v1178 = vld [vmem:[#allocation2 + $0x44] sm:$0xf]
      %v1179 = vld [vmem:[#allocation2 + $0x48] sm:$0xf]
      %v1180 = vld [vmem:[#allocation2 + $0x4c] sm:$0xf]
      %s1181 = scalar_lea.vmem %s5, 8
      %v1182 = vld [vmem:[%s1181] sm:$0xf]
      %v1199 = vunpack.c.l.b16 %v1165
      %v1200 = vunpack.c.l.b16 %v1166
      %v1201 = vunpack.c.l.b16 %v1167
      %v1202 = vunpack.c.l.b16 %v1168
      %v1203 = vunpack.c.l.b16 %v1169
      %v1204 = vunpack.c.l.b16 %v1170
      %v1205 = vunpack.c.l.b16 %v1171
      %v1206 = vunpack.c.l.b16 %v1172
      %v1207 = vunpack.c.l.b16 %v1173
      %v1208 = vunpack.c.l.b16 %v1174
      %v1209 = vunpack.c.l.b16 %v1175
      %v1210 = vunpack.c.l.b16 %v1176
      %v1211 = vunpack.c.l.b16 %v1177
      %v1212 = vunpack.c.l.b16 %v1178
      %v1213 = vunpack.c.l.b16 %v1179
      %v1214 = vunpack.c.l.b16 %v1180
      %v1215 = vpack.c.b16 %v1200, %v1199
      %v1216 = vpack.c.b16 %v1202, %v1201
      %v1217 = vpack.c.b16 %v1204, %v1203
      %v1218 = vpack.c.b16 %v1206, %v1205
      %v1219 = vpack.c.b16 %v1208, %v1207
      %v1220 = vpack.c.b16 %v1210, %v1209
      %v1221 = vpack.c.b16 %v1212, %v1211
      %v1222 = vpack.c.b16 %v1214, %v1213
      %v1224 = vsel %vm825, %v1215, 0
      %v1227 = vsel %vm825, %v1216, 0
      %v1230 = vsel %vm825, %v1217, 0
      %v1233 = vsel %vm825, %v1218, 0
      %v1236 = vsel %vm825, %v1219, 0
      %v1239 = vsel %vm825, %v1220, 0
      %v1242 = vsel %vm825, %v1221, 0
      %v1245 = vsel %vm825, %v1222, 0
      %v1248 = vsel %vm850, %v1182, 0
      %1250 = vmatprep.subr.bf16.mxu0 0
      %1251 = vmatpush1.bf16.msra.mxu0 0
      %1252 = vmatprep.subr.bf16.mxu0 0
      %1253 = vmatpush1.bf16.msra.mxu0 0
      %1254 = vmatprep.subr.bf16.mxu0 0
      %1255 = vmatpush1.bf16.msra.mxu0 0
      %1256 = vmatprep.subr.bf16.mxu0 0
      %1257 = vmatpush1.bf16.msra.mxu0 0
      %1258 = vmatprep.subr.bf16.mxu0 0
      %1259 = vmatpush1.bf16.msra.mxu0 0
      %1260 = vmatprep.subr.bf16.mxu0 0
      %1261 = vmatpush1.bf16.msra.mxu0 0
      %1262 = vmatprep.subr.bf16.mxu0 0
      %1263 = vmatpush1.bf16.msra.mxu0 0
      %1264 = vmatprep.subr.bf16.mxu0 0
      %1265 = vmatpush1.bf16.msra.mxu0 %v1248
      %1266 = vmatprep.subr.bf16.mxu0 0
      %1267 = vmatpush2.bf16.msra.mxu0 0
      %1268 = vmatprep.subr.bf16.mxu0 0
      %1269 = vmatpush2.bf16.msra.mxu0 0
      %1270 = vmatprep.subr.bf16.mxu0 0
      %1271 = vmatpush2.bf16.msra.mxu0 0
      %1272 = vmatprep.subr.bf16.mxu0 0
      %1273 = vmatpush2.bf16.msra.mxu0 0
      %1274 = vmatprep.subr.bf16.mxu0 0
      %1275 = vmatpush2.bf16.msra.mxu0 0
      %1276 = vmatprep.subr.bf16.mxu0 0
      %1277 = vmatpush2.bf16.msra.mxu0 0
      %1278 = vmatprep.subr.bf16.mxu0 0
      %1279 = vmatpush2.bf16.msra.mxu0 0
      %1280 = vmatprep.subr.bf16.mxu0 0
      %1281 = vmatpush2.bf16.msra.mxu0 0
      %1282 = vmatprep.mubr.bf16.mxu0 0
      %1283 = vmatmul.mubr.bf16.gmra.mxu0 %v1224
      %v1284 = vpop.f32.mrf.mxu0
      %v1285 = vadd.f32 0.0, %v1284
      %v1286 = vpop.f32.mrf.mxu0
      %v1287 = vpop.f32.mrf.mxu0
      %v1288 = vadd.f32 0.0, %v1287
      %v1289 = vpop.f32.mrf.mxu0
      %1290 = vmatprep.mubr.bf16.mxu0 0
      %1291 = vmatmul.mubr.bf16.gmra.mxu0 %v1227
      %v1292 = vpop.f32.mrf.mxu0
      %v1293 = vadd.f32 0.0, %v1292
      %v1294 = vpop.f32.mrf.mxu0
      %v1295 = vpop.f32.mrf.mxu0
      %v1296 = vadd.f32 0.0, %v1295
      %v1297 = vpop.f32.mrf.mxu0
      %1298 = vmatprep.mubr.bf16.mxu0 0
      %1299 = vmatmul.mubr.bf16.gmra.mxu0 %v1230
      %v1300 = vpop.f32.mrf.mxu0
      %v1301 = vadd.f32 0.0, %v1300
      %v1302 = vpop.f32.mrf.mxu0
      %v1303 = vpop.f32.mrf.mxu0
      %v1304 = vadd.f32 0.0, %v1303
      %v1305 = vpop.f32.mrf.mxu0
      %1306 = vmatprep.mubr.bf16.mxu0 0
      %1307 = vmatmul.mubr.bf16.gmra.mxu0 %v1233
      %v1308 = vpop.f32.mrf.mxu0
      %v1309 = vadd.f32 0.0, %v1308
      %v1310 = vpop.f32.mrf.mxu0
      %v1311 = vpop.f32.mrf.mxu0
      %v1312 = vadd.f32 0.0, %v1311
      %v1313 = vpop.f32.mrf.mxu0
      %1314 = vmatprep.mubr.bf16.mxu0 0
      %1315 = vmatmul.mubr.bf16.gmra.mxu0 %v1236
      %v1316 = vpop.f32.mrf.mxu0
      %v1317 = vadd.f32 0.0, %v1316
      %v1318 = vpop.f32.mrf.mxu0
      %v1319 = vpop.f32.mrf.mxu0
      %v1320 = vadd.f32 0.0, %v1319
      %v1321 = vpop.f32.mrf.mxu0
      %1322 = vmatprep.mubr.bf16.mxu0 0
      %1323 = vmatmul.mubr.bf16.gmra.mxu0 %v1239
      %v1324 = vpop.f32.mrf.mxu0
      %v1325 = vadd.f32 0.0, %v1324
      %v1326 = vpop.f32.mrf.mxu0
      %v1327 = vpop.f32.mrf.mxu0
      %v1328 = vadd.f32 0.0, %v1327
      %v1329 = vpop.f32.mrf.mxu0
      %1330 = vmatprep.mubr.bf16.mxu0 0
      %1331 = vmatmul.mubr.bf16.gmra.mxu0 %v1242
      %v1332 = vpop.f32.mrf.mxu0
      %v1333 = vadd.f32 0.0, %v1332
      %v1334 = vpop.f32.mrf.mxu0
      %v1335 = vpop.f32.mrf.mxu0
      %v1336 = vadd.f32 0.0, %v1335
      %v1337 = vpop.f32.mrf.mxu0
      %1338 = vmatprep.mubr.bf16.mxu0 0
      %1339 = vmatmul.mubr.bf16.gmra.mxu0 %v1245
      %v1340 = vpop.f32.mrf.mxu0
      %v1341 = vadd.f32 0.0, %v1340
      %v1342 = vpop.f32.mrf.mxu0
      %v1343 = vpop.f32.mrf.mxu0
      %v1344 = vadd.f32 0.0, %v1343
      %v1345 = vpop.f32.mrf.mxu0
      %1346 = vdwg.mxu0
      %v1347 = vadd.f32 %v1149, %v1285
      %v1348 = vadd.f32 %v1150, %v1288
      %v1349 = vadd.f32 %v1151, %v1293
      %v1350 = vadd.f32 %v1152, %v1296
      %v1351 = vadd.f32 %v1153, %v1301
      %v1352 = vadd.f32 %v1154, %v1304
      %v1353 = vadd.f32 %v1155, %v1309
      %v1354 = vadd.f32 %v1156, %v1312
      %v1355 = vadd.f32 %v1157, %v1317
      %v1356 = vadd.f32 %v1158, %v1320
      %v1357 = vadd.f32 %v1159, %v1325
      %v1358 = vadd.f32 %v1160, %v1328
      %v1359 = vadd.f32 %v1161, %v1333
      %v1360 = vadd.f32 %v1162, %v1336
      %v1361 = vadd.f32 %v1163, %v1341
      %v1362 = vadd.f32 %v1164, %v1344
      %v1363 = vpack.c.bf16 %v1348, %v1347
      %v1364 = vpack.c.bf16 %v1350, %v1349
      %v1365 = vpack.c.bf16 %v1352, %v1351
      %v1366 = vpack.c.bf16 %v1354, %v1353
      %v1367 = vpack.c.bf16 %v1356, %v1355
      %v1368 = vpack.c.bf16 %v1358, %v1357
      %v1369 = vpack.c.bf16 %v1360, %v1359
      %v1370 = vpack.c.bf16 %v1362, %v1361
      %v1379 = vunpack.c.l.b16 %v1363
      %v1380 = vunpack.c.h.b16 %v1363
      %v1381 = vunpack.c.l.b16 %v1364
      %v1382 = vunpack.c.h.b16 %v1364
      %v1383 = vunpack.c.l.b16 %v1365
      %v1384 = vunpack.c.h.b16 %v1365
      %v1385 = vunpack.c.l.b16 %v1366
      %v1386 = vunpack.c.h.b16 %v1366
      %v1387 = vunpack.c.l.b16 %v1367
      %v1388 = vunpack.c.h.b16 %v1367
      %v1389 = vunpack.c.l.b16 %v1368
      %v1390 = vunpack.c.h.b16 %v1368
      %v1391 = vunpack.c.l.b16 %v1369
      %v1392 = vunpack.c.h.b16 %v1369
      %v1393 = vunpack.c.l.b16 %v1370
      %v1394 = vunpack.c.h.b16 %v1370
      %v1395 = vpack.c.b16 %v1379, %v1379
      %v1396 = vpack.c.b16 %v1380, %v1380
      %v1397 = vpack.c.b16 %v1381, %v1381
      %v1398 = vpack.c.b16 %v1382, %v1382
      %v1399 = vpack.c.b16 %v1383, %v1383
      %v1400 = vpack.c.b16 %v1384, %v1384
      %v1401 = vpack.c.b16 %v1385, %v1385
      %v1402 = vpack.c.b16 %v1386, %v1386
      %v1403 = vpack.c.b16 %v1387, %v1387
      %v1404 = vpack.c.b16 %v1388, %v1388
      %v1405 = vpack.c.b16 %v1389, %v1389
      %v1406 = vpack.c.b16 %v1390, %v1390
      %v1407 = vpack.c.b16 %v1391, %v1391
      %v1408 = vpack.c.b16 %v1392, %v1392
      %v1409 = vpack.c.b16 %v1393, %v1393
      %v1410 = vpack.c.b16 %v1394, %v1394
      %1427 = vst.msk [vmem:[%s517] sm:$0xf] %vm692, %v1395
      %1428 = vst.msk [vmem:[%s517 + $0x4] sm:$0xf] %vm692, %v1396
      %1429 = vst.msk [vmem:[%s517 + $0x8] sm:$0xf] %vm692, %v1397
      %1430 = vst.msk [vmem:[%s517 + $0xc] sm:$0xf] %vm692, %v1398
      %1431 = vst.msk [vmem:[%s517 + $0x10] sm:$0xf] %vm692, %v1399
      %1432 = vst.msk [vmem:[%s517 + $0x14] sm:$0xf] %vm692, %v1400
      %1433 = vst.msk [vmem:[%s517 + $0x18] sm:$0xf] %vm692, %v1401
      %1434 = vst.msk [vmem:[%s517 + $0x1c] sm:$0xf] %vm692, %v1402
      %1435 = vst.msk [vmem:[%s517 + $0x20] sm:$0xf] %vm692, %v1403
      %1436 = vst.msk [vmem:[%s517 + $0x24] sm:$0xf] %vm692, %v1404
      %1437 = vst.msk [vmem:[%s517 + $0x28] sm:$0xf] %vm692, %v1405
      %1438 = vst.msk [vmem:[%s517 + $0x2c] sm:$0xf] %vm692, %v1406
      %1439 = vst.msk [vmem:[%s517 + $0x30] sm:$0xf] %vm692, %v1407
      %1440 = vst.msk [vmem:[%s517 + $0x34] sm:$0xf] %vm692, %v1408
      %1441 = vst.msk [vmem:[%s517 + $0x38] sm:$0xf] %vm692, %v1409
      %1442 = vst.msk [vmem:[%s517 + $0x3c] sm:$0xf] %vm692, %v1410
      %v1443 = vsel %vm825, %v1347, 0.0
      %v1444 = vsel %vm825, %v1348, 0.0
      %v1445 = vadd.f32 %v1443, %v1444
      %v1446 = vsel %vm825, %v1349, 0.0
      %v1447 = vadd.f32 %v1445, %v1446
      %v1448 = vsel %vm825, %v1350, 0.0
      %v1449 = vadd.f32 %v1447, %v1448
      %v1450 = vsel %vm825, %v1351, 0.0
      %v1451 = vadd.f32 %v1449, %v1450
      %v1452 = vsel %vm825, %v1352, 0.0
      %v1453 = vadd.f32 %v1451, %v1452
      %v1454 = vsel %vm825, %v1353, 0.0
      %v1455 = vadd.f32 %v1453, %v1454
      %v1456 = vsel %vm825, %v1354, 0.0
      %v1457 = vadd.f32 %v1455, %v1456
      %v1458 = vsel %vm825, %v1355, 0.0
      %v1459 = vadd.f32 %v1457, %v1458
      %v1460 = vsel %vm825, %v1356, 0.0
      %v1461 = vadd.f32 %v1459, %v1460
      %v1462 = vsel %vm825, %v1357, 0.0
      %v1463 = vadd.f32 %v1461, %v1462
      %v1464 = vsel %vm825, %v1358, 0.0
      %v1465 = vadd.f32 %v1463, %v1464
      %v1466 = vsel %vm825, %v1359, 0.0
      %v1467 = vadd.f32 %v1465, %v1466
      %v1468 = vsel %vm825, %v1360, 0.0
      %v1469 = vadd.f32 %v1467, %v1468
      %v1470 = vsel %vm825, %v1361, 0.0
      %v1471 = vadd.f32 %v1469, %v1470
      %v1472 = vsel %vm825, %v1362, 0.0
      %v1473 = vadd.f32 %v1471, %v1472
      %v1474 = vrot.slane %v1473, 4
      %v1475 = vadd.f32 %v1473, %v1474
      %v1476 = vrot.slane %v1475, 2
      %v1477 = vadd.f32 %v1475, %v1476
      %v1478 = vrot.slane %v1477, 1
      %v1479 = vadd.f32 %v1477, %v1478
      %vm1480 = vcmask 57344
      %1481 = vst.msk [vmem:[%s525] sm:$0x1] %vm1480, %v1479
      %v1482 = vmul.f32 %v1347, %v1347
      %v1483 = vmul.f32 %v1348, %v1348
      %v1484 = vmul.f32 %v1349, %v1349
      %v1485 = vmul.f32 %v1350, %v1350
      %v1486 = vmul.f32 %v1351, %v1351
      %v1487 = vmul.f32 %v1352, %v1352
      %v1488 = vmul.f32 %v1353, %v1353
      %v1489 = vmul.f32 %v1354, %v1354
      %v1490 = vmul.f32 %v1355, %v1355
      %v1491 = vmul.f32 %v1356, %v1356
      %v1492 = vmul.f32 %v1357, %v1357
      %v1493 = vmul.f32 %v1358, %v1358
      %v1494 = vmul.f32 %v1359, %v1359
      %v1495 = vmul.f32 %v1360, %v1360
      %v1496 = vmul.f32 %v1361, %v1361
      %v1497 = vmul.f32 %v1362, %v1362
      %v1498 = vsel %vm825, %v1482, 0.0
      %v1499 = vsel %vm825, %v1483, 0.0
      %v1500 = vadd.f32 %v1498, %v1499
      %v1501 = vsel %vm825, %v1484, 0.0
      %v1502 = vadd.f32 %v1500, %v1501
      %v1503 = vsel %vm825, %v1485, 0.0
      %v1504 = vadd.f32 %v1502, %v1503
      %v1505 = vsel %vm825, %v1486, 0.0
      %v1506 = vadd.f32 %v1504, %v1505
      %v1507 = vsel %vm825, %v1487, 0.0
      %v1508 = vadd.f32 %v1506, %v1507
      %v1509 = vsel %vm825, %v1488, 0.0
      %v1510 = vadd.f32 %v1508, %v1509
      %v1511 = vsel %vm825, %v1489, 0.0
      %v1512 = vadd.f32 %v1510, %v1511
      %v1513 = vsel %vm825, %v1490, 0.0
      %v1514 = vadd.f32 %v1512, %v1513
      %v1515 = vsel %vm825, %v1491, 0.0
      %v1516 = vadd.f32 %v1514, %v1515
      %v1517 = vsel %vm825, %v1492, 0.0
      %v1518 = vadd.f32 %v1516, %v1517
      %v1519 = vsel %vm825, %v1493, 0.0
      %v1520 = vadd.f32 %v1518, %v1519
      %v1521 = vsel %vm825, %v1494, 0.0
      %v1522 = vadd.f32 %v1520, %v1521
      %v1523 = vsel %vm825, %v1495, 0.0
      %v1524 = vadd.f32 %v1522, %v1523
      %v1525 = vsel %vm825, %v1496, 0.0
      %v1526 = vadd.f32 %v1524, %v1525
      %v1527 = vsel %vm825, %v1497, 0.0
      %v1528 = vadd.f32 %v1526, %v1527
      %v1529 = vrot.slane %v1528, 4
      %v1530 = vadd.f32 %v1528, %v1529
      %v1531 = vrot.slane %v1530, 2
      %v1532 = vadd.f32 %v1530, %v1531
      %v1533 = vrot.slane %v1532, 1
      %v1534 = vadd.f32 %v1532, %v1533
      %1535 = vst.msk [vmem:[%s532] sm:$0x1] %vm1480, %v1534
      %s1536 = smul.u32 16, %s26
      %p1537 = scmp.lt.s32.totalorder %s25, 1
      %s1538 = scalar_select %p1537, %s25, 1
      %p1539 = scmp.lt.s32.totalorder %s1536, 31
      %s1540 = scalar_select %p1539, %s1536, 31
      %s1541 = smul.addr %s1538, 32
      %s1542 = sadd.s32 %s1540, %s1541
      %s1543 = smul.addr %s1542, 4
      %s1544 = scalar_lea.vmem %s7, %s1543
      %p1545 = scmp.lt.s32.totalorder %s25, 1
      %s1546 = scalar_select %p1545, %s25, 1
      %p1547 = scmp.lt.s32.totalorder %s26, 1
      %s1548 = scalar_select %p1547, %s26, 1
      %s1549 = smul.addr %s1546, 2
      %s1550 = sadd.s32 %s1548, %s1549
      %s1551 = scalar_lea.vmem %s8, %s1550
      %p1552 = scmp.lt.s32.totalorder %s25, 1
      %s1553 = scalar_select %p1552, %s25, 1
      %p1554 = scmp.lt.s32.totalorder %s26, 1
      %s1555 = scalar_select %p1554, %s26, 1
      %s1556 = smul.addr %s1553, 2
      %s1557 = sadd.s32 %s1555, %s1556
      %s1558 = scalar_lea.vmem %s9, %s1557
      // Predicated region
      $region49: #{st_gcn_forward.5} parent=47 // pred_check
        %p1559 = pneg %p237
      $region50: #{st_gcn_forward.5} parent=47 // pred_check_branch
        %1561 = sbr.rel (%p1559) target = $region52
      $region51: #{st_gcn_forward.5} parent=47 // pred_region
        %s1562 = smul.u32 16, %s26
      $region52: #{st_gcn_forward.5} parent=47 // pred_fallthru
        _
      // Predicated region
      $region53: #{st_gcn_forward.5} parent=47 // pred_check
        %p1563 = pneg %p265
      $region54: #{st_gcn_forward.5} parent=47 // pred_check_branch
        %1565 = sbr.rel (%p1563) target = $region56
      $region55: #{st_gcn_forward.5} parent=47 // pred_region
        _
      $region56: #{st_gcn_forward.5} parent=47 // pred_fallthru
        _
      // Predicated region
      $region57: #{st_gcn_forward.5} parent=47 // pred_check
        %p1566 = pneg %p293
      $region58: #{st_gcn_forward.5} parent=47 // pred_check_branch
        %1568 = sbr.rel (%p1566) target = $region60
      $region59: #{st_gcn_forward.5} parent=47 // pred_region
        _
      $region60: #{st_gcn_forward.5} parent=47 // pred_fallthru
        _
    $region48: #{st_gcn_forward.5} parent=5 // pred_fallthru
      _
    %p1569 = scmp.le.s32.totalorder 2, %s16
    // Predicated region
    $region61: #{st_gcn_forward.5} parent=5 // pred_check
      %p1570 = pneg %p1569
    $region62: #{st_gcn_forward.5} parent=5 // pred_check_branch
      %1572 = sbr.rel (%p1570) target = $region64
    $region63: #{st_gcn_forward.5} parent=5 // pred_region
      %s1573 = ssub.s32 %s16, 2
      // Predicated region
      $region65: #{st_gcn_forward.5} parent=63 // pred_check
        %p1574 = pneg %p243
      $region66: #{st_gcn_forward.5} parent=63 // pred_check_branch
        %1576 = sbr.rel (%p1574) target = $region68
      $region67: #{st_gcn_forward.5} parent=63 // pred_region
        %s1577 = smul.u32 16, %s28
        %p1578 = scmp.lt.s32.totalorder %s27, 1
        %s1579 = scalar_select %p1578, %s27, 1
        %p1580 = scmp.lt.s32.totalorder %s1577, 31
        %s1581 = scalar_select %p1580, %s1577, 31
        %s1582 = smul.addr %s1579, 32
        %s1583 = sadd.s32 %s1581, %s1582
        %s1584 = smul.addr %s1583, 4
        %s1585 = scalar_lea.vmem %s7, %s1584
      $region68: #{st_gcn_forward.5} parent=63 // pred_fallthru
        _
      // Predicated region
      $region69: #{st_gcn_forward.5} parent=63 // pred_check
        %p1586 = pneg %p271
      $region70: #{st_gcn_forward.5} parent=63 // pred_check_branch
        %1588 = sbr.rel (%p1586) target = $region72
      $region71: #{st_gcn_forward.5} parent=63 // pred_region
        %p1589 = scmp.lt.s32.totalorder %s27, 1
        %s1590 = scalar_select %p1589, %s27, 1
        %p1591 = scmp.lt.s32.totalorder %s28, 1
        %s1592 = scalar_select %p1591, %s28, 1
        %s1593 = smul.addr %s1590, 2
        %s1594 = sadd.s32 %s1592, %s1593
        %s1595 = scalar_lea.vmem %s8, %s1594
      $region72: #{st_gcn_forward.5} parent=63 // pred_fallthru
        _
      // Predicated region
      $region73: #{st_gcn_forward.5} parent=63 // pred_check
        %p1596 = pneg %p299
      $region74: #{st_gcn_forward.5} parent=63 // pred_check_branch
        %1598 = sbr.rel (%p1596) target = $region76
      $region75: #{st_gcn_forward.5} parent=63 // pred_region
        %p1599 = scmp.lt.s32.totalorder %s27, 1
        %s1600 = scalar_select %p1599, %s27, 1
        %p1601 = scmp.lt.s32.totalorder %s28, 1
        %s1602 = scalar_select %p1601, %s28, 1
        %s1603 = smul.addr %s1600, 2
        %s1604 = sadd.s32 %s1602, %s1603
        %s1605 = scalar_lea.vmem %s9, %s1604
      $region76: #{st_gcn_forward.5} parent=63 // pred_fallthru
        _
    $region64: #{st_gcn_forward.5} parent=5 // pred_fallthru
      _
  $region6: #{st_gcn_forward.5} parent=0 // loop_footer
    %s20 = sadd.s32 1, %s16
  $region7: #{st_gcn_forward.5} parent=0 // loop_footer_branch
    %15 = sbr.rel target = $region3
  $region8: #{st_gcn_forward.5} parent=0 // loop_exit
    _

</llo_original>
